<compile_context>
chip_gen: v7x
topology: tpu7x:2x2x1
jax: 0.10.0
libtpu: 0.0.40
codegen_flags: <defaults>
</compile_context>

<pallas_src>
import functools

import jax
import jax.numpy as jnp
from jax.experimental import pallas as pl
from jax.experimental.pallas import tpu as pltpu


# ---------------------------------------------------------------------------
# Helpers
# ---------------------------------------------------------------------------
def _pick_tile(n, cap):
    """Largest tile <= cap that divides n and is a multiple of 8, else the full extent."""
    t = int(cap)
    while t >= 16:
        if n % t == 0 and t % 8 == 0:
            return t
        t //= 2
    return n


# ---------------------------------------------------------------------------
# Kernels
# ---------------------------------------------------------------------------
def _project_kernel(x_ref, pos_ref, wx_ref, wp_ref, b_ref, c_ref, ev_ref, p_ref):
    """Per-node projections for one PointTransformerConv layer (one row tile).

    t = x @ Wx + pos @ Wp = [lin_src(x)+p | lin(x)-p | p]
    e = exp(c - (lin_src(x)+p));  v = e * (lin(x)-p+b);  ev = [v | e] (bf16 MXU operand)
    """
    hidden = p_ref.shape[-1]
    t = (jnp.dot(x_ref[...].astype(jnp.float32), wx_ref[...],
                 preferred_element_type=jnp.float32)
         + jnp.dot(pos_ref[...], wp_ref[...], preferred_element_type=jnp.float32))
    spe = t[:, :hidden]               # lin_src(x_j) + p_j   (what the softmax depends on)
    vpre = t[:, hidden:2 * hidden]    # lin(x_j) - p_j
    p = t[:, 2 * hidden:]             # p_j

    e = jnp.exp(c_ref[...] - spe)                   # exponents <= 0 (c = global min)
    v = e * (vpre + b_ref[...])                     # e_j * (lin(x_j) - p_j + b)

    # Direct slice stores (no lane-shuffling concatenate); single bf16 cast for the MXU.
    ev_ref[:, :hidden] = v.astype(ev_ref.dtype)
    ev_ref[:, hidden:] = e.astype(ev_ref.dtype)
    p_ref[...] = p


def _agg_accumulate(adj_ref, ev_ref, acc_ref):
    """Accumulate adj_tile @ [v|e]_tile over the k (neighbour) grid axis.

    ev is VMEM-resident for the whole kernel (constant index map), so slice the
    current k-tile's rows out of VMEM instead of re-streaming them from HBM.
    """
    k = pl.program_id(1)
    tk = adj_ref.shape[1]

    @pl.when(k == 0)
    def _():
        acc_ref[...] = jnp.zeros_like(acc_ref)

    start = pl.multiple_of(k * tk, tk)
    acc_ref[...] += jnp.dot(adj_ref[...], ev_ref[pl.ds(start, tk), :],
                            preferred_element_type=jnp.float32)


def _finalize_conv(acc_ref, p_ref, hidden):
    """out = relu(p + num / den); divide on the (otherwise idle) EUP."""
    acc = acc_ref[...]
    num = acc[:, :hidden]
    den = acc[:, hidden:]
    # Guard against an all-underflowed / empty row (self-loops normally prevent this).
    inv = pl.reciprocal(jnp.maximum(den, 1e-20), approx=True)
    return jnp.maximum(p_ref[...] + num * inv, 0.0)      # fused F.relu


def _aggregate_kernel(adj_ref, ev_ref, p_ref, o_ref, acc_ref):
    """Conv layers 1 & 2: attention aggregation + ReLU (bf16 output)."""
    _agg_accumulate(adj_ref, ev_ref, acc_ref)

    @pl.when(pl.program_id(1) == pl.num_programs(1) - 1)
    def _():
        o_ref[...] = _finalize_conv(acc_ref, p_ref, p_ref.shape[-1]).astype(o_ref.dtype)


def _aggregate_head_kernel(adj_ref, ev_ref, p_ref,
                           w1_ref, b1_ref, w2t_ref, b2_ref, o_ref, acc_ref):
    """Conv layer 3: attention aggregation + ReLU, then fused fc1 -> ReLU -> fc2."""
    _agg_accumulate(adj_ref, ev_ref, acc_ref)

    @pl.when(pl.program_id(1) == pl.num_programs(1) - 1)
    def _():
        h = _finalize_conv(acc_ref, p_ref, p_ref.shape[-1])              # (TI, H)
        h1 = jnp.maximum(
            jnp.dot(h, w1_ref[...], preferred_element_type=jnp.float32) + b1_ref[...],
            0.0)                                                         # (TI, H//2)
        w2t = w2t_ref[...]                                               # (out_c, H//2)
        if w2t.shape[0] == 1:
            # out_channels == 1: lane-reduce on the VPU/XLU instead of a 1-wide MXU matmul.
            y = jnp.sum(h1 * w2t, axis=-1, keepdims=True) + b2_ref[...]
        else:
            y = jax.lax.dot_general(h1, w2t, (((1,), (1,)), ((), ())),
                                    preferred_element_type=jnp.float32) + b2_ref[...]
        o_ref[...] = y.astype(o_ref.dtype)


# ---------------------------------------------------------------------------
# Wrappers
# ---------------------------------------------------------------------------
def _project(x, pos, w_x, w_p, b_pos, c, hidden, tile_r):
    N, F = x.shape
    tr = _pick_tile(N, tile_r)
    grid = (N // tr,)

    row = lambda cols: pl.BlockSpec((tr, cols), lambda r: (r, 0))
    rep = lambda a: pl.BlockSpec(a.shape, lambda r: (0,) * a.ndim)

    return pl.pallas_call(
        _project_kernel,
        out_shape=(jax.ShapeDtypeStruct((N, 2 * hidden), jnp.bfloat16),   # [v | e]
                   jax.ShapeDtypeStruct((N, hidden), jnp.float32)),       # p
        grid=grid,
        in_specs=[row(F), row(3), rep(w_x), rep(w_p), rep(b_pos), rep(c)],
        out_specs=[row(2 * hidden), row(hidden)],
        compiler_params=pltpu.CompilerParams(dimension_semantics=("parallel",)),
    )(x, pos, w_x, w_p, b_pos, c)


def _aggregate(adj, ev, p_feat, head=None, *, tile_i=512, tile_k=1024):
    N, hidden = p_feat.shape
    # >=2 i-tiles so the "parallel" axis shards across v7x's two TensorCores; large
    # k-tiles keep the HBM-bound adj stream near roofline and amortise grid overhead.
    ti = _pick_tile(N, min(tile_i, max(N // 2, 16)))
    tk = _pick_tile(N, tile_k)
    grid = (N // ti, N // tk)

    adj_spec = pl.BlockSpec((ti, tk), lambda i, k: (i, k))
    # ev is tiny (4H bytes/row): keep the whole array VMEM-resident (constant index map)
    # instead of re-streaming a (tk, 2H) block for every (i, k) grid step.
    ev_spec = pl.BlockSpec((N, 2 * hidden), lambda i, k: (0, 0))
    p_spec = pl.BlockSpec((ti, hidden), lambda i, k: (i, 0))
    scratch = [pltpu.VMEM((ti, 2 * hidden), jnp.float32)]

    # Explicit VMEM budget: v7x has 64 MiB physical / 32 MiB default scoped limit.
    vmem_need = (2 * ti * tk * 2             # adj (bf16) double-buffered
                 + 2 * N * 2 * hidden * 2    # resident ev (allow 2 buffers)
                 + 2 * ti * hidden * 4       # p (f32) double-buffered
                 + ti * 2 * hidden * 4       # f32 accumulator scratch
                 + 4 * ti * 128 * 4)         # outputs + headroom
    vmem_limit = int(min(max(2 * vmem_need, 32 * 1024 * 1024), 56 * 1024 * 1024))
    cparams = pltpu.CompilerParams(dimension_semantics=("parallel", "arbitrary"),
                                   vmem_limit_bytes=vmem_limit)

    if head is None:
        # bf16 output: only consumed as the next layer's MXU operand (halves HBM traffic).
        return pl.pallas_call(
            _aggregate_kernel,
            out_shape=jax.ShapeDtypeStruct((N, hidden), jnp.bfloat16),
            grid=grid,
            in_specs=[adj_spec, ev_spec, p_spec],
            out_specs=pl.BlockSpec((ti, hidden), lambda i, k: (i, 0)),
            scratch_shapes=scratch,
            compiler_params=cparams,
        )(adj, ev, p_feat)

    w1, b1, w2t, b2 = head
    out_c = w2t.shape[0]
    rep = lambda a: pl.BlockSpec(a.shape, lambda i, k: (0,) * a.ndim)
    return pl.pallas_call(
        _aggregate_head_kernel,
        out_shape=jax.ShapeDtypeStruct((N, out_c), jnp.float32),
        grid=grid,
        in_specs=[adj_spec, ev_spec, p_spec, rep(w1), rep(b1), rep(w2t), rep(b2)],
        out_specs=pl.BlockSpec((ti, out_c), lambda i, k: (i, 0)),
        scratch_shapes=scratch,
        compiler_params=cparams,
    )(adj, ev, p_feat, w1, b1, w2t, b2)


def point_transformer_conv(x, pos, adj, cp, head=None, *,
                           tile_i=512, tile_k=1024, tile_r=2048):
    hidden = cp["b_pos"].shape[-1]
    # Per-channel softmax stabiliser c = min_j (lin_src(x_j) + p_j).  Any per-channel
    # constant is valid (softmax shift invariance); the GLOBAL min keeps all exponents
    # <= 0.  Hoisted to a cheap O(N*F*H) XLA pre-pass (a per-row-tile min would be
    # inconsistent across neighbourhoods and therefore incorrect).
    spe = x.astype(jnp.float32) @ cp["w_src"] + pos @ cp["w_pos"]
    c = jnp.min(spe, axis=0, keepdims=True)
    ev, p_feat = _project(x, pos, cp["w_x"], cp["w_p"], cp["b_pos"], c, hidden, tile_r)
    return _aggregate(adj, ev, p_feat, head=head, tile_i=tile_i, tile_k=tile_k)


def point_transformer_net(x, pos, adj, params, *,
                          tile_i=512, tile_k=1024, tile_r=2048):
    kw = dict(tile_i=tile_i, tile_k=tile_k, tile_r=tile_r)
    h = point_transformer_conv(x, pos, adj, params["conv1"], **kw)
    h = point_transformer_conv(h, pos, adj, params["conv2"], **kw)
    head = (params["fc1_w"], params["fc1_b"], params["fc2_wt"], params["fc2_b"])
    # pooling=False path: no global_mean_pool; `batch` unused.
    # TODO(synk): add global_mean_pool (segment-mean over batch) for pooling=True.
    # TODO(synk): exploit kNN sparsity at large N (spatial reorder + per-i-tile k-tile
    # table via PrefetchScalarGridSpec) to skip all-zero adj tiles; and fp8 adj on v7x.
    return point_transformer_conv(h, pos, adj, params["conv3"], head=head, **kw)


# ---------------------------------------------------------------------------
# Deterministic parameter init (shapes follow the module's __init__)
# ---------------------------------------------------------------------------
def _linear(key, fan_in, fan_out, bias=True):
    kw, kb = jax.random.split(key)
    bound = 1.0 / jnp.sqrt(jnp.float32(fan_in))
    w = jax.random.uniform(kw, (fan_in, fan_out), jnp.float32, -bound, bound)
    if not bias:
        return w
    b = jax.random.uniform(kb, (1, fan_out), jnp.float32, -bound, bound)
    return w, b


def _conv_params(key, fin, hidden):
    k1, k2, k3, k4 = jax.random.split(key, 4)
    w_lin = _linear(k1, fin, hidden, bias=False)      # lin      (bias=False)
    w_src = _linear(k2, fin, hidden, bias=False)      # lin_src  (bias=False)
    w_dst = _linear(k3, fin, hidden, bias=False)      # lin_dst: row-constant in the
    #                                                   logits -> cancels in the softmax.
    w_pos, b_pos = _linear(k4, 3, hidden, bias=True)  # pos_nn = Linear(3, H)

    # Fused projection weights:  x @ w_x + pos @ w_p = [lin_src(x)+p | lin(x)-p | p]
    zeros = jnp.zeros((fin, hidden), jnp.float32)
    w_x = jnp.concatenate([w_src, w_lin, zeros], axis=1)     # (fin, 3H)
    w_p = jnp.concatenate([w_pos, -w_pos, w_pos], axis=1)    # (3,   3H)
    return {"w_src": w_src, "w_lin": w_lin, "w_dst": w_dst,
            "w_pos": w_pos, "b_pos": b_pos, "w_x": w_x, "w_p": w_p}


def init_params(key, in_channels, out_channels, hidden):
    k1, k2, k3, k4, k5 = jax.random.split(key, 5)
    fc1_w, fc1_b = _linear(k4, hidden, hidden // 2, bias=True)
    fc2_w, fc2_b = _linear(k5, hidden // 2, out_channels, bias=True)
    return {
        "conv1": _conv_params(k1, in_channels, hidden),
        "conv2": _conv_params(k2, hidden, hidden),
        "conv3": _conv_params(k3, hidden, hidden),
        "fc1_w": fc1_w, "fc1_b": fc1_b,
        "fc2_wt": fc2_w.T, "fc2_b": fc2_b,             # fc2 stored transposed: (out_c, H//2)
    }


def knn_adjacency(pos, k):
    """adj[i, j] = 1 iff j is one of i's k nearest neighbors (edge j->i), plus self-loops.

    Stored in bf16 (exact for a 0/1 mask) to halve adjacency HBM traffic.
    """
    N = pos.shape[0]
    d2 = jnp.sum((pos[:, None, :] - pos[None, :, :]) ** 2, axis=-1)
    d2 = d2 + jnp.eye(N, dtype=jnp.float32) * 1e10
    _, nbr = jax.lax.top_k(-d2, k)
    adj = jnp.zeros((N, N), jnp.float32).at[jnp.arange(N)[:, None], nbr].set(1.0)
    adj = jnp.maximum(adj, jnp.eye(N, dtype=jnp.float32))     # add_self_loops
    return adj.astype(jnp.bfloat16)


# ---------------------------------------------------------------------------
# Pure-JAX reference (dense, f32) for validation of the forward semantics
# ---------------------------------------------------------------------------
def _conv_reference(x, pos, adj, cp):
    x = x.astype(jnp.float32)
    p = pos @ cp["w_pos"]
    src = x @ cp["w_src"]
    dst = x @ cp["w_dst"]
    lin = x @ cp["w_lin"]
    b = cp["b_pos"]
    logits = (dst + p)[:, None, :] - (src + p)[None, :, :] + b[None, :, :]
    mask = (adj.astype(jnp.float32) > 0.5)[:, :, None]
    masked = jnp.where(mask, logits, -jnp.inf)
    m = jnp.max(masked, axis=1, keepdims=True)
    ex = jnp.where(mask, jnp.exp(masked - m), 0.0)
    alpha = ex / jnp.sum(ex, axis=1, keepdims=True)
    val = lin[None, :, :] + (p[:, None, :] - p[None, :, :]) + b[None, :, :]
    return jnp.maximum(jnp.sum(alpha * val, axis=1), 0.0)


def reference_net(x, pos, adj, params):
    h = _conv_reference(x, pos, adj, params["conv1"])
    h = _conv_reference(h, pos, adj, params["conv2"])
    h = _conv_reference(h, pos, adj, params["conv3"])
    h = jnp.maximum(h @ params["fc1_w"] + params["fc1_b"], 0.0)
    return h @ params["fc2_wt"].T + params["fc2_b"]


# ---------------------------------------------------------------------------
if __name__ == "__main__":
    key = jax.random.PRNGKey(0)
    # Small but non-trivial: N=256 gives a (2 x 1) grid at default tiles and a
    # (4 x 4) grid (multi-step k reduction) at the small-tile variant below.
    N, in_channels, hidden, out_channels, k_nn = 256, 3, 32, 1, 16

    k_pos, k_params = jax.random.split(key)
    pos = jax.random.normal(k_pos, (N, 3), jnp.float32)
    x = pos                                   # node features = xyz coords (in_channels=3)
    adj = knn_adjacency(pos, k_nn)            # dense edge_index equivalent (bf16 0/1 mask)
    params = init_params(k_params, in_channels, out_channels, hidden)

    # Default (large-tile) path.
    fwd = jax.jit(point_transformer_net)
    out = jax.block_until_ready(fwd(x, pos, adj, params))
    assert out.shape == (N, out_channels) and out.dtype == jnp.float32
    assert bool(jnp.all(jnp.isfinite(out)))

    # Small-tile variant: exercises the multi-step k accumulation and multi-tile grids.
    fwd_small = jax.jit(functools.partial(point_transformer_net,
                                          tile_i=64, tile_k=64, tile_r=128))
    out_small = jax.block_until_ready(fwd_small(x, pos, adj, params))
    assert out_small.shape == (N, out_channels)

    # Validate against the dense f32 reference (bf16 ev / activations + approx recip
    # introduce ~1e-2-level error, well inside this tolerance).
    ref = jax.jit(reference_net)(x, pos, adj, params)
    tol = 0.15 * (1.0 + float(jnp.max(jnp.abs(ref))))
    err = max(float(jnp.max(jnp.abs(out - ref))), float(jnp.max(jnp.abs(out_small - ref))))
    assert err < tol, (err, tol)

    print("KERNEL_OK")
</pallas_src>

<mosaic_0001>
module attributes {stable_mosaic.version = 11 : i64} {
  func.func @_project_kernel(%arg0: i32, %arg1: memref<256x3xf32, #tpu.memory_space<vmem>>, %arg2: memref<256x3xf32, #tpu.memory_space<vmem>>, %arg3: memref<3x96xf32, #tpu.memory_space<vmem>>, %arg4: memref<3x96xf32, #tpu.memory_space<vmem>>, %arg5: memref<1x32xf32, #tpu.memory_space<vmem>>, %arg6: memref<1x32xf32, #tpu.memory_space<vmem>>, %arg7: memref<256x64xbf16, #tpu.memory_space<vmem>>, %arg8: memref<256x32xf32, #tpu.memory_space<vmem>>) attributes {dimension_semantics = [#tpu.dimension_semantics<parallel>], iteration_bounds = array<i64: 1>, scalar_prefetch = 0 : i64, scratch_operands = 0 : i64, tpu.core_type = #tpu.core_type<tc>, window_params = [{transform_indices = @transform_0, window_bounds = array<i64: 256, 3>}, {transform_indices = @transform_1, window_bounds = array<i64: 256, 3>}, {pipeline_mode = #tpu.pipeline_mode<synchronous>, transform_indices = @transform_2, window_bounds = array<i64: 3, 96>}, {pipeline_mode = #tpu.pipeline_mode<synchronous>, transform_indices = @transform_3, window_bounds = array<i64: 3, 96>}, {pipeline_mode = #tpu.pipeline_mode<synchronous>, transform_indices = @transform_4, window_bounds = array<i64: 1, 32>}, {pipeline_mode = #tpu.pipeline_mode<synchronous>, transform_indices = @transform_5, window_bounds = array<i64: 1, 32>}, {transform_indices = @transform_6, window_bounds = array<i64: 256, 64>}, {transform_indices = @transform_7, window_bounds = array<i64: 256, 32>}]} {
    %c0 = arith.constant 0 : index
    %c0_0 = arith.constant 0 : index
    %0 = vector.load %arg1[%c0, %c0_0] : memref<256x3xf32, #tpu.memory_space<vmem>>, vector<256x3xf32>
    %c0_1 = arith.constant 0 : index
    %c0_2 = arith.constant 0 : index
    %1 = vector.load %arg3[%c0_1, %c0_2] : memref<3x96xf32, #tpu.memory_space<vmem>>, vector<3x96xf32>
    %cst = arith.constant dense<0.000000e+00> : vector<256x96xf32>
    %2 = tpu.matmul %0, %1, %cst {dimension_numbers = #tpu.dot_dimension_numbers<[1], [0], [0], [1], [0, 0, 1, 1], [], []>} : vector<256x3xf32>, vector<3x96xf32>, vector<256x96xf32> -> vector<256x96xf32>
    %c0_3 = arith.constant 0 : index
    %c0_4 = arith.constant 0 : index
    %3 = vector.load %arg2[%c0_3, %c0_4] : memref<256x3xf32, #tpu.memory_space<vmem>>, vector<256x3xf32>
    %c0_5 = arith.constant 0 : index
    %c0_6 = arith.constant 0 : index
    %4 = vector.load %arg4[%c0_5, %c0_6] : memref<3x96xf32, #tpu.memory_space<vmem>>, vector<3x96xf32>
    %cst_7 = arith.constant dense<0.000000e+00> : vector<256x96xf32>
    %5 = tpu.matmul %3, %4, %cst_7 {dimension_numbers = #tpu.dot_dimension_numbers<[1], [0], [0], [1], [0, 0, 1, 1], [], []>} : vector<256x3xf32>, vector<3x96xf32>, vector<256x96xf32> -> vector<256x96xf32>
    %6 = arith.addf %2, %5 : vector<256x96xf32>
    %7 = vector.extract_strided_slice %6 {offsets = [0, 0], sizes = [256, 32], strides = [1, 1]} : vector<256x96xf32> to vector<256x32xf32>
    %8 = vector.extract_strided_slice %6 {offsets = [0, 32], sizes = [256, 32], strides = [1, 1]} : vector<256x96xf32> to vector<256x32xf32>
    %9 = vector.extract_strided_slice %6 {offsets = [0, 64], sizes = [256, 32], strides = [1, 1]} : vector<256x96xf32> to vector<256x32xf32>
    %c0_8 = arith.constant 0 : index
    %c0_9 = arith.constant 0 : index
    %10 = vector.load %arg6[%c0_8, %c0_9] : memref<1x32xf32, #tpu.memory_space<vmem>>, vector<1x32xf32>
    %11 = vector.broadcast %10 : vector<1x32xf32> to vector<256x32xf32>
    %12 = arith.subf %11, %7 : vector<256x32xf32>
    %13 = math.exp %12 : vector<256x32xf32>
    %c0_10 = arith.constant 0 : index
    %c0_11 = arith.constant 0 : index
    %14 = vector.load %arg5[%c0_10, %c0_11] : memref<1x32xf32, #tpu.memory_space<vmem>>, vector<1x32xf32>
    %15 = vector.broadcast %14 : vector<1x32xf32> to vector<256x32xf32>
    %16 = arith.addf %8, %15 : vector<256x32xf32>
    %17 = arith.mulf %13, %16 : vector<256x32xf32>
    %18 = arith.truncf %17 : vector<256x32xf32> to vector<256x32xbf16>
    %c0_12 = arith.constant 0 : index
    %c0_13 = arith.constant 0 : index
    %19 = vector.load %arg7[%c0_12, %c0_13] : memref<256x64xbf16, #tpu.memory_space<vmem>>, vector<256x32xbf16>
    tpu.vector_store %arg7[%c0_12, %c0_13], %18 {strides = array<i32>} : memref<256x64xbf16, #tpu.memory_space<vmem>>, vector<256x32xbf16>,
    %20 = arith.truncf %13 : vector<256x32xf32> to vector<256x32xbf16>
    %c0_14 = arith.constant 0 : index
    %c32 = arith.constant 32 : index
    %21 = vector.load %arg7[%c0_14, %c32] : memref<256x64xbf16, #tpu.memory_space<vmem>>, vector<256x32xbf16>
    tpu.vector_store %arg7[%c0_14, %c32], %20 {strides = array<i32>} : memref<256x64xbf16, #tpu.memory_space<vmem>>, vector<256x32xbf16>,
    %c0_15 = arith.constant 0 : index
    %c0_16 = arith.constant 0 : index
    %22 = vector.load %arg8[%c0_15, %c0_16] : memref<256x32xf32, #tpu.memory_space<vmem>>, vector<256x32xf32>
    tpu.vector_store %arg8[%c0_15, %c0_16], %9 {strides = array<i32>} : memref<256x32xf32, #tpu.memory_space<vmem>>, vector<256x32xf32>,
    return
  }
  func.func @transform_0(%arg0: i32) -> (i32, i32) {
    %c0_i32 = arith.constant 0 : i32
    %c0_i32_0 = arith.constant 0 : i32
    return %arg0, %c0_i32 : i32, i32
  }
  func.func @transform_1(%arg0: i32) -> (i32, i32) {
    %c0_i32 = arith.constant 0 : i32
    %c0_i32_0 = arith.constant 0 : i32
    return %arg0, %c0_i32 : i32, i32
  }
  func.func @transform_2(%arg0: i32) -> (i32, i32) {
    %c0_i32 = arith.constant 0 : i32
    %c0_i32_0 = arith.constant 0 : i32
    %c0_i32_1 = arith.constant 0 : i32
    return %c0_i32, %c0_i32_0 : i32, i32
  }
  func.func @transform_3(%arg0: i32) -> (i32, i32) {
    %c0_i32 = arith.constant 0 : i32
    %c0_i32_0 = arith.constant 0 : i32
    %c0_i32_1 = arith.constant 0 : i32
    return %c0_i32, %c0_i32_0 : i32, i32
  }
  func.func @transform_4(%arg0: i32) -> (i32, i32) {
    %c0_i32 = arith.constant 0 : i32
    %c0_i32_0 = arith.constant 0 : i32
    %c0_i32_1 = arith.constant 0 : i32
    return %c0_i32, %c0_i32_0 : i32, i32
  }
  func.func @transform_5(%arg0: i32) -> (i32, i32) {
    %c0_i32 = arith.constant 0 : i32
    %c0_i32_0 = arith.constant 0 : i32
    %c0_i32_1 = arith.constant 0 : i32
    return %c0_i32, %c0_i32_0 : i32, i32
  }
  func.func @transform_6(%arg0: i32) -> (i32, i32) {
    %c0_i32 = arith.constant 0 : i32
    %c0_i32_0 = arith.constant 0 : i32
    return %arg0, %c0_i32 : i32, i32
  }
  func.func @transform_7(%arg0: i32) -> (i32, i32) {
    %c0_i32 = arith.constant 0 : i32
    %c0_i32_0 = arith.constant 0 : i32
    return %arg0, %c0_i32 : i32, i32
  }
}

module attributes {stable_mosaic.version = 11 : i64} {
  func.func @_project_kernel(%arg0: i32, %arg1: memref<256x32xbf16, #tpu.memory_space<vmem>>, %arg2: memref<256x3xf32, #tpu.memory_space<vmem>>, %arg3: memref<32x96xf32, #tpu.memory_space<vmem>>, %arg4: memref<3x96xf32, #tpu.memory_space<vmem>>, %arg5: memref<1x32xf32, #tpu.memory_space<vmem>>, %arg6: memref<1x32xf32, #tpu.memory_space<vmem>>, %arg7: memref<256x64xbf16, #tpu.memory_space<vmem>>, %arg8: memref<256x32xf32, #tpu.memory_space<vmem>>) attributes {dimension_semantics = [#tpu.dimension_semantics<parallel>], iteration_bounds = array<i64: 1>, scalar_prefetch = 0 : i64, scratch_operands = 0 : i64, tpu.core_type = #tpu.core_type<tc>, window_params = [{transform_indices = @transform_0, window_bounds = array<i64: 256, 32>}, {transform_indices = @transform_1, window_bounds = array<i64: 256, 3>}, {pipeline_mode = #tpu.pipeline_mode<synchronous>, transform_indices = @transform_2, window_bounds = array<i64: 32, 96>}, {pipeline_mode = #tpu.pipeline_mode<synchronous>, transform_indices = @transform_3, window_bounds = array<i64: 3, 96>}, {pipeline_mode = #tpu.pipeline_mode<synchronous>, transform_indices = @transform_4, window_bounds = array<i64: 1, 32>}, {pipeline_mode = #tpu.pipeline_mode<synchronous>, transform_indices = @transform_5, window_bounds = array<i64: 1, 32>}, {transform_indices = @transform_6, window_bounds = array<i64: 256, 64>}, {transform_indices = @transform_7, window_bounds = array<i64: 256, 32>}]} {
    %c0 = arith.constant 0 : index
    %c0_0 = arith.constant 0 : index
    %0 = vector.load %arg1[%c0, %c0_0] : memref<256x32xbf16, #tpu.memory_space<vmem>>, vector<256x32xbf16>
    %1 = arith.extf %0 : vector<256x32xbf16> to vector<256x32xf32>
    %c0_1 = arith.constant 0 : index
    %c0_2 = arith.constant 0 : index
    %2 = vector.load %arg3[%c0_1, %c0_2] : memref<32x96xf32, #tpu.memory_space<vmem>>, vector<32x96xf32>
    %cst = arith.constant dense<0.000000e+00> : vector<256x96xf32>
    %3 = tpu.matmul %1, %2, %cst {dimension_numbers = #tpu.dot_dimension_numbers<[1], [0], [0], [1], [0, 0, 1, 1], [], []>} : vector<256x32xf32>, vector<32x96xf32>, vector<256x96xf32> -> vector<256x96xf32>
    %c0_3 = arith.constant 0 : index
    %c0_4 = arith.constant 0 : index
    %4 = vector.load %arg2[%c0_3, %c0_4] : memref<256x3xf32, #tpu.memory_space<vmem>>, vector<256x3xf32>
    %c0_5 = arith.constant 0 : index
    %c0_6 = arith.constant 0 : index
    %5 = vector.load %arg4[%c0_5, %c0_6] : memref<3x96xf32, #tpu.memory_space<vmem>>, vector<3x96xf32>
    %cst_7 = arith.constant dense<0.000000e+00> : vector<256x96xf32>
    %6 = tpu.matmul %4, %5, %cst_7 {dimension_numbers = #tpu.dot_dimension_numbers<[1], [0], [0], [1], [0, 0, 1, 1], [], []>} : vector<256x3xf32>, vector<3x96xf32>, vector<256x96xf32> -> vector<256x96xf32>
    %7 = arith.addf %3, %6 : vector<256x96xf32>
    %8 = vector.extract_strided_slice %7 {offsets = [0, 0], sizes = [256, 32], strides = [1, 1]} : vector<256x96xf32> to vector<256x32xf32>
    %9 = vector.extract_strided_slice %7 {offsets = [0, 32], sizes = [256, 32], strides = [1, 1]} : vector<256x96xf32> to vector<256x32xf32>
    %10 = vector.extract_strided_slice %7 {offsets = [0, 64], sizes = [256, 32], strides = [1, 1]} : vector<256x96xf32> to vector<256x32xf32>
    %c0_8 = arith.constant 0 : index
    %c0_9 = arith.constant 0 : index
    %11 = vector.load %arg6[%c0_8, %c0_9] : memref<1x32xf32, #tpu.memory_space<vmem>>, vector<1x32xf32>
    %12 = vector.broadcast %11 : vector<1x32xf32> to vector<256x32xf32>
    %13 = arith.subf %12, %8 : vector<256x32xf32>
    %14 = math.exp %13 : vector<256x32xf32>
    %c0_10 = arith.constant 0 : index
    %c0_11 = arith.constant 0 : index
    %15 = vector.load %arg5[%c0_10, %c0_11] : memref<1x32xf32, #tpu.memory_space<vmem>>, vector<1x32xf32>
    %16 = vector.broadcast %15 : vector<1x32xf32> to vector<256x32xf32>
    %17 = arith.addf %9, %16 : vector<256x32xf32>
    %18 = arith.mulf %14, %17 : vector<256x32xf32>
    %19 = arith.truncf %18 : vector<256x32xf32> to vector<256x32xbf16>
    %c0_12 = arith.constant 0 : index
    %c0_13 = arith.constant 0 : index
    %20 = vector.load %arg7[%c0_12, %c0_13] : memref<256x64xbf16, #tpu.memory_space<vmem>>, vector<256x32xbf16>
    tpu.vector_store %arg7[%c0_12, %c0_13], %19 {strides = array<i32>} : memref<256x64xbf16, #tpu.memory_space<vmem>>, vector<256x32xbf16>,
    %21 = arith.truncf %14 : vector<256x32xf32> to vector<256x32xbf16>
    %c0_14 = arith.constant 0 : index
    %c32 = arith.constant 32 : index
    %22 = vector.load %arg7[%c0_14, %c32] : memref<256x64xbf16, #tpu.memory_space<vmem>>, vector<256x32xbf16>
    tpu.vector_store %arg7[%c0_14, %c32], %21 {strides = array<i32>} : memref<256x64xbf16, #tpu.memory_space<vmem>>, vector<256x32xbf16>,
    %c0_15 = arith.constant 0 : index
    %c0_16 = arith.constant 0 : index
    %23 = vector.load %arg8[%c0_15, %c0_16] : memref<256x32xf32, #tpu.memory_space<vmem>>, vector<256x32xf32>
    tpu.vector_store %arg8[%c0_15, %c0_16], %10 {strides = array<i32>} : memref<256x32xf32, #tpu.memory_space<vmem>>, vector<256x32xf32>,
    return
  }
  func.func @transform_0(%arg0: i32) -> (i32, i32) {
    %c0_i32 = arith.constant 0 : i32
    %c0_i32_0 = arith.constant 0 : i32
    return %arg0, %c0_i32 : i32, i32
  }
  func.func @transform_1(%arg0: i32) -> (i32, i32) {
    %c0_i32 = arith.constant 0 : i32
    %c0_i32_0 = arith.constant 0 : i32
    return %arg0, %c0_i32 : i32, i32
  }
  func.func @transform_2(%arg0: i32) -> (i32, i32) {
    %c0_i32 = arith.constant 0 : i32
    %c0_i32_0 = arith.constant 0 : i32
    %c0_i32_1 = arith.constant 0 : i32
    return %c0_i32, %c0_i32_0 : i32, i32
  }
  func.func @transform_3(%arg0: i32) -> (i32, i32) {
    %c0_i32 = arith.constant 0 : i32
    %c0_i32_0 = arith.constant 0 : i32
    %c0_i32_1 = arith.constant 0 : i32
    return %c0_i32, %c0_i32_0 : i32, i32
  }
  func.func @transform_4(%arg0: i32) -> (i32, i32) {
    %c0_i32 = arith.constant 0 : i32
    %c0_i32_0 = arith.constant 0 : i32
    %c0_i32_1 = arith.constant 0 : i32
    return %c0_i32, %c0_i32_0 : i32, i32
  }
  func.func @transform_5(%arg0: i32) -> (i32, i32) {
    %c0_i32 = arith.constant 0 : i32
    %c0_i32_0 = arith.constant 0 : i32
    %c0_i32_1 = arith.constant 0 : i32
    return %c0_i32, %c0_i32_0 : i32, i32
  }
  func.func @transform_6(%arg0: i32) -> (i32, i32) {
    %c0_i32 = arith.constant 0 : i32
    %c0_i32_0 = arith.constant 0 : i32
    return %arg0, %c0_i32 : i32, i32
  }
  func.func @transform_7(%arg0: i32) -> (i32, i32) {
    %c0_i32 = arith.constant 0 : i32
    %c0_i32_0 = arith.constant 0 : i32
    return %arg0, %c0_i32 : i32, i32
  }
}

module attributes {stable_mosaic.version = 11 : i64} {
  func.func @_aggregate_kernel(%arg0: i32, %arg1: i32, %arg2: memref<128x256xbf16, #tpu.memory_space<vmem>>, %arg3: memref<256x64xbf16, #tpu.memory_space<vmem>>, %arg4: memref<128x32xf32, #tpu.memory_space<vmem>>, %arg5: memref<128x32xbf16, #tpu.memory_space<vmem>>, %arg6: memref<128x64xf32, #tpu.memory_space<vmem>>) attributes {dimension_semantics = [#tpu.dimension_semantics<parallel>, #tpu.dimension_semantics<arbitrary>], iteration_bounds = array<i64: 2, 1>, scalar_prefetch = 0 : i64, scratch_operands = 1 : i64, tpu.core_type = #tpu.core_type<tc>, window_params = [{transform_indices = @transform_0, window_bounds = array<i64: 128, 256>}, {pipeline_mode = #tpu.pipeline_mode<synchronous>, transform_indices = @transform_1, window_bounds = array<i64: 256, 64>}, {transform_indices = @transform_2, window_bounds = array<i64: 128, 32>}, {transform_indices = @transform_3, window_bounds = array<i64: 128, 32>}]} {
    %c0_i32 = arith.constant 0 : i32
    %0 = arith.cmpi eq, %arg1, %c0_i32 : i32
    %1 = arith.extui %0 : i1 to i32
    %c0_i32_0 = arith.constant 0 : i32
    %2 = arith.cmpi ne, %1, %c0_i32_0 : i32
    scf.if %2 {
      %cst_9 = arith.constant 0.000000e+00 : f32
      %15 = vector.broadcast %cst_9 : f32 to vector<128x64xf32>
      %c0_10 = arith.constant 0 : index
      %c0_11 = arith.constant 0 : index
      %16 = vector.load %arg6[%c0_10, %c0_11] : memref<128x64xf32, #tpu.memory_space<vmem>>, vector<128x64xf32>
      tpu.vector_store %arg6[%c0_10, %c0_11], %15 {strides = array<i32>} : memref<128x64xf32, #tpu.memory_space<vmem>>, vector<128x64xf32>,
    } else {
    }
    %c256_i32 = arith.constant 256 : i32
    %3 = arith.muli %arg1, %c256_i32 : i32
    %4 = tpu.assume_multiple %3, 256 : i32
    %c0 = arith.constant 0 : index
    %c0_1 = arith.constant 0 : index
    %5 = vector.load %arg6[%c0, %c0_1] : memref<128x64xf32, #tpu.memory_space<vmem>>, vector<128x64xf32>
    %c0_2 = arith.constant 0 : index
    %c0_3 = arith.constant 0 : index
    %6 = vector.load %arg2[%c0_2, %c0_3] : memref<128x256xbf16, #tpu.memory_space<vmem>>, vector<128x256xbf16>
    %7 = arith.index_cast %4 : i32 to index
    %c0_4 = arith.constant 0 : index
    %8 = vector.load %arg3[%7, %c0_4] : memref<256x64xbf16, #tpu.memory_space<vmem>>, vector<256x64xbf16>
    %cst = arith.constant dense<0.000000e+00> : vector<128x64xf32>
    %9 = tpu.matmul %6, %8, %cst {dimension_numbers = #tpu.dot_dimension_numbers<[1], [0], [0], [1], [0, 0, 1, 1], [], []>} : vector<128x256xbf16>, vector<256x64xbf16>, vector<128x64xf32> -> vector<128x64xf32>
    %10 = arith.addf %5, %9 : vector<128x64xf32>
    %c0_5 = arith.constant 0 : index
    %c0_6 = arith.constant 0 : index
    %11 = vector.load %arg6[%c0_5, %c0_6] : memref<128x64xf32, #tpu.memory_space<vmem>>, vector<128x64xf32>
    tpu.vector_store %arg6[%c0_5, %c0_6], %10 {strides = array<i32>} : memref<128x64xf32, #tpu.memory_space<vmem>>, vector<128x64xf32>,
    %c0_i32_7 = arith.constant 0 : i32
    %12 = arith.cmpi eq, %arg1, %c0_i32_7 : i32
    %13 = arith.extui %12 : i1 to i32
    %c0_i32_8 = arith.constant 0 : i32
    %14 = arith.cmpi ne, %13, %c0_i32_8 : i32
    scf.if %14 {
      %c0_9 = arith.constant 0 : index
      %c0_10 = arith.constant 0 : index
      %15 = vector.load %arg6[%c0_9, %c0_10] : memref<128x64xf32, #tpu.memory_space<vmem>>, vector<128x64xf32>
      %16 = vector.extract_strided_slice %15 {offsets = [0, 0], sizes = [128, 32], strides = [1, 1]} : vector<128x64xf32> to vector<128x32xf32>
      %17 = vector.extract_strided_slice %15 {offsets = [0, 32], sizes = [128, 32], strides = [1, 1]} : vector<128x64xf32> to vector<128x32xf32>
      %cst_11 = arith.constant 9.99999968E-21 : f32
      %18 = vector.broadcast %cst_11 : f32 to vector<128x32xf32>
      %19 = arith.maximumf %17, %18 : vector<128x32xf32>
      %20 = tpu.reciprocal %19 {approx = true} : vector<128x32xf32> -> vector<128x32xf32>
      %c0_12 = arith.constant 0 : index
      %c0_13 = arith.constant 0 : index
      %21 = vector.load %arg4[%c0_12, %c0_13] : memref<128x32xf32, #tpu.memory_space<vmem>>, vector<128x32xf32>
      %22 = arith.mulf %16, %20 : vector<128x32xf32>
      %23 = arith.addf %21, %22 : vector<128x32xf32>
      %cst_14 = arith.constant 0.000000e+00 : f32
      %24 = vector.broadcast %cst_14 : f32 to vector<128x32xf32>
      %25 = arith.maximumf %23, %24 : vector<128x32xf32>
      %26 = arith.truncf %25 : vector<128x32xf32> to vector<128x32xbf16>
      %c0_15 = arith.constant 0 : index
      %c0_16 = arith.constant 0 : index
      %27 = vector.load %arg5[%c0_15, %c0_16] : memref<128x32xbf16, #tpu.memory_space<vmem>>, vector<128x32xbf16>
      tpu.vector_store %arg5[%c0_15, %c0_16], %26 {strides = array<i32>} : memref<128x32xbf16, #tpu.memory_space<vmem>>, vector<128x32xbf16>,
    } else {
    }
    return
  }
  func.func @transform_0(%arg0: i32, %arg1: i32) -> (i32, i32) {
    %c0_i32 = arith.constant 0 : i32
    return %arg0, %arg1 : i32, i32
  }
  func.func @transform_1(%arg0: i32, %arg1: i32) -> (i32, i32) {
    %c0_i32 = arith.constant 0 : i32
    %c0_i32_0 = arith.constant 0 : i32
    %c0_i32_1 = arith.constant 0 : i32
    return %c0_i32, %c0_i32_0 : i32, i32
  }
  func.func @transform_2(%arg0: i32, %arg1: i32) -> (i32, i32) {
    %c0_i32 = arith.constant 0 : i32
    %c0_i32_0 = arith.constant 0 : i32
    return %arg0, %c0_i32 : i32, i32
  }
  func.func @transform_3(%arg0: i32, %arg1: i32) -> (i32, i32) {
    %c0_i32 = arith.constant 0 : i32
    %c0_i32_0 = arith.constant 0 : i32
    return %arg0, %c0_i32 : i32, i32
  }
}

module attributes {stable_mosaic.version = 11 : i64} {
  func.func @_aggregate_head_kernel(%arg0: i32, %arg1: i32, %arg2: memref<128x256xbf16, #tpu.memory_space<vmem>>, %arg3: memref<256x64xbf16, #tpu.memory_space<vmem>>, %arg4: memref<128x32xf32, #tpu.memory_space<vmem>>, %arg5: memref<32x16xf32, #tpu.memory_space<vmem>>, %arg6: memref<1x16xf32, #tpu.memory_space<vmem>>, %arg7: memref<1x16xf32, #tpu.memory_space<vmem>>, %arg8: memref<1x1xf32, #tpu.memory_space<vmem>>, %arg9: memref<128x1xf32, #tpu.memory_space<vmem>>, %arg10: memref<128x64xf32, #tpu.memory_space<vmem>>) attributes {dimension_semantics = [#tpu.dimension_semantics<parallel>, #tpu.dimension_semantics<arbitrary>], iteration_bounds = array<i64: 2, 1>, scalar_prefetch = 0 : i64, scratch_operands = 1 : i64, tpu.core_type = #tpu.core_type<tc>, window_params = [{transform_indices = @transform_0, window_bounds = array<i64: 128, 256>}, {pipeline_mode = #tpu.pipeline_mode<synchronous>, transform_indices = @transform_1, window_bounds = array<i64: 256, 64>}, {transform_indices = @transform_2, window_bounds = array<i64: 128, 32>}, {pipeline_mode = #tpu.pipeline_mode<synchronous>, transform_indices = @transform_3, window_bounds = array<i64: 32, 16>}, {pipeline_mode = #tpu.pipeline_mode<synchronous>, transform_indices = @transform_4, window_bounds = array<i64: 1, 16>}, {pipeline_mode = #tpu.pipeline_mode<synchronous>, transform_indices = @transform_5, window_bounds = array<i64: 1, 16>}, {pipeline_mode = #tpu.pipeline_mode<synchronous>, transform_indices = @transform_6, window_bounds = array<i64: 1, 1>}, {transform_indices = @transform_7, window_bounds = array<i64: 128, 1>}]} {
    %c0_i32 = arith.constant 0 : i32
    %0 = arith.cmpi eq, %arg1, %c0_i32 : i32
    %1 = arith.extui %0 : i1 to i32
    %c0_i32_0 = arith.constant 0 : i32
    %2 = arith.cmpi ne, %1, %c0_i32_0 : i32
    scf.if %2 {
      %cst_9 = arith.constant 0.000000e+00 : f32
      %15 = vector.broadcast %cst_9 : f32 to vector<128x64xf32>
      %c0_10 = arith.constant 0 : index
      %c0_11 = arith.constant 0 : index
      %16 = vector.load %arg10[%c0_10, %c0_11] : memref<128x64xf32, #tpu.memory_space<vmem>>, vector<128x64xf32>
      tpu.vector_store %arg10[%c0_10, %c0_11], %15 {strides = array<i32>} : memref<128x64xf32, #tpu.memory_space<vmem>>, vector<128x64xf32>,
    } else {
    }
    %c256_i32 = arith.constant 256 : i32
    %3 = arith.muli %arg1, %c256_i32 : i32
    %4 = tpu.assume_multiple %3, 256 : i32
    %c0 = arith.constant 0 : index
    %c0_1 = arith.constant 0 : index
    %5 = vector.load %arg10[%c0, %c0_1] : memref<128x64xf32, #tpu.memory_space<vmem>>, vector<128x64xf32>
    %c0_2 = arith.constant 0 : index
    %c0_3 = arith.constant 0 : index
    %6 = vector.load %arg2[%c0_2, %c0_3] : memref<128x256xbf16, #tpu.memory_space<vmem>>, vector<128x256xbf16>
    %7 = arith.index_cast %4 : i32 to index
    %c0_4 = arith.constant 0 : index
    %8 = vector.load %arg3[%7, %c0_4] : memref<256x64xbf16, #tpu.memory_space<vmem>>, vector<256x64xbf16>
    %cst = arith.constant dense<0.000000e+00> : vector<128x64xf32>
    %9 = tpu.matmul %6, %8, %cst {dimension_numbers = #tpu.dot_dimension_numbers<[1], [0], [0], [1], [0, 0, 1, 1], [], []>} : vector<128x256xbf16>, vector<256x64xbf16>, vector<128x64xf32> -> vector<128x64xf32>
    %10 = arith.addf %5, %9 : vector<128x64xf32>
    %c0_5 = arith.constant 0 : index
    %c0_6 = arith.constant 0 : index
    %11 = vector.load %arg10[%c0_5, %c0_6] : memref<128x64xf32, #tpu.memory_space<vmem>>, vector<128x64xf32>
    tpu.vector_store %arg10[%c0_5, %c0_6], %10 {strides = array<i32>} : memref<128x64xf32, #tpu.memory_space<vmem>>, vector<128x64xf32>,
    %c0_i32_7 = arith.constant 0 : i32
    %12 = arith.cmpi eq, %arg1, %c0_i32_7 : i32
    %13 = arith.extui %12 : i1 to i32
    %c0_i32_8 = arith.constant 0 : i32
    %14 = arith.cmpi ne, %13, %c0_i32_8 : i32
    scf.if %14 {
      %c0_9 = arith.constant 0 : index
      %c0_10 = arith.constant 0 : index
      %15 = vector.load %arg10[%c0_9, %c0_10] : memref<128x64xf32, #tpu.memory_space<vmem>>, vector<128x64xf32>
      %16 = vector.extract_strided_slice %15 {offsets = [0, 0], sizes = [128, 32], strides = [1, 1]} : vector<128x64xf32> to vector<128x32xf32>
      %17 = vector.extract_strided_slice %15 {offsets = [0, 32], sizes = [128, 32], strides = [1, 1]} : vector<128x64xf32> to vector<128x32xf32>
      %cst_11 = arith.constant 9.99999968E-21 : f32
      %18 = vector.broadcast %cst_11 : f32 to vector<128x32xf32>
      %19 = arith.maximumf %17, %18 : vector<128x32xf32>
      %20 = tpu.reciprocal %19 {approx = true} : vector<128x32xf32> -> vector<128x32xf32>
      %c0_12 = arith.constant 0 : index
      %c0_13 = arith.constant 0 : index
      %21 = vector.load %arg4[%c0_12, %c0_13] : memref<128x32xf32, #tpu.memory_space<vmem>>, vector<128x32xf32>
      %22 = arith.mulf %16, %20 : vector<128x32xf32>
      %23 = arith.addf %21, %22 : vector<128x32xf32>
      %cst_14 = arith.constant 0.000000e+00 : f32
      %24 = vector.broadcast %cst_14 : f32 to vector<128x32xf32>
      %25 = arith.maximumf %23, %24 : vector<128x32xf32>
      %c0_15 = arith.constant 0 : index
      %c0_16 = arith.constant 0 : index
      %26 = vector.load %arg5[%c0_15, %c0_16] : memref<32x16xf32, #tpu.memory_space<vmem>>, vector<32x16xf32>
      %cst_17 = arith.constant dense<0.000000e+00> : vector<128x16xf32>
      %27 = tpu.matmul %25, %26, %cst_17 {dimension_numbers = #tpu.dot_dimension_numbers<[1], [0], [0], [1], [0, 0, 1, 1], [], []>} : vector<128x32xf32>, vector<32x16xf32>, vector<128x16xf32> -> vector<128x16xf32>
      %c0_18 = arith.constant 0 : index
      %c0_19 = arith.constant 0 : index
      %28 = vector.load %arg6[%c0_18, %c0_19] : memref<1x16xf32, #tpu.memory_space<vmem>>, vector<1x16xf32>
      %29 = vector.broadcast %28 : vector<1x16xf32> to vector<128x16xf32>
      %30 = arith.addf %27, %29 : vector<128x16xf32>
      %cst_20 = arith.constant 0.000000e+00 : f32
      %31 = vector.broadcast %cst_20 : f32 to vector<128x16xf32>
      %32 = arith.maximumf %30, %31 : vector<128x16xf32>
      %c0_21 = arith.constant 0 : index
      %c0_22 = arith.constant 0 : index
      %33 = vector.load %arg7[%c0_21, %c0_22] : memref<1x16xf32, #tpu.memory_space<vmem>>, vector<1x16xf32>
      %34 = vector.broadcast %33 : vector<1x16xf32> to vector<128x16xf32>
      %35 = arith.mulf %32, %34 : vector<128x16xf32>
      %cst_23 = arith.constant dense<0.000000e+00> : vector<128xf32>
      %36 = vector.multi_reduction <add>, %35, %cst_23 [1] : vector<128x16xf32> to vector<128xf32>
      %37 = vector.shape_cast %36 : vector<128xf32> to vector<128x1xf32>
      %c0_24 = arith.constant 0 : index
      %c0_25 = arith.constant 0 : index
      %38 = vector.load %arg8[%c0_24, %c0_25] : memref<1x1xf32, #tpu.memory_space<vmem>>, vector<1x1xf32>
      %39 = vector.broadcast %38 : vector<1x1xf32> to vector<128x1xf32>
      %40 = arith.addf %37, %39 : vector<128x1xf32>
      %c0_26 = arith.constant 0 : index
      %c0_27 = arith.constant 0 : index
      %41 = vector.load %arg9[%c0_26, %c0_27] : memref<128x1xf32, #tpu.memory_space<vmem>>, vector<128x1xf32>
      tpu.vector_store %arg9[%c0_26, %c0_27], %40 {strides = array<i32>} : memref<128x1xf32, #tpu.memory_space<vmem>>, vector<128x1xf32>,
    } else {
    }
    return
  }
  func.func @transform_0(%arg0: i32, %arg1: i32) -> (i32, i32) {
    %c0_i32 = arith.constant 0 : i32
    return %arg0, %arg1 : i32, i32
  }
  func.func @transform_1(%arg0: i32, %arg1: i32) -> (i32, i32) {
    %c0_i32 = arith.constant 0 : i32
    %c0_i32_0 = arith.constant 0 : i32
    %c0_i32_1 = arith.constant 0 : i32
    return %c0_i32, %c0_i32_0 : i32, i32
  }
  func.func @transform_2(%arg0: i32, %arg1: i32) -> (i32, i32) {
    %c0_i32 = arith.constant 0 : i32
    %c0_i32_0 = arith.constant 0 : i32
    return %arg0, %c0_i32 : i32, i32
  }
  func.func @transform_3(%arg0: i32, %arg1: i32) -> (i32, i32) {
    %c0_i32 = arith.constant 0 : i32
    %c0_i32_0 = arith.constant 0 : i32
    %c0_i32_1 = arith.constant 0 : i32
    return %c0_i32, %c0_i32_0 : i32, i32
  }
  func.func @transform_4(%arg0: i32, %arg1: i32) -> (i32, i32) {
    %c0_i32 = arith.constant 0 : i32
    %c0_i32_0 = arith.constant 0 : i32
    %c0_i32_1 = arith.constant 0 : i32
    return %c0_i32, %c0_i32_0 : i32, i32
  }
  func.func @transform_5(%arg0: i32, %arg1: i32) -> (i32, i32) {
    %c0_i32 = arith.constant 0 : i32
    %c0_i32_0 = arith.constant 0 : i32
    %c0_i32_1 = arith.constant 0 : i32
    return %c0_i32, %c0_i32_0 : i32, i32
  }
  func.func @transform_6(%arg0: i32, %arg1: i32) -> (i32, i32) {
    %c0_i32 = arith.constant 0 : i32
    %c0_i32_0 = arith.constant 0 : i32
    %c0_i32_1 = arith.constant 0 : i32
    return %c0_i32, %c0_i32_0 : i32, i32
  }
  func.func @transform_7(%arg0: i32, %arg1: i32) -> (i32, i32) {
    %c0_i32 = arith.constant 0 : i32
    %c0_i32_0 = arith.constant 0 : i32
    return %arg0, %c0_i32 : i32, i32
  }
}

</mosaic_0001>

<llo_original>
// kernel: point_transformer_net.7
$region0: #{point_transformer_net.7}
  #allocation0 [shape = 'u32[]', space=smem, size = 0x4, offset = 0x4, fixed_abs, tag = 'smem constant byte address 0x4 - core index']
  #allocation1 [shape = 'u32[144,128]{1,0:T(1,128)}', space=vmem, size = 0x12000, scoped, tag = 'internal scratch']
  #allocation2 [shape = 'f32[128,64]{1,0:T(8,128)}', space=vmem, size = 0x10000, scoped, tag = 'scratch operand']
  %s0 = inlined_call_operand.vmem [shape: bf16[256,256], index: 0, kind: input, shape index: {}]
  %s1 = inlined_call_operand.vmem [shape: bf16[256,64], index: 1, kind: input, shape index: {}]
  %s2 = inlined_call_operand.vmem [shape: f32[256,32], index: 2, kind: input, shape index: {}]
  %s3 = inlined_call_operand.vmem [shape: bf16[256,32], index: 3, kind: output, shape index: {}]
  %s4 = sld [smem:[#allocation0]]
  $region53: #{point_transformer_net.7} parent=0
    _
  %s6 = ssub.s32 1, %s4
  %s7 = scalar_select 0, %s6, %s4
  loop: start=0, step=1, limit=4
  $region2: #{point_transformer_net.7} parent=0 // loop_pre_header
    _
  $region3: #{point_transformer_net.7} parent=0 // loop_header
    %s9 = sphi 0, %s13
    %p10 = scmp.ge.s32.totalorder %s9, 4
    %s16 = sphi 0, %s28
    %s17 = sphi 0, %s24
    %s18 = sphi 0, %s16
    %s19 = sphi 0, %s17
    %s20 = sphi 0, %s18
    %s21 = sphi 0, %s19
    %s33 = sphi 0, %s35
    %s36 = sphi 0, %s33
    %s37 = sphi 0, %s36
    %s53 = sphi 0, %s37
    %s57 = sphi 0, %s57
    %s59 = sphi 0, %s57
    %s60 = sphi 0, %s59
    %s74 = sphi 0, %s60
    %s80 = sphi 0, %s82
    %s83 = sphi 0, %s80
    %s84 = sphi 0, %s83
    %s100 = sphi 0, %s84
    %s106 = sphi 0, %s108
    %s109 = sphi 0, %s106
    %s110 = sphi 0, %s109
    %s126 = sphi 0, %s110
  $region4: #{point_transformer_net.7} parent=0 // loop_header_branch
    %12 = sbr.rel (%p10) target = $region8
  $region5: #{point_transformer_net.7} parent=0 // loop_body
    %s14 = ssub.s32 %s9, 1
    %s15 = ssub.s32 %s9, 2
    %s22 = sadd.s32 1, %s17
    %p23 = scmp.ge.s32.totalorder %s22, 1
    %s24 = scalar_select %p23, 0, %s22
    %s25 = sadd.s32 1, %s16
    %s26 = scalar_select %p23, %s25, %s16
    %p27 = scmp.ge.s32.totalorder %s26, 2
    %s28 = scalar_select %p27, 0, %s26
    %s29 = ssub.s32 %s16, %s28
    %s30 = ssub.s32 %s17, %s24
    %s31 = sor.u32 %s29, %s30
    %p32 = scmp.eq.s32.totalorder %s31, 0
    %s34 = sadd.s32 %s33, 1
    %s35 = scalar_select %p32, %s33, %s34
    %p38 = pneg %p32
    %p39 = scmp.eq.s32.totalorder %s9, 1
    %p40 = por %p38, %p39
    %p41 = scmp.ne.s32.totalorder %s33, %s36
    %p42 = scmp.eq.s32.totalorder %s9, 0
    %p43 = por %p41, %p42
    %p44 = scmp.ne.s32.totalorder %s33, %s36
    %p45 = scmp.eq.s32.totalorder %s14, 1
    %p46 = por %p44, %p45
    %p47 = scmp.ne.s32.totalorder %s36, %s37
    %p48 = scmp.eq.s32.totalorder %s14, 0
    %p49 = por %p47, %p48
    %p50 = scmp.ne.s32.totalorder %s36, %s37
    %p51 = scmp.eq.s32.totalorder %s15, 1
    %p52 = por %p50, %p51
    %p54 = scmp.ne.s32.totalorder %s37, %s53
    %p55 = scmp.eq.s32.totalorder %s15, 0
    %p56 = por %p54, %p55
    %s58 = sadd.s32 %s57, 1
    %p61 = scmp.eq.s32.totalorder %s9, 1
    %p62 = scmp.ne.s32.totalorder %s57, %s59
    %p63 = scmp.eq.s32.totalorder %s9, 0
    %p64 = por %p62, %p63
    %p65 = scmp.ne.s32.totalorder %s57, %s59
    %p66 = scmp.eq.s32.totalorder %s14, 1
    %p67 = por %p65, %p66
    %p68 = scmp.ne.s32.totalorder %s59, %s60
    %p69 = scmp.eq.s32.totalorder %s14, 0
    %p70 = por %p68, %p69
    %p71 = scmp.ne.s32.totalorder %s59, %s60
    %p72 = scmp.eq.s32.totalorder %s15, 1
    %p73 = por %p71, %p72
    %p75 = scmp.ne.s32.totalorder %s60, %s74
    %p76 = scmp.eq.s32.totalorder %s15, 0
    %p77 = por %p75, %p76
    %s78 = ssub.s32 %s16, %s28
    %p79 = scmp.eq.s32.totalorder %s78, 0
    %s81 = sadd.s32 %s80, 1
    %s82 = scalar_select %p79, %s80, %s81
    %p85 = pneg %p79
    %p86 = scmp.eq.s32.totalorder %s9, 1
    %p87 = por %p85, %p86
    %p88 = scmp.ne.s32.totalorder %s80, %s83
    %p89 = scmp.eq.s32.totalorder %s9, 0
    %p90 = por %p88, %p89
    %p91 = scmp.ne.s32.totalorder %s80, %s83
    %p92 = scmp.eq.s32.totalorder %s14, 1
    %p93 = por %p91, %p92
    %p94 = scmp.ne.s32.totalorder %s83, %s84
    %p95 = scmp.eq.s32.totalorder %s14, 0
    %p96 = por %p94, %p95
    %p97 = scmp.ne.s32.totalorder %s83, %s84
    %p98 = scmp.eq.s32.totalorder %s15, 1
    %p99 = por %p97, %p98
    %p101 = scmp.ne.s32.totalorder %s84, %s100
    %p102 = scmp.eq.s32.totalorder %s15, 0
    %p103 = por %p101, %p102
    %s104 = ssub.s32 %s16, %s28
    %p105 = scmp.eq.s32.totalorder %s104, 0
    %s107 = sadd.s32 %s106, 1
    %s108 = scalar_select %p105, %s106, %s107
    %p111 = pneg %p105
    %p112 = scmp.eq.s32.totalorder %s9, 1
    %p113 = por %p111, %p112
    %p114 = scmp.ne.s32.totalorder %s106, %s109
    %p115 = scmp.eq.s32.totalorder %s9, 0
    %p116 = por %p114, %p115
    %p117 = scmp.ne.s32.totalorder %s106, %s109
    %p118 = scmp.eq.s32.totalorder %s14, 1
    %p119 = por %p117, %p118
    %p120 = scmp.ne.s32.totalorder %s109, %s110
    %p121 = scmp.eq.s32.totalorder %s14, 0
    %p122 = por %p120, %p121
    %p123 = scmp.ne.s32.totalorder %s109, %s110
    %p124 = scmp.eq.s32.totalorder %s15, 1
    %p125 = por %p123, %p124
    %p127 = scmp.ne.s32.totalorder %s110, %s126
    %p128 = scmp.eq.s32.totalorder %s15, 0
    %p129 = por %p127, %p128
    %p130 = scmp.le.s32.totalorder 1, %s9
    %p131 = scmp.lt.s32.totalorder %s9, 3
    %p132 = pnand %p130, %p131
    %p133 = pneg %p132
    // Predicated region
    $region9: #{point_transformer_net.7} parent=5 // pred_check
      _
    $region10: #{point_transformer_net.7} parent=5 // pred_check_branch
      %135 = sbr.rel (%p132) target = $region12
    $region11: #{point_transformer_net.7} parent=5 // pred_region
      %s136 = ssub.s32 %s9, 1
      // Predicated region
      $region13: #{point_transformer_net.7} parent=11 // pred_check
        %p137 = pneg %p70
      $region14: #{point_transformer_net.7} parent=11 // pred_check_branch
        %139 = sbr.rel (%p137) target = $region16
      $region15: #{point_transformer_net.7} parent=11 // pred_region
        _
      $region16: #{point_transformer_net.7} parent=11 // pred_fallthru
        _
    $region12: #{point_transformer_net.7} parent=5 // pred_fallthru
      _
    %p140 = scmp.lt.s32.totalorder %s9, 2
    // Predicated region
    $region17: #{point_transformer_net.7} parent=5 // pred_check
      %p141 = pneg %p140
    $region18: #{point_transformer_net.7} parent=5 // pred_check_branch
      %143 = sbr.rel (%p141) target = $region20
    $region19: #{point_transformer_net.7} parent=5 // pred_region
      // Predicated region
      $region21: #{point_transformer_net.7} parent=19 // pred_check
        %p144 = pneg %p43
      $region22: #{point_transformer_net.7} parent=19 // pred_check_branch
        %146 = sbr.rel (%p144) target = $region24
      $region23: #{point_transformer_net.7} parent=19 // pred_region
        %s147 = smul.u32 16, %s16
        %s148 = smul.u32 2, %s17
        %p149 = scmp.lt.s32.totalorder %s147, 31
        %s150 = scalar_select %p149, %s147, 31
        %p151 = scmp.lt.s32.totalorder %s148, 1
        %s152 = scalar_select %p151, %s148, 1
        %s153 = smul.addr %s150, 2
        %s154 = sadd.s32 %s152, %s153
        %s155 = smul.addr %s154, 4
        %s156 = scalar_lea.vmem %s0, %s155
        %s157 = smul.u32 16, %s16
        %s158 = smul.u32 2, %s17
      $region24: #{point_transformer_net.7} parent=19 // pred_fallthru
        _
      // Predicated region
      $region25: #{point_transformer_net.7} parent=19 // pred_check
        %p159 = pneg %p90
      $region26: #{point_transformer_net.7} parent=19 // pred_check_branch
        %161 = sbr.rel (%p159) target = $region28
      $region27: #{point_transformer_net.7} parent=19 // pred_region
        %s162 = smul.u32 16, %s16
        %p163 = scmp.lt.s32.totalorder %s162, 31
        %s164 = scalar_select %p163, %s162, 31
        %s165 = smul.addr %s164, 8
        %s166 = scalar_lea.vmem %s2, %s165
        %s167 = smul.u32 16, %s16
      $region28: #{point_transformer_net.7} parent=19 // pred_fallthru
        _
    $region20: #{point_transformer_net.7} parent=5 // pred_fallthru
      _
    %p168 = scmp.le.s32.totalorder 1, %s9
    %p169 = scmp.lt.s32.totalorder %s9, 3
    %p170 = pnand %p168, %p169
    %p171 = pneg %p170
    // Predicated region
    $region29: #{point_transformer_net.7} parent=5 // pred_check
      _
    $region30: #{point_transformer_net.7} parent=5 // pred_check_branch
      %173 = sbr.rel (%p170) target = $region32
    $region31: #{point_transformer_net.7} parent=5 // pred_region
      %s174 = ssub.s32 %s9, 1
      %s175 = smul.u32 16, %s18
      %s176 = smul.u32 2, %s19
      %p177 = scmp.lt.s32.totalorder %s175, 31
      %s178 = scalar_select %p177, %s175, 31
      %p179 = scmp.lt.s32.totalorder %s176, 1
      %s180 = scalar_select %p179, %s176, 1
      %s181 = smul.addr %s178, 2
      %s182 = sadd.s32 %s180, %s181
      %s183 = smul.addr %s182, 4
      %s184 = scalar_lea.vmem %s0, %s183
      %p185 = pneg %p49
      %p186 = pneg %p46
      %p187 = pneg %p70
      %p188 = pneg %p67
      %s189 = smul.u32 16, %s18
      %p190 = scmp.lt.s32.totalorder %s189, 31
      %s191 = scalar_select %p190, %s189, 31
      %s192 = smul.addr %s191, 8
      %s193 = scalar_lea.vmem %s2, %s192
      %p194 = pneg %p96
      %p195 = pneg %p93
      %p196 = pneg %p122
      %p197 = pneg %p119
      %s198 = smul.u32 16, %s18
      %p199 = scmp.lt.s32.totalorder %s198, 31
      %s200 = scalar_select %p199, %s198, 31
      %s201 = smul.addr %s200, 4
      %s202 = scalar_lea.vmem %s3, %s201
      %s203 = smul.u32 16, %s18
      %s204 = smul.u32 2, %s19
      %p205 = scmp.lt.s32.totalorder %s203, 31
      %s206 = scalar_select %p205, %s203, 31
      %p207 = scmp.lt.s32.totalorder %s204, 1
      %s208 = scalar_select %p207, %s204, 1
      %s209 = smul.addr %s206, 2
      %s210 = sadd.s32 %s208, %s209
      %s211 = smul.addr %s210, 4
      %s212 = scalar_lea.vmem %s0, %s211
      %s213 = smul.u32 16, %s18
      %s214 = smul.u32 2, %s19
      %s215 = smul.u32 16, %s18
      %p216 = scmp.lt.s32.totalorder %s215, 31
      %s217 = scalar_select %p216, %s215, 31
      %s218 = smul.addr %s217, 8
      %s219 = scalar_lea.vmem %s2, %s218
      %s220 = smul.u32 16, %s18
      %s221 = smul.u32 16, %s18
      %p222 = scmp.lt.s32.totalorder %s221, 31
      %s223 = scalar_select %p222, %s221, 31
      %s224 = smul.addr %s223, 4
      %s225 = scalar_lea.vmem %s3, %s224
      %s226 = smul.u32 16, %s18
      %p228 = scmp.eq.s32.totalorder %s19, 0
      // Predicated region
      $region33: #{point_transformer_net.7} parent=31 // pred_check
        %p229 = pneg %p228
      $region34: #{point_transformer_net.7} parent=31 // pred_check_branch
        %231 = sbr.rel (%p229) target = $region36
      $region35: #{point_transformer_net.7} parent=31 // pred_region
        %vm232 = vcmask 523264
        %233 = vst.msk [vmem:[#allocation2] sm:$0xff] %vm232, 0.0
        %234 = vst.msk [vmem:[#allocation2 + $0x8] sm:$0xff] %vm232, 0.0
        %235 = vst.msk [vmem:[#allocation2 + $0x10] sm:$0xff] %vm232, 0.0
        %236 = vst.msk [vmem:[#allocation2 + $0x18] sm:$0xff] %vm232, 0.0
        %237 = vst.msk [vmem:[#allocation2 + $0x20] sm:$0xff] %vm232, 0.0
        %238 = vst.msk [vmem:[#allocation2 + $0x28] sm:$0xff] %vm232, 0.0
        %239 = vst.msk [vmem:[#allocation2 + $0x30] sm:$0xff] %vm232, 0.0
        %240 = vst.msk [vmem:[#allocation2 + $0x38] sm:$0xff] %vm232, 0.0
        %241 = vst.msk [vmem:[#allocation2 + $0x40] sm:$0xff] %vm232, 0.0
        %242 = vst.msk [vmem:[#allocation2 + $0x48] sm:$0xff] %vm232, 0.0
        %243 = vst.msk [vmem:[#allocation2 + $0x50] sm:$0xff] %vm232, 0.0
        %244 = vst.msk [vmem:[#allocation2 + $0x58] sm:$0xff] %vm232, 0.0
        %245 = vst.msk [vmem:[#allocation2 + $0x60] sm:$0xff] %vm232, 0.0
        %246 = vst.msk [vmem:[#allocation2 + $0x68] sm:$0xff] %vm232, 0.0
        %247 = vst.msk [vmem:[#allocation2 + $0x70] sm:$0xff] %vm232, 0.0
        %248 = vst.msk [vmem:[#allocation2 + $0x78] sm:$0xff] %vm232, 0.0
      $region36: #{point_transformer_net.7} parent=31 // pred_fallthru
        _
      %s249 = smul.u32 %s19, 256
      %v250 = vld [vmem:[#allocation2] sm:$0xff]
      %v251 = vld [vmem:[#allocation2 + $0x8] sm:$0xff]
      %v252 = vld [vmem:[#allocation2 + $0x10] sm:$0xff]
      %v253 = vld [vmem:[#allocation2 + $0x18] sm:$0xff]
      %v254 = vld [vmem:[#allocation2 + $0x20] sm:$0xff]
      %v255 = vld [vmem:[#allocation2 + $0x28] sm:$0xff]
      %v256 = vld [vmem:[#allocation2 + $0x30] sm:$0xff]
      %v257 = vld [vmem:[#allocation2 + $0x38] sm:$0xff]
      %v258 = vld [vmem:[#allocation2 + $0x40] sm:$0xff]
      %v259 = vld [vmem:[#allocation2 + $0x48] sm:$0xff]
      %v260 = vld [vmem:[#allocation2 + $0x50] sm:$0xff]
      %v261 = vld [vmem:[#allocation2 + $0x58] sm:$0xff]
      %v262 = vld [vmem:[#allocation2 + $0x60] sm:$0xff]
      %v263 = vld [vmem:[#allocation2 + $0x68] sm:$0xff]
      %v264 = vld [vmem:[#allocation2 + $0x70] sm:$0xff]
      %v265 = vld [vmem:[#allocation2 + $0x78] sm:$0xff]
      %v266 = vld [vmem:[%s212] sm:$0xff]
      %v267 = vld [vmem:[%s212 + $0x8] sm:$0xff]
      %v268 = vld [vmem:[%s212 + $0x10] sm:$0xff]
      %v269 = vld [vmem:[%s212 + $0x18] sm:$0xff]
      %v270 = vld [vmem:[%s212 + $0x20] sm:$0xff]
      %v271 = vld [vmem:[%s212 + $0x28] sm:$0xff]
      %v272 = vld [vmem:[%s212 + $0x30] sm:$0xff]
      %v273 = vld [vmem:[%s212 + $0x38] sm:$0xff]
      %v274 = vld [vmem:[%s212 + $0x40] sm:$0xff]
      %v275 = vld [vmem:[%s212 + $0x48] sm:$0xff]
      %v276 = vld [vmem:[%s212 + $0x50] sm:$0xff]
      %v277 = vld [vmem:[%s212 + $0x58] sm:$0xff]
      %v278 = vld [vmem:[%s212 + $0x60] sm:$0xff]
      %v279 = vld [vmem:[%s212 + $0x68] sm:$0xff]
      %v280 = vld [vmem:[%s212 + $0x70] sm:$0xff]
      %v281 = vld [vmem:[%s212 + $0x78] sm:$0xff]
      %s282 = sshra.s32 %s249, 3
      %s283 = sand.u32 %s249, 7
      %s284 = smul.addr %s282, 4
      %s285 = scalar_lea.vmem %s1, %s284
      %v286 = vld [vmem:[%s285] sm:$0xf]
      %v287 = vld [vmem:[%s285 + $0x4] sm:$0xf]
      %v288 = vld [vmem:[%s285 + $0x8] sm:$0xf]
      %v289 = vld [vmem:[%s285 + $0xc] sm:$0xf]
      %v290 = vld [vmem:[%s285 + $0x10] sm:$0xf]
      %v291 = vld [vmem:[%s285 + $0x14] sm:$0xf]
      %v292 = vld [vmem:[%s285 + $0x18] sm:$0xf]
      %v293 = vld [vmem:[%s285 + $0x1c] sm:$0xf]
      %v294 = vld [vmem:[%s285 + $0x20] sm:$0xf]
      %v295 = vld [vmem:[%s285 + $0x24] sm:$0xf]
      %v296 = vld [vmem:[%s285 + $0x28] sm:$0xf]
      %v297 = vld [vmem:[%s285 + $0x2c] sm:$0xf]
      %v298 = vld [vmem:[%s285 + $0x30] sm:$0xf]
      %v299 = vld [vmem:[%s285 + $0x34] sm:$0xf]
      %v300 = vld [vmem:[%s285 + $0x38] sm:$0xf]
      %v301 = vld [vmem:[%s285 + $0x3c] sm:$0xf]
      %v302 = vld [vmem:[%s285 + $0x40] sm:$0xf]
      %v303 = vld [vmem:[%s285 + $0x44] sm:$0xf]
      %v304 = vld [vmem:[%s285 + $0x48] sm:$0xf]
      %v305 = vld [vmem:[%s285 + $0x4c] sm:$0xf]
      %v306 = vld [vmem:[%s285 + $0x50] sm:$0xf]
      %v307 = vld [vmem:[%s285 + $0x54] sm:$0xf]
      %v308 = vld [vmem:[%s285 + $0x58] sm:$0xf]
      %v309 = vld [vmem:[%s285 + $0x5c] sm:$0xf]
      %v310 = vld [vmem:[%s285 + $0x60] sm:$0xf]
      %v311 = vld [vmem:[%s285 + $0x64] sm:$0xf]
      %v312 = vld [vmem:[%s285 + $0x68] sm:$0xf]
      %v313 = vld [vmem:[%s285 + $0x6c] sm:$0xf]
      %v314 = vld [vmem:[%s285 + $0x70] sm:$0xf]
      %v315 = vld [vmem:[%s285 + $0x74] sm:$0xf]
      %v316 = vld [vmem:[%s285 + $0x78] sm:$0xf]
      %v317 = vld [vmem:[%s285 + $0x7c] sm:$0xf]
      %v334 = vunpack.c.l.b16 %v266
      %v335 = vunpack.c.h.b16 %v266
      %v336 = vunpack.c.l.b16 %v267
      %v337 = vunpack.c.h.b16 %v267
      %v338 = vunpack.c.l.b16 %v268
      %v339 = vunpack.c.h.b16 %v268
      %v340 = vunpack.c.l.b16 %v269
      %v341 = vunpack.c.h.b16 %v269
      %v342 = vunpack.c.l.b16 %v270
      %v343 = vunpack.c.h.b16 %v270
      %v344 = vunpack.c.l.b16 %v271
      %v345 = vunpack.c.h.b16 %v271
      %v346 = vunpack.c.l.b16 %v272
      %v347 = vunpack.c.h.b16 %v272
      %v348 = vunpack.c.l.b16 %v273
      %v349 = vunpack.c.h.b16 %v273
      %v350 = vunpack.c.l.b16 %v274
      %v351 = vunpack.c.h.b16 %v274
      %v352 = vunpack.c.l.b16 %v275
      %v353 = vunpack.c.h.b16 %v275
      %v354 = vunpack.c.l.b16 %v276
      %v355 = vunpack.c.h.b16 %v276
      %v356 = vunpack.c.l.b16 %v277
      %v357 = vunpack.c.h.b16 %v277
      %v358 = vunpack.c.l.b16 %v278
      %v359 = vunpack.c.h.b16 %v278
      %v360 = vunpack.c.l.b16 %v279
      %v361 = vunpack.c.h.b16 %v279
      %v362 = vunpack.c.l.b16 %v280
      %v363 = vunpack.c.h.b16 %v280
      %v364 = vunpack.c.l.b16 %v281
      %v365 = vunpack.c.h.b16 %v281
      %v366 = vpack.c.b16 %v336, %v334
      %v367 = vpack.c.b16 %v337, %v335
      %v368 = vpack.c.b16 %v340, %v338
      %v369 = vpack.c.b16 %v341, %v339
      %v370 = vpack.c.b16 %v344, %v342
      %v371 = vpack.c.b16 %v345, %v343
      %v372 = vpack.c.b16 %v348, %v346
      %v373 = vpack.c.b16 %v349, %v347
      %v374 = vpack.c.b16 %v352, %v350
      %v375 = vpack.c.b16 %v353, %v351
      %v376 = vpack.c.b16 %v356, %v354
      %v377 = vpack.c.b16 %v357, %v355
      %v378 = vpack.c.b16 %v360, %v358
      %v379 = vpack.c.b16 %v361, %v359
      %v380 = vpack.c.b16 %v364, %v362
      %v381 = vpack.c.b16 %v365, %v363
      %v430 = vunpack.c.l.b16 %v286
      %v431 = vunpack.c.l.b16 %v287
      %v432 = vunpack.c.l.b16 %v288
      %v433 = vunpack.c.l.b16 %v289
      %v434 = vunpack.c.l.b16 %v290
      %v435 = vunpack.c.l.b16 %v291
      %v436 = vunpack.c.l.b16 %v292
      %v437 = vunpack.c.l.b16 %v293
      %v438 = vunpack.c.l.b16 %v294
      %v439 = vunpack.c.l.b16 %v295
      %v440 = vunpack.c.l.b16 %v296
      %v441 = vunpack.c.l.b16 %v297
      %v442 = vunpack.c.l.b16 %v298
      %v443 = vunpack.c.l.b16 %v299
      %v444 = vunpack.c.l.b16 %v300
      %v445 = vunpack.c.l.b16 %v301
      %v446 = vunpack.c.l.b16 %v302
      %v447 = vunpack.c.l.b16 %v303
      %v448 = vunpack.c.l.b16 %v304
      %v449 = vunpack.c.l.b16 %v305
      %v450 = vunpack.c.l.b16 %v306
      %v451 = vunpack.c.l.b16 %v307
      %v452 = vunpack.c.l.b16 %v308
      %v453 = vunpack.c.l.b16 %v309
      %v454 = vunpack.c.l.b16 %v310
      %v455 = vunpack.c.l.b16 %v311
      %v456 = vunpack.c.l.b16 %v312
      %v457 = vunpack.c.l.b16 %v313
      %v458 = vunpack.c.l.b16 %v314
      %v459 = vunpack.c.l.b16 %v315
      %v460 = vunpack.c.l.b16 %v316
      %v461 = vunpack.c.l.b16 %v317
      %v462 = vpack.c.b16 %v431, %v430
      %v463 = vpack.c.b16 %v433, %v432
      %v464 = vpack.c.b16 %v435, %v434
      %v465 = vpack.c.b16 %v437, %v436
      %v466 = vpack.c.b16 %v439, %v438
      %v467 = vpack.c.b16 %v441, %v440
      %v468 = vpack.c.b16 %v443, %v442
      %v469 = vpack.c.b16 %v445, %v444
      %v470 = vpack.c.b16 %v447, %v446
      %v471 = vpack.c.b16 %v449, %v448
      %v472 = vpack.c.b16 %v451, %v450
      %v473 = vpack.c.b16 %v453, %v452
      %v474 = vpack.c.b16 %v455, %v454
      %v475 = vpack.c.b16 %v457, %v456
      %v476 = vpack.c.b16 %v459, %v458
      %v477 = vpack.c.b16 %v461, %v460
      %494 = vmatprep.subr.bf16.mxu0 0
      %495 = vmatpush1.bf16.msra.mxu0 %v462
      %496 = vmatprep.subr.bf16.mxu0 0
      %497 = vmatpush1.bf16.msra.mxu0 %v463
      %498 = vmatprep.subr.bf16.mxu0 0
      %499 = vmatpush1.bf16.msra.mxu0 %v464
      %500 = vmatprep.subr.bf16.mxu0 0
      %501 = vmatpush1.bf16.msra.mxu0 %v465
      %502 = vmatprep.subr.bf16.mxu0 0
      %503 = vmatpush1.bf16.msra.mxu0 %v466
      %504 = vmatprep.subr.bf16.mxu0 0
      %505 = vmatpush1.bf16.msra.mxu0 %v467
      %506 = vmatprep.subr.bf16.mxu0 0
      %507 = vmatpush1.bf16.msra.mxu0 %v468
      %508 = vmatprep.subr.bf16.mxu0 0
      %509 = vmatpush1.bf16.msra.mxu0 %v469
      %510 = vmatprep.subr.bf16.mxu0 0
      %511 = vmatpush1.bf16.msra.mxu0 %v470
      %512 = vmatprep.subr.bf16.mxu0 0
      %513 = vmatpush1.bf16.msra.mxu0 %v471
      %514 = vmatprep.subr.bf16.mxu0 0
      %515 = vmatpush1.bf16.msra.mxu0 %v472
      %516 = vmatprep.subr.bf16.mxu0 0
      %517 = vmatpush1.bf16.msra.mxu0 %v473
      %518 = vmatprep.subr.bf16.mxu0 0
      %519 = vmatpush1.bf16.msra.mxu0 %v474
      %520 = vmatprep.subr.bf16.mxu0 0
      %521 = vmatpush1.bf16.msra.mxu0 %v475
      %522 = vmatprep.subr.bf16.mxu0 0
      %523 = vmatpush1.bf16.msra.mxu0 %v476
      %524 = vmatprep.subr.bf16.mxu0 0
      %525 = vmatpush1.bf16.msra.mxu0 %v477
      %526 = vmatprep.mubr.bf16.mxu0 %v367
      %527 = vmatmul.mubr.bf16.gmra.mrb[0].mxu0 %v366
      %v528 = vpop.f32.mrb[0].mxu0
      %v529 = vadd.f32 0.0, %v528
      %v530 = vpop.f32.mrb[0].mxu0
      %v531 = vpop.f32.mrb[0].mxu0
      %v532 = vadd.f32 0.0, %v531
      %v533 = vpop.f32.mrb[0].mxu0
      %534 = vmatprep.mubr.bf16.mxu0 %v369
      %535 = vmatmul.mubr.bf16.gmra.mrb[0].mxu0 %v368
      %v536 = vpop.f32.mrb[0].mxu0
      %v537 = vadd.f32 0.0, %v536
      %v538 = vpop.f32.mrb[0].mxu0
      %v539 = vpop.f32.mrb[0].mxu0
      %v540 = vadd.f32 0.0, %v539
      %v541 = vpop.f32.mrb[0].mxu0
      %542 = vmatprep.mubr.bf16.mxu0 %v371
      %543 = vmatmul.mubr.bf16.gmra.mrb[0].mxu0 %v370
      %v544 = vpop.f32.mrb[0].mxu0
      %v545 = vadd.f32 0.0, %v544
      %v546 = vpop.f32.mrb[0].mxu0
      %v547 = vpop.f32.mrb[0].mxu0
      %v548 = vadd.f32 0.0, %v547
      %v549 = vpop.f32.mrb[0].mxu0
      %550 = vmatprep.mubr.bf16.mxu0 %v373
      %551 = vmatmul.mubr.bf16.gmra.mrb[0].mxu0 %v372
      %v552 = vpop.f32.mrb[0].mxu0
      %v553 = vadd.f32 0.0, %v552
      %v554 = vpop.f32.mrb[0].mxu0
      %v555 = vpop.f32.mrb[0].mxu0
      %v556 = vadd.f32 0.0, %v555
      %v557 = vpop.f32.mrb[0].mxu0
      %558 = vmatprep.mubr.bf16.mxu0 %v375
      %559 = vmatmul.mubr.bf16.gmra.mrb[0].mxu0 %v374
      %v560 = vpop.f32.mrb[0].mxu0
      %v561 = vadd.f32 0.0, %v560
      %v562 = vpop.f32.mrb[0].mxu0
      %v563 = vpop.f32.mrb[0].mxu0
      %v564 = vadd.f32 0.0, %v563
      %v565 = vpop.f32.mrb[0].mxu0
      %566 = vmatprep.mubr.bf16.mxu0 %v377
      %567 = vmatmul.mubr.bf16.gmra.mrb[0].mxu0 %v376
      %v568 = vpop.f32.mrb[0].mxu0
      %v569 = vadd.f32 0.0, %v568
      %v570 = vpop.f32.mrb[0].mxu0
      %v571 = vpop.f32.mrb[0].mxu0
      %v572 = vadd.f32 0.0, %v571
      %v573 = vpop.f32.mrb[0].mxu0
      %574 = vmatprep.mubr.bf16.mxu0 %v379
      %575 = vmatmul.mubr.bf16.gmra.mrb[0].mxu0 %v378
      %v576 = vpop.f32.mrb[0].mxu0
      %v577 = vadd.f32 0.0, %v576
      %v578 = vpop.f32.mrb[0].mxu0
      %v579 = vpop.f32.mrb[0].mxu0
      %v580 = vadd.f32 0.0, %v579
      %v581 = vpop.f32.mrb[0].mxu0
      %582 = vmatprep.mubr.bf16.mxu0 %v381
      %583 = vmatmul.mubr.bf16.gmra.mrb[0].mxu0 %v380
      %v584 = vpop.f32.mrb[0].mxu0
      %v585 = vadd.f32 0.0, %v584
      %v586 = vpop.f32.mrb[0].mxu0
      %v587 = vpop.f32.mrb[0].mxu0
      %v588 = vadd.f32 0.0, %v587
      %v589 = vpop.f32.mrb[0].mxu0
      %590 = vdwg.mxu0
      %v591 = vadd.f32 %v250, %v529
      %v592 = vadd.f32 %v251, %v532
      %v593 = vadd.f32 %v252, %v537
      %v594 = vadd.f32 %v253, %v540
      %v595 = vadd.f32 %v254, %v545
      %v596 = vadd.f32 %v255, %v548
      %v597 = vadd.f32 %v256, %v553
      %v598 = vadd.f32 %v257, %v556
      %v599 = vadd.f32 %v258, %v561
      %v600 = vadd.f32 %v259, %v564
      %v601 = vadd.f32 %v260, %v569
      %v602 = vadd.f32 %v261, %v572
      %v603 = vadd.f32 %v262, %v577
      %v604 = vadd.f32 %v263, %v580
      %v605 = vadd.f32 %v264, %v585
      %v606 = vadd.f32 %v265, %v588
      %vm607 = vcmask 523264
      %608 = vst.msk [vmem:[#allocation2] sm:$0xff] %vm607, %v591
      %609 = vst.msk [vmem:[#allocation2 + $0x8] sm:$0xff] %vm607, %v592
      %610 = vst.msk [vmem:[#allocation2 + $0x10] sm:$0xff] %vm607, %v593
      %611 = vst.msk [vmem:[#allocation2 + $0x18] sm:$0xff] %vm607, %v594
      %612 = vst.msk [vmem:[#allocation2 + $0x20] sm:$0xff] %vm607, %v595
      %613 = vst.msk [vmem:[#allocation2 + $0x28] sm:$0xff] %vm607, %v596
      %614 = vst.msk [vmem:[#allocation2 + $0x30] sm:$0xff] %vm607, %v597
      %615 = vst.msk [vmem:[#allocation2 + $0x38] sm:$0xff] %vm607, %v598
      %616 = vst.msk [vmem:[#allocation2 + $0x40] sm:$0xff] %vm607, %v599
      %617 = vst.msk [vmem:[#allocation2 + $0x48] sm:$0xff] %vm607, %v600
      %618 = vst.msk [vmem:[#allocation2 + $0x50] sm:$0xff] %vm607, %v601
      %619 = vst.msk [vmem:[#allocation2 + $0x58] sm:$0xff] %vm607, %v602
      %620 = vst.msk [vmem:[#allocation2 + $0x60] sm:$0xff] %vm607, %v603
      %621 = vst.msk [vmem:[#allocation2 + $0x68] sm:$0xff] %vm607, %v604
      %622 = vst.msk [vmem:[#allocation2 + $0x70] sm:$0xff] %vm607, %v605
      %623 = vst.msk [vmem:[#allocation2 + $0x78] sm:$0xff] %vm607, %v606
      // Predicated region
      $region37: #{point_transformer_net.7} parent=31 // pred_check
        %p624 = pneg %p228
      $region38: #{point_transformer_net.7} parent=31 // pred_check_branch
        %626 = sbr.rel (%p624) target = $region40
      $region39: #{point_transformer_net.7} parent=31 // pred_region
        %v627 = vld [vmem:[#allocation2] sm:$0xff]
        %v628 = vld [vmem:[#allocation2 + $0x8] sm:$0xff]
        %v629 = vld [vmem:[#allocation2 + $0x10] sm:$0xff]
        %v630 = vld [vmem:[#allocation2 + $0x18] sm:$0xff]
        %v631 = vld [vmem:[#allocation2 + $0x20] sm:$0xff]
        %v632 = vld [vmem:[#allocation2 + $0x28] sm:$0xff]
        %v633 = vld [vmem:[#allocation2 + $0x30] sm:$0xff]
        %v634 = vld [vmem:[#allocation2 + $0x38] sm:$0xff]
        %v635 = vld [vmem:[#allocation2 + $0x40] sm:$0xff]
        %v636 = vld [vmem:[#allocation2 + $0x48] sm:$0xff]
        %v637 = vld [vmem:[#allocation2 + $0x50] sm:$0xff]
        %v638 = vld [vmem:[#allocation2 + $0x58] sm:$0xff]
        %v639 = vld [vmem:[#allocation2 + $0x60] sm:$0xff]
        %v640 = vld [vmem:[#allocation2 + $0x68] sm:$0xff]
        %v641 = vld [vmem:[#allocation2 + $0x70] sm:$0xff]
        %v642 = vld [vmem:[#allocation2 + $0x78] sm:$0xff]
        %v643 = vmax.f32 %v627, 1e-20
        %v644 = vmax.f32 %v628, 1e-20
        %v645 = vmax.f32 %v629, 1e-20
        %v646 = vmax.f32 %v630, 1e-20
        %v647 = vmax.f32 %v631, 1e-20
        %v648 = vmax.f32 %v632, 1e-20
        %v649 = vmax.f32 %v633, 1e-20
        %v650 = vmax.f32 %v634, 1e-20
        %v651 = vmax.f32 %v635, 1e-20
        %v652 = vmax.f32 %v636, 1e-20
        %v653 = vmax.f32 %v637, 1e-20
        %v654 = vmax.f32 %v638, 1e-20
        %v655 = vmax.f32 %v639, 1e-20
        %v656 = vmax.f32 %v640, 1e-20
        %v657 = vmax.f32 %v641, 1e-20
        %v658 = vmax.f32 %v642, 1e-20
        %v659 = vrcp.pop %v643
        %v660 = vrcp.pop %v644
        %v661 = vrcp.pop %v645
        %v662 = vrcp.pop %v646
        %v663 = vrcp.pop %v647
        %v664 = vrcp.pop %v648
        %v665 = vrcp.pop %v649
        %v666 = vrcp.pop %v650
        %v667 = vrcp.pop %v651
        %v668 = vrcp.pop %v652
        %v669 = vrcp.pop %v653
        %v670 = vrcp.pop %v654
        %v671 = vrcp.pop %v655
        %v672 = vrcp.pop %v656
        %v673 = vrcp.pop %v657
        %v674 = vrcp.pop %v658
        %v675 = vld [vmem:[%s219] sm:$0xff]
        %v676 = vld [vmem:[%s219 + $0x8] sm:$0xff]
        %v677 = vld [vmem:[%s219 + $0x10] sm:$0xff]
        %v678 = vld [vmem:[%s219 + $0x18] sm:$0xff]
        %v679 = vld [vmem:[%s219 + $0x20] sm:$0xff]
        %v680 = vld [vmem:[%s219 + $0x28] sm:$0xff]
        %v681 = vld [vmem:[%s219 + $0x30] sm:$0xff]
        %v682 = vld [vmem:[%s219 + $0x38] sm:$0xff]
        %v683 = vld [vmem:[%s219 + $0x40] sm:$0xff]
        %v684 = vld [vmem:[%s219 + $0x48] sm:$0xff]
        %v685 = vld [vmem:[%s219 + $0x50] sm:$0xff]
        %v686 = vld [vmem:[%s219 + $0x58] sm:$0xff]
        %v687 = vld [vmem:[%s219 + $0x60] sm:$0xff]
        %v688 = vld [vmem:[%s219 + $0x68] sm:$0xff]
        %v689 = vld [vmem:[%s219 + $0x70] sm:$0xff]
        %v690 = vld [vmem:[%s219 + $0x78] sm:$0xff]
        %707 = vrot.lane.b32.xlu0 %v659, 96
        %v708 = vpop.permute.xlu0 %707
        %709 = vrot.lane.b32.xlu0 %v660, 96
        %v710 = vpop.permute.xlu0 %709
        %711 = vrot.lane.b32.xlu0 %v661, 96
        %v712 = vpop.permute.xlu0 %711
        %713 = vrot.lane.b32.xlu0 %v662, 96
        %v714 = vpop.permute.xlu0 %713
        %715 = vrot.lane.b32.xlu0 %v663, 96
        %v716 = vpop.permute.xlu0 %715
        %717 = vrot.lane.b32.xlu0 %v664, 96
        %v718 = vpop.permute.xlu0 %717
        %719 = vrot.lane.b32.xlu0 %v665, 96
        %v720 = vpop.permute.xlu0 %719
        %721 = vrot.lane.b32.xlu0 %v666, 96
        %v722 = vpop.permute.xlu0 %721
        %723 = vrot.lane.b32.xlu0 %v667, 96
        %v724 = vpop.permute.xlu0 %723
        %725 = vrot.lane.b32.xlu0 %v668, 96
        %v726 = vpop.permute.xlu0 %725
        %727 = vrot.lane.b32.xlu0 %v669, 96
        %v728 = vpop.permute.xlu0 %727
        %729 = vrot.lane.b32.xlu0 %v670, 96
        %v730 = vpop.permute.xlu0 %729
        %731 = vrot.lane.b32.xlu0 %v671, 96
        %v732 = vpop.permute.xlu0 %731
        %733 = vrot.lane.b32.xlu0 %v672, 96
        %v734 = vpop.permute.xlu0 %733
        %735 = vrot.lane.b32.xlu0 %v673, 96
        %v736 = vpop.permute.xlu0 %735
        %737 = vrot.lane.b32.xlu0 %v674, 96
        %v738 = vpop.permute.xlu0 %737
        %v755 = vmul.f32 %v627, %v708
        %v756 = vmul.f32 %v628, %v710
        %v757 = vmul.f32 %v629, %v712
        %v758 = vmul.f32 %v630, %v714
        %v759 = vmul.f32 %v631, %v716
        %v760 = vmul.f32 %v632, %v718
        %v761 = vmul.f32 %v633, %v720
        %v762 = vmul.f32 %v634, %v722
        %v763 = vmul.f32 %v635, %v724
        %v764 = vmul.f32 %v636, %v726
        %v765 = vmul.f32 %v637, %v728
        %v766 = vmul.f32 %v638, %v730
        %v767 = vmul.f32 %v639, %v732
        %v768 = vmul.f32 %v640, %v734
        %v769 = vmul.f32 %v641, %v736
        %v770 = vmul.f32 %v642, %v738
        %v771 = vadd.f32 %v675, %v755
        %v772 = vadd.f32 %v676, %v756
        %v773 = vadd.f32 %v677, %v757
        %v774 = vadd.f32 %v678, %v758
        %v775 = vadd.f32 %v679, %v759
        %v776 = vadd.f32 %v680, %v760
        %v777 = vadd.f32 %v681, %v761
        %v778 = vadd.f32 %v682, %v762
        %v779 = vadd.f32 %v683, %v763
        %v780 = vadd.f32 %v684, %v764
        %v781 = vadd.f32 %v685, %v765
        %v782 = vadd.f32 %v686, %v766
        %v783 = vadd.f32 %v687, %v767
        %v784 = vadd.f32 %v688, %v768
        %v785 = vadd.f32 %v689, %v769
        %v786 = vadd.f32 %v690, %v770
        %v787 = vmax.f32 %v771, 0.0
        %v788 = vmax.f32 %v772, 0.0
        %v789 = vmax.f32 %v773, 0.0
        %v790 = vmax.f32 %v774, 0.0
        %v791 = vmax.f32 %v775, 0.0
        %v792 = vmax.f32 %v776, 0.0
        %v793 = vmax.f32 %v777, 0.0
        %v794 = vmax.f32 %v778, 0.0
        %v795 = vmax.f32 %v779, 0.0
        %v796 = vmax.f32 %v780, 0.0
        %v797 = vmax.f32 %v781, 0.0
        %v798 = vmax.f32 %v782, 0.0
        %v799 = vmax.f32 %v783, 0.0
        %v800 = vmax.f32 %v784, 0.0
        %v801 = vmax.f32 %v785, 0.0
        %v802 = vmax.f32 %v786, 0.0
        %v803 = vpack.c.bf16 %v788, %v787
        %v804 = vpack.c.bf16 %v790, %v789
        %v805 = vpack.c.bf16 %v792, %v791
        %v806 = vpack.c.bf16 %v794, %v793
        %v807 = vpack.c.bf16 %v796, %v795
        %v808 = vpack.c.bf16 %v798, %v797
        %v809 = vpack.c.bf16 %v800, %v799
        %v810 = vpack.c.bf16 %v802, %v801
        %v819 = vunpack.c.l.b16 %v803
        %v820 = vunpack.c.h.b16 %v803
        %v821 = vunpack.c.l.b16 %v804
        %v822 = vunpack.c.h.b16 %v804
        %v823 = vunpack.c.l.b16 %v805
        %v824 = vunpack.c.h.b16 %v805
        %v825 = vunpack.c.l.b16 %v806
        %v826 = vunpack.c.h.b16 %v806
        %v827 = vunpack.c.l.b16 %v807
        %v828 = vunpack.c.h.b16 %v807
        %v829 = vunpack.c.l.b16 %v808
        %v830 = vunpack.c.h.b16 %v808
        %v831 = vunpack.c.l.b16 %v809
        %v832 = vunpack.c.h.b16 %v809
        %v833 = vunpack.c.l.b16 %v810
        %v834 = vunpack.c.h.b16 %v810
        %v835 = vpack.c.b16 %v819, %v819
        %v836 = vpack.c.b16 %v820, %v820
        %v837 = vpack.c.b16 %v821, %v821
        %v838 = vpack.c.b16 %v822, %v822
        %v839 = vpack.c.b16 %v823, %v823
        %v840 = vpack.c.b16 %v824, %v824
        %v841 = vpack.c.b16 %v825, %v825
        %v842 = vpack.c.b16 %v826, %v826
        %v843 = vpack.c.b16 %v827, %v827
        %v844 = vpack.c.b16 %v828, %v828
        %v845 = vpack.c.b16 %v829, %v829
        %v846 = vpack.c.b16 %v830, %v830
        %v847 = vpack.c.b16 %v831, %v831
        %v848 = vpack.c.b16 %v832, %v832
        %v849 = vpack.c.b16 %v833, %v833
        %v850 = vpack.c.b16 %v834, %v834
        %vm867 = vcmask 257024
        %868 = vst.msk [vmem:[%s225] sm:$0xf] %vm867, %v835
        %869 = vst.msk [vmem:[%s225 + $0x4] sm:$0xf] %vm867, %v836
        %870 = vst.msk [vmem:[%s225 + $0x8] sm:$0xf] %vm867, %v837
        %871 = vst.msk [vmem:[%s225 + $0xc] sm:$0xf] %vm867, %v838
        %872 = vst.msk [vmem:[%s225 + $0x10] sm:$0xf] %vm867, %v839
        %873 = vst.msk [vmem:[%s225 + $0x14] sm:$0xf] %vm867, %v840
        %874 = vst.msk [vmem:[%s225 + $0x18] sm:$0xf] %vm867, %v841
        %875 = vst.msk [vmem:[%s225 + $0x1c] sm:$0xf] %vm867, %v842
        %876 = vst.msk [vmem:[%s225 + $0x20] sm:$0xf] %vm867, %v843
        %877 = vst.msk [vmem:[%s225 + $0x24] sm:$0xf] %vm867, %v844
        %878 = vst.msk [vmem:[%s225 + $0x28] sm:$0xf] %vm867, %v845
        %879 = vst.msk [vmem:[%s225 + $0x2c] sm:$0xf] %vm867, %v846
        %880 = vst.msk [vmem:[%s225 + $0x30] sm:$0xf] %vm867, %v847
        %881 = vst.msk [vmem:[%s225 + $0x34] sm:$0xf] %vm867, %v848
        %882 = vst.msk [vmem:[%s225 + $0x38] sm:$0xf] %vm867, %v849
        %883 = vst.msk [vmem:[%s225 + $0x3c] sm:$0xf] %vm867, %v850
      $region40: #{point_transformer_net.7} parent=31 // pred_fallthru
        _
      %s884 = smul.u32 16, %s18
      %p885 = scmp.lt.s32.totalorder %s884, 31
      %s886 = scalar_select %p885, %s884, 31
      %s887 = smul.addr %s886, 4
      %s888 = scalar_lea.vmem %s3, %s887
      // Predicated region
      $region41: #{point_transformer_net.7} parent=31 // pred_check
        %p889 = pneg %p119
      $region42: #{point_transformer_net.7} parent=31 // pred_check_branch
        %891 = sbr.rel (%p889) target = $region44
      $region43: #{point_transformer_net.7} parent=31 // pred_region
        %s892 = smul.u32 16, %s18
      $region44: #{point_transformer_net.7} parent=31 // pred_fallthru
        _
    $region32: #{point_transformer_net.7} parent=5 // pred_fallthru
      _
    %p893 = scmp.le.s32.totalorder 2, %s9
    // Predicated region
    $region45: #{point_transformer_net.7} parent=5 // pred_check
      %p894 = pneg %p893
    $region46: #{point_transformer_net.7} parent=5 // pred_check_branch
      %896 = sbr.rel (%p894) target = $region48
    $region47: #{point_transformer_net.7} parent=5 // pred_region
      %s897 = ssub.s32 %s9, 2
      // Predicated region
      $region49: #{point_transformer_net.7} parent=47 // pred_check
        %p898 = pneg %p125
      $region50: #{point_transformer_net.7} parent=47 // pred_check_branch
        %900 = sbr.rel (%p898) target = $region52
      $region51: #{point_transformer_net.7} parent=47 // pred_region
        %s901 = smul.u32 16, %s20
        %p902 = scmp.lt.s32.totalorder %s901, 31
        %s903 = scalar_select %p902, %s901, 31
        %s904 = smul.addr %s903, 4
        %s905 = scalar_lea.vmem %s3, %s904
      $region52: #{point_transformer_net.7} parent=47 // pred_fallthru
        _
    $region48: #{point_transformer_net.7} parent=5 // pred_fallthru
      _
  $region6: #{point_transformer_net.7} parent=0 // loop_footer
    %s13 = sadd.s32 1, %s9
  $region7: #{point_transformer_net.7} parent=0 // loop_footer_branch
    %8 = sbr.rel target = $region3
  $region8: #{point_transformer_net.7} parent=0 // loop_exit
    _

// kernel: point_transformer_net.11
$region0: #{point_transformer_net.11}
  #allocation0 [shape = 'u32[]', space=smem, size = 0x4, offset = 0x4, fixed_abs, tag = 'smem constant byte address 0x4 - core index']
  #allocation1 [shape = 'u32[144,128]{1,0:T(1,128)}', space=vmem, size = 0x12000, scoped, tag = 'internal scratch']
  #allocation2 [shape = 'f32[128,64]{1,0:T(8,128)}', space=vmem, size = 0x10000, scoped, tag = 'scratch operand']
  #allocation3 [shape = 'f32[1,1]{1,0:T(1,128)S(1)}', space=vmem, size = 0x200, scoped, tag = 'scoped memory for point_transformer_net.11']
  %s0 = inlined_call_operand.vmem [shape: bf16[256,256], index: 0, kind: input, shape index: {}]
  %s1 = inlined_call_operand.vmem [shape: bf16[256,64], index: 1, kind: input, shape index: {}]
  %s2 = inlined_call_operand.vmem [shape: f32[256,32], index: 2, kind: input, shape index: {}]
  %s3 = inlined_call_operand.vmem [shape: f32[32,16], index: 3, kind: input, shape index: {}]
  %s4 = inlined_call_operand.vmem [shape: f32[1,16], index: 4, kind: input, shape index: {}]
  %s5 = inlined_call_operand.vmem [shape: f32[1,16], index: 5, kind: input, shape index: {}]
  %s6 = inlined_call_operand.<no memory space> [shape: f32[1,1], index: 6, kind: input, shape index: {}]
  %s7 = inlined_call_operand.vmem [shape: f32[256,1], index: 7, kind: output, shape index: {}]
  %s8 = sld [smem:[#allocation0]]
  $region69: #{point_transformer_net.11} parent=0
    _
  %s10 = ssub.s32 1, %s8
  %s11 = scalar_select 0, %s10, %s8
  %v12 = vstv %s6
  %13 = vst [vmem:[#allocation3] sm:$0x1] %v12
  loop: start=0, step=1, limit=4
  $region2: #{point_transformer_net.11} parent=0 // loop_pre_header
    _
  $region3: #{point_transformer_net.11} parent=0 // loop_header
    %s15 = sphi 0, %s19
    %p16 = scmp.ge.s32.totalorder %s15, 4
    %s22 = sphi 0, %s34
    %s23 = sphi 0, %s30
    %s24 = sphi 0, %s22
    %s25 = sphi 0, %s23
    %s26 = sphi 0, %s24
    %s27 = sphi 0, %s25
    %s39 = sphi 0, %s41
    %s42 = sphi 0, %s39
    %s43 = sphi 0, %s42
    %s59 = sphi 0, %s43
    %s63 = sphi 0, %s63
    %s65 = sphi 0, %s63
    %s66 = sphi 0, %s65
    %s80 = sphi 0, %s66
    %s86 = sphi 0, %s88
    %s89 = sphi 0, %s86
    %s90 = sphi 0, %s89
    %s106 = sphi 0, %s90
    %s110 = sphi 0, %s110
    %s112 = sphi 0, %s110
    %s113 = sphi 0, %s112
    %s127 = sphi 0, %s113
    %s131 = sphi 0, %s131
    %s133 = sphi 0, %s131
    %s134 = sphi 0, %s133
    %s148 = sphi 0, %s134
    %s152 = sphi 0, %s152
    %s154 = sphi 0, %s152
    %s155 = sphi 0, %s154
    %s169 = sphi 0, %s155
    %s173 = sphi 0, %s173
    %s175 = sphi 0, %s173
    %s176 = sphi 0, %s175
    %s190 = sphi 0, %s176
    %s196 = sphi 0, %s198
    %s199 = sphi 0, %s196
    %s200 = sphi 0, %s199
    %s216 = sphi 0, %s200
  $region4: #{point_transformer_net.11} parent=0 // loop_header_branch
    %18 = sbr.rel (%p16) target = $region8
  $region5: #{point_transformer_net.11} parent=0 // loop_body
    %s20 = ssub.s32 %s15, 1
    %s21 = ssub.s32 %s15, 2
    %s28 = sadd.s32 1, %s23
    %p29 = scmp.ge.s32.totalorder %s28, 1
    %s30 = scalar_select %p29, 0, %s28
    %s31 = sadd.s32 1, %s22
    %s32 = scalar_select %p29, %s31, %s22
    %p33 = scmp.ge.s32.totalorder %s32, 2
    %s34 = scalar_select %p33, 0, %s32
    %s35 = ssub.s32 %s22, %s34
    %s36 = ssub.s32 %s23, %s30
    %s37 = sor.u32 %s35, %s36
    %p38 = scmp.eq.s32.totalorder %s37, 0
    %s40 = sadd.s32 %s39, 1
    %s41 = scalar_select %p38, %s39, %s40
    %p44 = pneg %p38
    %p45 = scmp.eq.s32.totalorder %s15, 1
    %p46 = por %p44, %p45
    %p47 = scmp.ne.s32.totalorder %s39, %s42
    %p48 = scmp.eq.s32.totalorder %s15, 0
    %p49 = por %p47, %p48
    %p50 = scmp.ne.s32.totalorder %s39, %s42
    %p51 = scmp.eq.s32.totalorder %s20, 1
    %p52 = por %p50, %p51
    %p53 = scmp.ne.s32.totalorder %s42, %s43
    %p54 = scmp.eq.s32.totalorder %s20, 0
    %p55 = por %p53, %p54
    %p56 = scmp.ne.s32.totalorder %s42, %s43
    %p57 = scmp.eq.s32.totalorder %s21, 1
    %p58 = por %p56, %p57
    %p60 = scmp.ne.s32.totalorder %s43, %s59
    %p61 = scmp.eq.s32.totalorder %s21, 0
    %p62 = por %p60, %p61
    %s64 = sadd.s32 %s63, 1
    %p67 = scmp.eq.s32.totalorder %s15, 1
    %p68 = scmp.ne.s32.totalorder %s63, %s65
    %p69 = scmp.eq.s32.totalorder %s15, 0
    %p70 = por %p68, %p69
    %p71 = scmp.ne.s32.totalorder %s63, %s65
    %p72 = scmp.eq.s32.totalorder %s20, 1
    %p73 = por %p71, %p72
    %p74 = scmp.ne.s32.totalorder %s65, %s66
    %p75 = scmp.eq.s32.totalorder %s20, 0
    %p76 = por %p74, %p75
    %p77 = scmp.ne.s32.totalorder %s65, %s66
    %p78 = scmp.eq.s32.totalorder %s21, 1
    %p79 = por %p77, %p78
    %p81 = scmp.ne.s32.totalorder %s66, %s80
    %p82 = scmp.eq.s32.totalorder %s21, 0
    %p83 = por %p81, %p82
    %s84 = ssub.s32 %s22, %s34
    %p85 = scmp.eq.s32.totalorder %s84, 0
    %s87 = sadd.s32 %s86, 1
    %s88 = scalar_select %p85, %s86, %s87
    %p91 = pneg %p85
    %p92 = scmp.eq.s32.totalorder %s15, 1
    %p93 = por %p91, %p92
    %p94 = scmp.ne.s32.totalorder %s86, %s89
    %p95 = scmp.eq.s32.totalorder %s15, 0
    %p96 = por %p94, %p95
    %p97 = scmp.ne.s32.totalorder %s86, %s89
    %p98 = scmp.eq.s32.totalorder %s20, 1
    %p99 = por %p97, %p98
    %p100 = scmp.ne.s32.totalorder %s89, %s90
    %p101 = scmp.eq.s32.totalorder %s20, 0
    %p102 = por %p100, %p101
    %p103 = scmp.ne.s32.totalorder %s89, %s90
    %p104 = scmp.eq.s32.totalorder %s21, 1
    %p105 = por %p103, %p104
    %p107 = scmp.ne.s32.totalorder %s90, %s106
    %p108 = scmp.eq.s32.totalorder %s21, 0
    %p109 = por %p107, %p108
    %s111 = sadd.s32 %s110, 1
    %p114 = scmp.eq.s32.totalorder %s15, 1
    %p115 = scmp.ne.s32.totalorder %s110, %s112
    %p116 = scmp.eq.s32.totalorder %s15, 0
    %p117 = por %p115, %p116
    %p118 = scmp.ne.s32.totalorder %s110, %s112
    %p119 = scmp.eq.s32.totalorder %s20, 1
    %p120 = por %p118, %p119
    %p121 = scmp.ne.s32.totalorder %s112, %s113
    %p122 = scmp.eq.s32.totalorder %s20, 0
    %p123 = por %p121, %p122
    %p124 = scmp.ne.s32.totalorder %s112, %s113
    %p125 = scmp.eq.s32.totalorder %s21, 1
    %p126 = por %p124, %p125
    %p128 = scmp.ne.s32.totalorder %s113, %s127
    %p129 = scmp.eq.s32.totalorder %s21, 0
    %p130 = por %p128, %p129
    %s132 = sadd.s32 %s131, 1
    %p135 = scmp.eq.s32.totalorder %s15, 1
    %p136 = scmp.ne.s32.totalorder %s131, %s133
    %p137 = scmp.eq.s32.totalorder %s15, 0
    %p138 = por %p136, %p137
    %p139 = scmp.ne.s32.totalorder %s131, %s133
    %p140 = scmp.eq.s32.totalorder %s20, 1
    %p141 = por %p139, %p140
    %p142 = scmp.ne.s32.totalorder %s133, %s134
    %p143 = scmp.eq.s32.totalorder %s20, 0
    %p144 = por %p142, %p143
    %p145 = scmp.ne.s32.totalorder %s133, %s134
    %p146 = scmp.eq.s32.totalorder %s21, 1
    %p147 = por %p145, %p146
    %p149 = scmp.ne.s32.totalorder %s134, %s148
    %p150 = scmp.eq.s32.totalorder %s21, 0
    %p151 = por %p149, %p150
    %s153 = sadd.s32 %s152, 1
    %p156 = scmp.eq.s32.totalorder %s15, 1
    %p157 = scmp.ne.s32.totalorder %s152, %s154
    %p158 = scmp.eq.s32.totalorder %s15, 0
    %p159 = por %p157, %p158
    %p160 = scmp.ne.s32.totalorder %s152, %s154
    %p161 = scmp.eq.s32.totalorder %s20, 1
    %p162 = por %p160, %p161
    %p163 = scmp.ne.s32.totalorder %s154, %s155
    %p164 = scmp.eq.s32.totalorder %s20, 0
    %p165 = por %p163, %p164
    %p166 = scmp.ne.s32.totalorder %s154, %s155
    %p167 = scmp.eq.s32.totalorder %s21, 1
    %p168 = por %p166, %p167
    %p170 = scmp.ne.s32.totalorder %s155, %s169
    %p171 = scmp.eq.s32.totalorder %s21, 0
    %p172 = por %p170, %p171
    %s174 = sadd.s32 %s173, 1
    %p177 = scmp.eq.s32.totalorder %s15, 1
    %p178 = scmp.ne.s32.totalorder %s173, %s175
    %p179 = scmp.eq.s32.totalorder %s15, 0
    %p180 = por %p178, %p179
    %p181 = scmp.ne.s32.totalorder %s173, %s175
    %p182 = scmp.eq.s32.totalorder %s20, 1
    %p183 = por %p181, %p182
    %p184 = scmp.ne.s32.totalorder %s175, %s176
    %p185 = scmp.eq.s32.totalorder %s20, 0
    %p186 = por %p184, %p185
    %p187 = scmp.ne.s32.totalorder %s175, %s176
    %p188 = scmp.eq.s32.totalorder %s21, 1
    %p189 = por %p187, %p188
    %p191 = scmp.ne.s32.totalorder %s176, %s190
    %p192 = scmp.eq.s32.totalorder %s21, 0
    %p193 = por %p191, %p192
    %s194 = ssub.s32 %s22, %s34
    %p195 = scmp.eq.s32.totalorder %s194, 0
    %s197 = sadd.s32 %s196, 1
    %s198 = scalar_select %p195, %s196, %s197
    %p201 = pneg %p195
    %p202 = scmp.eq.s32.totalorder %s15, 1
    %p203 = por %p201, %p202
    %p204 = scmp.ne.s32.totalorder %s196, %s199
    %p205 = scmp.eq.s32.totalorder %s15, 0
    %p206 = por %p204, %p205
    %p207 = scmp.ne.s32.totalorder %s196, %s199
    %p208 = scmp.eq.s32.totalorder %s20, 1
    %p209 = por %p207, %p208
    %p210 = scmp.ne.s32.totalorder %s199, %s200
    %p211 = scmp.eq.s32.totalorder %s20, 0
    %p212 = por %p210, %p211
    %p213 = scmp.ne.s32.totalorder %s199, %s200
    %p214 = scmp.eq.s32.totalorder %s21, 1
    %p215 = por %p213, %p214
    %p217 = scmp.ne.s32.totalorder %s200, %s216
    %p218 = scmp.eq.s32.totalorder %s21, 0
    %p219 = por %p217, %p218
    %p220 = scmp.le.s32.totalorder 1, %s15
    %p221 = scmp.lt.s32.totalorder %s15, 3
    %p222 = pnand %p220, %p221
    %p223 = pneg %p222
    // Predicated region
    $region9: #{point_transformer_net.11} parent=5 // pred_check
      _
    $region10: #{point_transformer_net.11} parent=5 // pred_check_branch
      %225 = sbr.rel (%p222) target = $region12
    $region11: #{point_transformer_net.11} parent=5 // pred_region
      %s226 = ssub.s32 %s15, 1
      // Predicated region
      $region13: #{point_transformer_net.11} parent=11 // pred_check
        %p227 = pneg %p76
      $region14: #{point_transformer_net.11} parent=11 // pred_check_branch
        %229 = sbr.rel (%p227) target = $region16
      $region15: #{point_transformer_net.11} parent=11 // pred_region
        _
      $region16: #{point_transformer_net.11} parent=11 // pred_fallthru
        _
      // Predicated region
      $region17: #{point_transformer_net.11} parent=11 // pred_check
        %p230 = pneg %p123
      $region18: #{point_transformer_net.11} parent=11 // pred_check_branch
        %232 = sbr.rel (%p230) target = $region20
      $region19: #{point_transformer_net.11} parent=11 // pred_region
        _
      $region20: #{point_transformer_net.11} parent=11 // pred_fallthru
        _
      // Predicated region
      $region21: #{point_transformer_net.11} parent=11 // pred_check
        %p233 = pneg %p144
      $region22: #{point_transformer_net.11} parent=11 // pred_check_branch
        %235 = sbr.rel (%p233) target = $region24
      $region23: #{point_transformer_net.11} parent=11 // pred_region
        _
      $region24: #{point_transformer_net.11} parent=11 // pred_fallthru
        _
      // Predicated region
      $region25: #{point_transformer_net.11} parent=11 // pred_check
        %p236 = pneg %p165
      $region26: #{point_transformer_net.11} parent=11 // pred_check_branch
        %238 = sbr.rel (%p236) target = $region28
      $region27: #{point_transformer_net.11} parent=11 // pred_region
        _
      $region28: #{point_transformer_net.11} parent=11 // pred_fallthru
        _
      // Predicated region
      $region29: #{point_transformer_net.11} parent=11 // pred_check
        %p239 = pneg %p186
      $region30: #{point_transformer_net.11} parent=11 // pred_check_branch
        %241 = sbr.rel (%p239) target = $region32
      $region31: #{point_transformer_net.11} parent=11 // pred_region
        _
      $region32: #{point_transformer_net.11} parent=11 // pred_fallthru
        _
    $region12: #{point_transformer_net.11} parent=5 // pred_fallthru
      _
    %p242 = scmp.lt.s32.totalorder %s15, 2
    // Predicated region
    $region33: #{point_transformer_net.11} parent=5 // pred_check
      %p243 = pneg %p242
    $region34: #{point_transformer_net.11} parent=5 // pred_check_branch
      %245 = sbr.rel (%p243) target = $region36
    $region35: #{point_transformer_net.11} parent=5 // pred_region
      // Predicated region
      $region37: #{point_transformer_net.11} parent=35 // pred_check
        %p246 = pneg %p49
      $region38: #{point_transformer_net.11} parent=35 // pred_check_branch
        %248 = sbr.rel (%p246) target = $region40
      $region39: #{point_transformer_net.11} parent=35 // pred_region
        %s249 = smul.u32 16, %s22
        %s250 = smul.u32 2, %s23
        %p251 = scmp.lt.s32.totalorder %s249, 31
        %s252 = scalar_select %p251, %s249, 31
        %p253 = scmp.lt.s32.totalorder %s250, 1
        %s254 = scalar_select %p253, %s250, 1
        %s255 = smul.addr %s252, 2
        %s256 = sadd.s32 %s254, %s255
        %s257 = smul.addr %s256, 4
        %s258 = scalar_lea.vmem %s0, %s257
        %s259 = smul.u32 16, %s22
        %s260 = smul.u32 2, %s23
      $region40: #{point_transformer_net.11} parent=35 // pred_fallthru
        _
      // Predicated region
      $region41: #{point_transformer_net.11} parent=35 // pred_check
        %p261 = pneg %p96
      $region42: #{point_transformer_net.11} parent=35 // pred_check_branch
        %263 = sbr.rel (%p261) target = $region44
      $region43: #{point_transformer_net.11} parent=35 // pred_region
        %s264 = smul.u32 16, %s22
        %p265 = scmp.lt.s32.totalorder %s264, 31
        %s266 = scalar_select %p265, %s264, 31
        %s267 = smul.addr %s266, 8
        %s268 = scalar_lea.vmem %s2, %s267
        %s269 = smul.u32 16, %s22
      $region44: #{point_transformer_net.11} parent=35 // pred_fallthru
        _
    $region36: #{point_transformer_net.11} parent=5 // pred_fallthru
      _
    %p270 = scmp.le.s32.totalorder 1, %s15
    %p271 = scmp.lt.s32.totalorder %s15, 3
    %p272 = pnand %p270, %p271
    %p273 = pneg %p272
    // Predicated region
    $region45: #{point_transformer_net.11} parent=5 // pred_check
      _
    $region46: #{point_transformer_net.11} parent=5 // pred_check_branch
      %275 = sbr.rel (%p272) target = $region48
    $region47: #{point_transformer_net.11} parent=5 // pred_region
      %s276 = ssub.s32 %s15, 1
      %s277 = smul.u32 16, %s24
      %s278 = smul.u32 2, %s25
      %p279 = scmp.lt.s32.totalorder %s277, 31
      %s280 = scalar_select %p279, %s277, 31
      %p281 = scmp.lt.s32.totalorder %s278, 1
      %s282 = scalar_select %p281, %s278, 1
      %s283 = smul.addr %s280, 2
      %s284 = sadd.s32 %s282, %s283
      %s285 = smul.addr %s284, 4
      %s286 = scalar_lea.vmem %s0, %s285
      %p287 = pneg %p55
      %p288 = pneg %p52
      %p289 = pneg %p76
      %p290 = pneg %p73
      %s291 = smul.u32 16, %s24
      %p292 = scmp.lt.s32.totalorder %s291, 31
      %s293 = scalar_select %p292, %s291, 31
      %s294 = smul.addr %s293, 8
      %s295 = scalar_lea.vmem %s2, %s294
      %p296 = pneg %p102
      %p297 = pneg %p99
      %p298 = pneg %p123
      %p299 = pneg %p120
      %p300 = pneg %p144
      %p301 = pneg %p141
      %p302 = pneg %p165
      %p303 = pneg %p162
      %p304 = pneg %p186
      %p305 = pneg %p183
      %p306 = pneg %p212
      %p307 = pneg %p209
      %s308 = smul.u32 16, %s24
      %p309 = scmp.lt.s32.totalorder %s308, 31
      %s310 = scalar_select %p309, %s308, 31
      %s311 = smul.addr %s310, 8
      %s312 = scalar_lea.vmem %s7, %s311
      %s313 = smul.u32 16, %s24
      %s314 = smul.u32 2, %s25
      %p315 = scmp.lt.s32.totalorder %s313, 31
      %s316 = scalar_select %p315, %s313, 31
      %p317 = scmp.lt.s32.totalorder %s314, 1
      %s318 = scalar_select %p317, %s314, 1
      %s319 = smul.addr %s316, 2
      %s320 = sadd.s32 %s318, %s319
      %s321 = smul.addr %s320, 4
      %s322 = scalar_lea.vmem %s0, %s321
      %s323 = smul.u32 16, %s24
      %s324 = smul.u32 2, %s25
      %s325 = smul.u32 16, %s24
      %p326 = scmp.lt.s32.totalorder %s325, 31
      %s327 = scalar_select %p326, %s325, 31
      %s328 = smul.addr %s327, 8
      %s329 = scalar_lea.vmem %s2, %s328
      %s330 = smul.u32 16, %s24
      %s331 = smul.u32 16, %s24
      %p332 = scmp.lt.s32.totalorder %s331, 31
      %s333 = scalar_select %p332, %s331, 31
      %s334 = smul.addr %s333, 8
      %s335 = scalar_lea.vmem %s7, %s334
      %s336 = smul.u32 16, %s24
      %p338 = scmp.eq.s32.totalorder %s25, 0
      // Predicated region
      $region49: #{point_transformer_net.11} parent=47 // pred_check
        %p339 = pneg %p338
      $region50: #{point_transformer_net.11} parent=47 // pred_check_branch
        %341 = sbr.rel (%p339) target = $region52
      $region51: #{point_transformer_net.11} parent=47 // pred_region
        %vm342 = vcmask 523264
        %343 = vst.msk [vmem:[#allocation2] sm:$0xff] %vm342, 0.0
        %344 = vst.msk [vmem:[#allocation2 + $0x8] sm:$0xff] %vm342, 0.0
        %345 = vst.msk [vmem:[#allocation2 + $0x10] sm:$0xff] %vm342, 0.0
        %346 = vst.msk [vmem:[#allocation2 + $0x18] sm:$0xff] %vm342, 0.0
        %347 = vst.msk [vmem:[#allocation2 + $0x20] sm:$0xff] %vm342, 0.0
        %348 = vst.msk [vmem:[#allocation2 + $0x28] sm:$0xff] %vm342, 0.0
        %349 = vst.msk [vmem:[#allocation2 + $0x30] sm:$0xff] %vm342, 0.0
        %350 = vst.msk [vmem:[#allocation2 + $0x38] sm:$0xff] %vm342, 0.0
        %351 = vst.msk [vmem:[#allocation2 + $0x40] sm:$0xff] %vm342, 0.0
        %352 = vst.msk [vmem:[#allocation2 + $0x48] sm:$0xff] %vm342, 0.0
        %353 = vst.msk [vmem:[#allocation2 + $0x50] sm:$0xff] %vm342, 0.0
        %354 = vst.msk [vmem:[#allocation2 + $0x58] sm:$0xff] %vm342, 0.0
        %355 = vst.msk [vmem:[#allocation2 + $0x60] sm:$0xff] %vm342, 0.0
        %356 = vst.msk [vmem:[#allocation2 + $0x68] sm:$0xff] %vm342, 0.0
        %357 = vst.msk [vmem:[#allocation2 + $0x70] sm:$0xff] %vm342, 0.0
        %358 = vst.msk [vmem:[#allocation2 + $0x78] sm:$0xff] %vm342, 0.0
      $region52: #{point_transformer_net.11} parent=47 // pred_fallthru
        _
      %s359 = smul.u32 %s25, 256
      %v360 = vld [vmem:[#allocation2] sm:$0xff]
      %v361 = vld [vmem:[#allocation2 + $0x8] sm:$0xff]
      %v362 = vld [vmem:[#allocation2 + $0x10] sm:$0xff]
      %v363 = vld [vmem:[#allocation2 + $0x18] sm:$0xff]
      %v364 = vld [vmem:[#allocation2 + $0x20] sm:$0xff]
      %v365 = vld [vmem:[#allocation2 + $0x28] sm:$0xff]
      %v366 = vld [vmem:[#allocation2 + $0x30] sm:$0xff]
      %v367 = vld [vmem:[#allocation2 + $0x38] sm:$0xff]
      %v368 = vld [vmem:[#allocation2 + $0x40] sm:$0xff]
      %v369 = vld [vmem:[#allocation2 + $0x48] sm:$0xff]
      %v370 = vld [vmem:[#allocation2 + $0x50] sm:$0xff]
      %v371 = vld [vmem:[#allocation2 + $0x58] sm:$0xff]
      %v372 = vld [vmem:[#allocation2 + $0x60] sm:$0xff]
      %v373 = vld [vmem:[#allocation2 + $0x68] sm:$0xff]
      %v374 = vld [vmem:[#allocation2 + $0x70] sm:$0xff]
      %v375 = vld [vmem:[#allocation2 + $0x78] sm:$0xff]
      %v376 = vld [vmem:[%s322] sm:$0xff]
      %v377 = vld [vmem:[%s322 + $0x8] sm:$0xff]
      %v378 = vld [vmem:[%s322 + $0x10] sm:$0xff]
      %v379 = vld [vmem:[%s322 + $0x18] sm:$0xff]
      %v380 = vld [vmem:[%s322 + $0x20] sm:$0xff]
      %v381 = vld [vmem:[%s322 + $0x28] sm:$0xff]
      %v382 = vld [vmem:[%s322 + $0x30] sm:$0xff]
      %v383 = vld [vmem:[%s322 + $0x38] sm:$0xff]
      %v384 = vld [vmem:[%s322 + $0x40] sm:$0xff]
      %v385 = vld [vmem:[%s322 + $0x48] sm:$0xff]
      %v386 = vld [vmem:[%s322 + $0x50] sm:$0xff]
      %v387 = vld [vmem:[%s322 + $0x58] sm:$0xff]
      %v388 = vld [vmem:[%s322 + $0x60] sm:$0xff]
      %v389 = vld [vmem:[%s322 + $0x68] sm:$0xff]
      %v390 = vld [vmem:[%s322 + $0x70] sm:$0xff]
      %v391 = vld [vmem:[%s322 + $0x78] sm:$0xff]
      %s392 = sshra.s32 %s359, 3
      %s393 = sand.u32 %s359, 7
      %s394 = smul.addr %s392, 4
      %s395 = scalar_lea.vmem %s1, %s394
      %v396 = vld [vmem:[%s395] sm:$0xf]
      %v397 = vld [vmem:[%s395 + $0x4] sm:$0xf]
      %v398 = vld [vmem:[%s395 + $0x8] sm:$0xf]
      %v399 = vld [vmem:[%s395 + $0xc] sm:$0xf]
      %v400 = vld [vmem:[%s395 + $0x10] sm:$0xf]
      %v401 = vld [vmem:[%s395 + $0x14] sm:$0xf]
      %v402 = vld [vmem:[%s395 + $0x18] sm:$0xf]
      %v403 = vld [vmem:[%s395 + $0x1c] sm:$0xf]
      %v404 = vld [vmem:[%s395 + $0x20] sm:$0xf]
      %v405 = vld [vmem:[%s395 + $0x24] sm:$0xf]
      %v406 = vld [vmem:[%s395 + $0x28] sm:$0xf]
      %v407 = vld [vmem:[%s395 + $0x2c] sm:$0xf]
      %v408 = vld [vmem:[%s395 + $0x30] sm:$0xf]
      %v409 = vld [vmem:[%s395 + $0x34] sm:$0xf]
      %v410 = vld [vmem:[%s395 + $0x38] sm:$0xf]
      %v411 = vld [vmem:[%s395 + $0x3c] sm:$0xf]
      %v412 = vld [vmem:[%s395 + $0x40] sm:$0xf]
      %v413 = vld [vmem:[%s395 + $0x44] sm:$0xf]
      %v414 = vld [vmem:[%s395 + $0x48] sm:$0xf]
      %v415 = vld [vmem:[%s395 + $0x4c] sm:$0xf]
      %v416 = vld [vmem:[%s395 + $0x50] sm:$0xf]
      %v417 = vld [vmem:[%s395 + $0x54] sm:$0xf]
      %v418 = vld [vmem:[%s395 + $0x58] sm:$0xf]
      %v419 = vld [vmem:[%s395 + $0x5c] sm:$0xf]
      %v420 = vld [vmem:[%s395 + $0x60] sm:$0xf]
      %v421 = vld [vmem:[%s395 + $0x64] sm:$0xf]
      %v422 = vld [vmem:[%s395 + $0x68] sm:$0xf]
      %v423 = vld [vmem:[%s395 + $0x6c] sm:$0xf]
      %v424 = vld [vmem:[%s395 + $0x70] sm:$0xf]
      %v425 = vld [vmem:[%s395 + $0x74] sm:$0xf]
      %v426 = vld [vmem:[%s395 + $0x78] sm:$0xf]
      %v427 = vld [vmem:[%s395 + $0x7c] sm:$0xf]
      %v444 = vunpack.c.l.b16 %v376
      %v445 = vunpack.c.h.b16 %v376
      %v446 = vunpack.c.l.b16 %v377
      %v447 = vunpack.c.h.b16 %v377
      %v448 = vunpack.c.l.b16 %v378
      %v449 = vunpack.c.h.b16 %v378
      %v450 = vunpack.c.l.b16 %v379
      %v451 = vunpack.c.h.b16 %v379
      %v452 = vunpack.c.l.b16 %v380
      %v453 = vunpack.c.h.b16 %v380
      %v454 = vunpack.c.l.b16 %v381
      %v455 = vunpack.c.h.b16 %v381
      %v456 = vunpack.c.l.b16 %v382
      %v457 = vunpack.c.h.b16 %v382
      %v458 = vunpack.c.l.b16 %v383
      %v459 = vunpack.c.h.b16 %v383
      %v460 = vunpack.c.l.b16 %v384
      %v461 = vunpack.c.h.b16 %v384
      %v462 = vunpack.c.l.b16 %v385
      %v463 = vunpack.c.h.b16 %v385
      %v464 = vunpack.c.l.b16 %v386
      %v465 = vunpack.c.h.b16 %v386
      %v466 = vunpack.c.l.b16 %v387
      %v467 = vunpack.c.h.b16 %v387
      %v468 = vunpack.c.l.b16 %v388
      %v469 = vunpack.c.h.b16 %v388
      %v470 = vunpack.c.l.b16 %v389
      %v471 = vunpack.c.h.b16 %v389
      %v472 = vunpack.c.l.b16 %v390
      %v473 = vunpack.c.h.b16 %v390
      %v474 = vunpack.c.l.b16 %v391
      %v475 = vunpack.c.h.b16 %v391
      %v476 = vpack.c.b16 %v446, %v444
      %v477 = vpack.c.b16 %v447, %v445
      %v478 = vpack.c.b16 %v450, %v448
      %v479 = vpack.c.b16 %v451, %v449
      %v480 = vpack.c.b16 %v454, %v452
      %v481 = vpack.c.b16 %v455, %v453
      %v482 = vpack.c.b16 %v458, %v456
      %v483 = vpack.c.b16 %v459, %v457
      %v484 = vpack.c.b16 %v462, %v460
      %v485 = vpack.c.b16 %v463, %v461
      %v486 = vpack.c.b16 %v466, %v464
      %v487 = vpack.c.b16 %v467, %v465
      %v488 = vpack.c.b16 %v470, %v468
      %v489 = vpack.c.b16 %v471, %v469
      %v490 = vpack.c.b16 %v474, %v472
      %v491 = vpack.c.b16 %v475, %v473
      %v540 = vunpack.c.l.b16 %v396
      %v541 = vunpack.c.l.b16 %v397
      %v542 = vunpack.c.l.b16 %v398
      %v543 = vunpack.c.l.b16 %v399
      %v544 = vunpack.c.l.b16 %v400
      %v545 = vunpack.c.l.b16 %v401
      %v546 = vunpack.c.l.b16 %v402
      %v547 = vunpack.c.l.b16 %v403
      %v548 = vunpack.c.l.b16 %v404
      %v549 = vunpack.c.l.b16 %v405
      %v550 = vunpack.c.l.b16 %v406
      %v551 = vunpack.c.l.b16 %v407
      %v552 = vunpack.c.l.b16 %v408
      %v553 = vunpack.c.l.b16 %v409
      %v554 = vunpack.c.l.b16 %v410
      %v555 = vunpack.c.l.b16 %v411
      %v556 = vunpack.c.l.b16 %v412
      %v557 = vunpack.c.l.b16 %v413
      %v558 = vunpack.c.l.b16 %v414
      %v559 = vunpack.c.l.b16 %v415
      %v560 = vunpack.c.l.b16 %v416
      %v561 = vunpack.c.l.b16 %v417
      %v562 = vunpack.c.l.b16 %v418
      %v563 = vunpack.c.l.b16 %v419
      %v564 = vunpack.c.l.b16 %v420
      %v565 = vunpack.c.l.b16 %v421
      %v566 = vunpack.c.l.b16 %v422
      %v567 = vunpack.c.l.b16 %v423
      %v568 = vunpack.c.l.b16 %v424
      %v569 = vunpack.c.l.b16 %v425
      %v570 = vunpack.c.l.b16 %v426
      %v571 = vunpack.c.l.b16 %v427
      %v572 = vpack.c.b16 %v541, %v540
      %v573 = vpack.c.b16 %v543, %v542
      %v574 = vpack.c.b16 %v545, %v544
      %v575 = vpack.c.b16 %v547, %v546
      %v576 = vpack.c.b16 %v549, %v548
      %v577 = vpack.c.b16 %v551, %v550
      %v578 = vpack.c.b16 %v553, %v552
      %v579 = vpack.c.b16 %v555, %v554
      %v580 = vpack.c.b16 %v557, %v556
      %v581 = vpack.c.b16 %v559, %v558
      %v582 = vpack.c.b16 %v561, %v560
      %v583 = vpack.c.b16 %v563, %v562
      %v584 = vpack.c.b16 %v565, %v564
      %v585 = vpack.c.b16 %v567, %v566
      %v586 = vpack.c.b16 %v569, %v568
      %v587 = vpack.c.b16 %v571, %v570
      %604 = vmatprep.subr.bf16.mxu0 0
      %605 = vmatpush1.bf16.msra.mxu0 %v572
      %606 = vmatprep.subr.bf16.mxu0 0
      %607 = vmatpush1.bf16.msra.mxu0 %v573
      %608 = vmatprep.subr.bf16.mxu0 0
      %609 = vmatpush1.bf16.msra.mxu0 %v574
      %610 = vmatprep.subr.bf16.mxu0 0
      %611 = vmatpush1.bf16.msra.mxu0 %v575
      %612 = vmatprep.subr.bf16.mxu0 0
      %613 = vmatpush1.bf16.msra.mxu0 %v576
      %614 = vmatprep.subr.bf16.mxu0 0
      %615 = vmatpush1.bf16.msra.mxu0 %v577
      %616 = vmatprep.subr.bf16.mxu0 0
      %617 = vmatpush1.bf16.msra.mxu0 %v578
      %618 = vmatprep.subr.bf16.mxu0 0
      %619 = vmatpush1.bf16.msra.mxu0 %v579
      %620 = vmatprep.subr.bf16.mxu0 0
      %621 = vmatpush1.bf16.msra.mxu0 %v580
      %622 = vmatprep.subr.bf16.mxu0 0
      %623 = vmatpush1.bf16.msra.mxu0 %v581
      %624 = vmatprep.subr.bf16.mxu0 0
      %625 = vmatpush1.bf16.msra.mxu0 %v582
      %626 = vmatprep.subr.bf16.mxu0 0
      %627 = vmatpush1.bf16.msra.mxu0 %v583
      %628 = vmatprep.subr.bf16.mxu0 0
      %629 = vmatpush1.bf16.msra.mxu0 %v584
      %630 = vmatprep.subr.bf16.mxu0 0
      %631 = vmatpush1.bf16.msra.mxu0 %v585
      %632 = vmatprep.subr.bf16.mxu0 0
      %633 = vmatpush1.bf16.msra.mxu0 %v586
      %634 = vmatprep.subr.bf16.mxu0 0
      %635 = vmatpush1.bf16.msra.mxu0 %v587
      %636 = vmatprep.mubr.bf16.mxu0 %v477
      %637 = vmatmul.mubr.bf16.gmra.mrb[0].mxu0 %v476
      %v638 = vpop.f32.mrb[0].mxu0
      %v639 = vadd.f32 0.0, %v638
      %v640 = vpop.f32.mrb[0].mxu0
      %v641 = vpop.f32.mrb[0].mxu0
      %v642 = vadd.f32 0.0, %v641
      %v643 = vpop.f32.mrb[0].mxu0
      %644 = vmatprep.mubr.bf16.mxu0 %v479
      %645 = vmatmul.mubr.bf16.gmra.mrb[0].mxu0 %v478
      %v646 = vpop.f32.mrb[0].mxu0
      %v647 = vadd.f32 0.0, %v646
      %v648 = vpop.f32.mrb[0].mxu0
      %v649 = vpop.f32.mrb[0].mxu0
      %v650 = vadd.f32 0.0, %v649
      %v651 = vpop.f32.mrb[0].mxu0
      %652 = vmatprep.mubr.bf16.mxu0 %v481
      %653 = vmatmul.mubr.bf16.gmra.mrb[0].mxu0 %v480
      %v654 = vpop.f32.mrb[0].mxu0
      %v655 = vadd.f32 0.0, %v654
      %v656 = vpop.f32.mrb[0].mxu0
      %v657 = vpop.f32.mrb[0].mxu0
      %v658 = vadd.f32 0.0, %v657
      %v659 = vpop.f32.mrb[0].mxu0
      %660 = vmatprep.mubr.bf16.mxu0 %v483
      %661 = vmatmul.mubr.bf16.gmra.mrb[0].mxu0 %v482
      %v662 = vpop.f32.mrb[0].mxu0
      %v663 = vadd.f32 0.0, %v662
      %v664 = vpop.f32.mrb[0].mxu0
      %v665 = vpop.f32.mrb[0].mxu0
      %v666 = vadd.f32 0.0, %v665
      %v667 = vpop.f32.mrb[0].mxu0
      %668 = vmatprep.mubr.bf16.mxu0 %v485
      %669 = vmatmul.mubr.bf16.gmra.mrb[0].mxu0 %v484
      %v670 = vpop.f32.mrb[0].mxu0
      %v671 = vadd.f32 0.0, %v670
      %v672 = vpop.f32.mrb[0].mxu0
      %v673 = vpop.f32.mrb[0].mxu0
      %v674 = vadd.f32 0.0, %v673
      %v675 = vpop.f32.mrb[0].mxu0
      %676 = vmatprep.mubr.bf16.mxu0 %v487
      %677 = vmatmul.mubr.bf16.gmra.mrb[0].mxu0 %v486
      %v678 = vpop.f32.mrb[0].mxu0
      %v679 = vadd.f32 0.0, %v678
      %v680 = vpop.f32.mrb[0].mxu0
      %v681 = vpop.f32.mrb[0].mxu0
      %v682 = vadd.f32 0.0, %v681
      %v683 = vpop.f32.mrb[0].mxu0
      %684 = vmatprep.mubr.bf16.mxu0 %v489
      %685 = vmatmul.mubr.bf16.gmra.mrb[0].mxu0 %v488
      %v686 = vpop.f32.mrb[0].mxu0
      %v687 = vadd.f32 0.0, %v686
      %v688 = vpop.f32.mrb[0].mxu0
      %v689 = vpop.f32.mrb[0].mxu0
      %v690 = vadd.f32 0.0, %v689
      %v691 = vpop.f32.mrb[0].mxu0
      %692 = vmatprep.mubr.bf16.mxu0 %v491
      %693 = vmatmul.mubr.bf16.gmra.mrb[0].mxu0 %v490
      %v694 = vpop.f32.mrb[0].mxu0
      %v695 = vadd.f32 0.0, %v694
      %v696 = vpop.f32.mrb[0].mxu0
      %v697 = vpop.f32.mrb[0].mxu0
      %v698 = vadd.f32 0.0, %v697
      %v699 = vpop.f32.mrb[0].mxu0
      %700 = vdwg.mxu0
      %v701 = vadd.f32 %v360, %v639
      %v702 = vadd.f32 %v361, %v642
      %v703 = vadd.f32 %v362, %v647
      %v704 = vadd.f32 %v363, %v650
      %v705 = vadd.f32 %v364, %v655
      %v706 = vadd.f32 %v365, %v658
      %v707 = vadd.f32 %v366, %v663
      %v708 = vadd.f32 %v367, %v666
      %v709 = vadd.f32 %v368, %v671
      %v710 = vadd.f32 %v369, %v674
      %v711 = vadd.f32 %v370, %v679
      %v712 = vadd.f32 %v371, %v682
      %v713 = vadd.f32 %v372, %v687
      %v714 = vadd.f32 %v373, %v690
      %v715 = vadd.f32 %v374, %v695
      %v716 = vadd.f32 %v375, %v698
      %vm717 = vcmask 523264
      %718 = vst.msk [vmem:[#allocation2] sm:$0xff] %vm717, %v701
      %719 = vst.msk [vmem:[#allocation2 + $0x8] sm:$0xff] %vm717, %v702
      %720 = vst.msk [vmem:[#allocation2 + $0x10] sm:$0xff] %vm717, %v703
      %721 = vst.msk [vmem:[#allocation2 + $0x18] sm:$0xff] %vm717, %v704
      %722 = vst.msk [vmem:[#allocation2 + $0x20] sm:$0xff] %vm717, %v705
      %723 = vst.msk [vmem:[#allocation2 + $0x28] sm:$0xff] %vm717, %v706
      %724 = vst.msk [vmem:[#allocation2 + $0x30] sm:$0xff] %vm717, %v707
      %725 = vst.msk [vmem:[#allocation2 + $0x38] sm:$0xff] %vm717, %v708
      %726 = vst.msk [vmem:[#allocation2 + $0x40] sm:$0xff] %vm717, %v709
      %727 = vst.msk [vmem:[#allocation2 + $0x48] sm:$0xff] %vm717, %v710
      %728 = vst.msk [vmem:[#allocation2 + $0x50] sm:$0xff] %vm717, %v711
      %729 = vst.msk [vmem:[#allocation2 + $0x58] sm:$0xff] %vm717, %v712
      %730 = vst.msk [vmem:[#allocation2 + $0x60] sm:$0xff] %vm717, %v713
      %731 = vst.msk [vmem:[#allocation2 + $0x68] sm:$0xff] %vm717, %v714
      %732 = vst.msk [vmem:[#allocation2 + $0x70] sm:$0xff] %vm717, %v715
      %733 = vst.msk [vmem:[#allocation2 + $0x78] sm:$0xff] %vm717, %v716
      // Predicated region
      $region53: #{point_transformer_net.11} parent=47 // pred_check
        %p734 = pneg %p338
      $region54: #{point_transformer_net.11} parent=47 // pred_check_branch
        %736 = sbr.rel (%p734) target = $region56
      $region55: #{point_transformer_net.11} parent=47 // pred_region
        %v737 = vld [vmem:[#allocation2] sm:$0xff]
        %v738 = vld [vmem:[#allocation2 + $0x8] sm:$0xff]
        %v739 = vld [vmem:[#allocation2 + $0x10] sm:$0xff]
        %v740 = vld [vmem:[#allocation2 + $0x18] sm:$0xff]
        %v741 = vld [vmem:[#allocation2 + $0x20] sm:$0xff]
        %v742 = vld [vmem:[#allocation2 + $0x28] sm:$0xff]
        %v743 = vld [vmem:[#allocation2 + $0x30] sm:$0xff]
        %v744 = vld [vmem:[#allocation2 + $0x38] sm:$0xff]
        %v745 = vld [vmem:[#allocation2 + $0x40] sm:$0xff]
        %v746 = vld [vmem:[#allocation2 + $0x48] sm:$0xff]
        %v747 = vld [vmem:[#allocation2 + $0x50] sm:$0xff]
        %v748 = vld [vmem:[#allocation2 + $0x58] sm:$0xff]
        %v749 = vld [vmem:[#allocation2 + $0x60] sm:$0xff]
        %v750 = vld [vmem:[#allocation2 + $0x68] sm:$0xff]
        %v751 = vld [vmem:[#allocation2 + $0x70] sm:$0xff]
        %v752 = vld [vmem:[#allocation2 + $0x78] sm:$0xff]
        %v753 = vmax.f32 %v737, 1e-20
        %v754 = vmax.f32 %v738, 1e-20
        %v755 = vmax.f32 %v739, 1e-20
        %v756 = vmax.f32 %v740, 1e-20
        %v757 = vmax.f32 %v741, 1e-20
        %v758 = vmax.f32 %v742, 1e-20
        %v759 = vmax.f32 %v743, 1e-20
        %v760 = vmax.f32 %v744, 1e-20
        %v761 = vmax.f32 %v745, 1e-20
        %v762 = vmax.f32 %v746, 1e-20
        %v763 = vmax.f32 %v747, 1e-20
        %v764 = vmax.f32 %v748, 1e-20
        %v765 = vmax.f32 %v749, 1e-20
        %v766 = vmax.f32 %v750, 1e-20
        %v767 = vmax.f32 %v751, 1e-20
        %v768 = vmax.f32 %v752, 1e-20
        %v769 = vrcp.pop %v753
        %v770 = vrcp.pop %v754
        %v771 = vrcp.pop %v755
        %v772 = vrcp.pop %v756
        %v773 = vrcp.pop %v757
        %v774 = vrcp.pop %v758
        %v775 = vrcp.pop %v759
        %v776 = vrcp.pop %v760
        %v777 = vrcp.pop %v761
        %v778 = vrcp.pop %v762
        %v779 = vrcp.pop %v763
        %v780 = vrcp.pop %v764
        %v781 = vrcp.pop %v765
        %v782 = vrcp.pop %v766
        %v783 = vrcp.pop %v767
        %v784 = vrcp.pop %v768
        %v785 = vld [vmem:[%s329] sm:$0xff]
        %v786 = vld [vmem:[%s329 + $0x8] sm:$0xff]
        %v787 = vld [vmem:[%s329 + $0x10] sm:$0xff]
        %v788 = vld [vmem:[%s329 + $0x18] sm:$0xff]
        %v789 = vld [vmem:[%s329 + $0x20] sm:$0xff]
        %v790 = vld [vmem:[%s329 + $0x28] sm:$0xff]
        %v791 = vld [vmem:[%s329 + $0x30] sm:$0xff]
        %v792 = vld [vmem:[%s329 + $0x38] sm:$0xff]
        %v793 = vld [vmem:[%s329 + $0x40] sm:$0xff]
        %v794 = vld [vmem:[%s329 + $0x48] sm:$0xff]
        %v795 = vld [vmem:[%s329 + $0x50] sm:$0xff]
        %v796 = vld [vmem:[%s329 + $0x58] sm:$0xff]
        %v797 = vld [vmem:[%s329 + $0x60] sm:$0xff]
        %v798 = vld [vmem:[%s329 + $0x68] sm:$0xff]
        %v799 = vld [vmem:[%s329 + $0x70] sm:$0xff]
        %v800 = vld [vmem:[%s329 + $0x78] sm:$0xff]
        %817 = vrot.lane.b32.xlu0 %v769, 96
        %v818 = vpop.permute.xlu0 %817
        %819 = vrot.lane.b32.xlu0 %v770, 96
        %v820 = vpop.permute.xlu0 %819
        %821 = vrot.lane.b32.xlu0 %v771, 96
        %v822 = vpop.permute.xlu0 %821
        %823 = vrot.lane.b32.xlu0 %v772, 96
        %v824 = vpop.permute.xlu0 %823
        %825 = vrot.lane.b32.xlu0 %v773, 96
        %v826 = vpop.permute.xlu0 %825
        %827 = vrot.lane.b32.xlu0 %v774, 96
        %v828 = vpop.permute.xlu0 %827
        %829 = vrot.lane.b32.xlu0 %v775, 96
        %v830 = vpop.permute.xlu0 %829
        %831 = vrot.lane.b32.xlu0 %v776, 96
        %v832 = vpop.permute.xlu0 %831
        %833 = vrot.lane.b32.xlu0 %v777, 96
        %v834 = vpop.permute.xlu0 %833
        %835 = vrot.lane.b32.xlu0 %v778, 96
        %v836 = vpop.permute.xlu0 %835
        %837 = vrot.lane.b32.xlu0 %v779, 96
        %v838 = vpop.permute.xlu0 %837
        %839 = vrot.lane.b32.xlu0 %v780, 96
        %v840 = vpop.permute.xlu0 %839
        %841 = vrot.lane.b32.xlu0 %v781, 96
        %v842 = vpop.permute.xlu0 %841
        %843 = vrot.lane.b32.xlu0 %v782, 96
        %v844 = vpop.permute.xlu0 %843
        %845 = vrot.lane.b32.xlu0 %v783, 96
        %v846 = vpop.permute.xlu0 %845
        %847 = vrot.lane.b32.xlu0 %v784, 96
        %v848 = vpop.permute.xlu0 %847
        %v865 = vmul.f32 %v737, %v818
        %v866 = vmul.f32 %v738, %v820
        %v867 = vmul.f32 %v739, %v822
        %v868 = vmul.f32 %v740, %v824
        %v869 = vmul.f32 %v741, %v826
        %v870 = vmul.f32 %v742, %v828
        %v871 = vmul.f32 %v743, %v830
        %v872 = vmul.f32 %v744, %v832
        %v873 = vmul.f32 %v745, %v834
        %v874 = vmul.f32 %v746, %v836
        %v875 = vmul.f32 %v747, %v838
        %v876 = vmul.f32 %v748, %v840
        %v877 = vmul.f32 %v749, %v842
        %v878 = vmul.f32 %v750, %v844
        %v879 = vmul.f32 %v751, %v846
        %v880 = vmul.f32 %v752, %v848
        %v881 = vadd.f32 %v785, %v865
        %v882 = vadd.f32 %v786, %v866
        %v883 = vadd.f32 %v787, %v867
        %v884 = vadd.f32 %v788, %v868
        %v885 = vadd.f32 %v789, %v869
        %v886 = vadd.f32 %v790, %v870
        %v887 = vadd.f32 %v791, %v871
        %v888 = vadd.f32 %v792, %v872
        %v889 = vadd.f32 %v793, %v873
        %v890 = vadd.f32 %v794, %v874
        %v891 = vadd.f32 %v795, %v875
        %v892 = vadd.f32 %v796, %v876
        %v893 = vadd.f32 %v797, %v877
        %v894 = vadd.f32 %v798, %v878
        %v895 = vadd.f32 %v799, %v879
        %v896 = vadd.f32 %v800, %v880
        %v897 = vmax.f32 %v881, 0.0
        %v898 = vmax.f32 %v882, 0.0
        %v899 = vmax.f32 %v883, 0.0
        %v900 = vmax.f32 %v884, 0.0
        %v901 = vmax.f32 %v885, 0.0
        %v902 = vmax.f32 %v886, 0.0
        %v903 = vmax.f32 %v887, 0.0
        %v904 = vmax.f32 %v888, 0.0
        %v905 = vmax.f32 %v889, 0.0
        %v906 = vmax.f32 %v890, 0.0
        %v907 = vmax.f32 %v891, 0.0
        %v908 = vmax.f32 %v892, 0.0
        %v909 = vmax.f32 %v893, 0.0
        %v910 = vmax.f32 %v894, 0.0
        %v911 = vmax.f32 %v895, 0.0
        %v912 = vmax.f32 %v896, 0.0
        %v913 = vld [vmem:[%s3] sm:$0xff]
        %v914 = vld [vmem:[%s3 + $0x8] sm:$0xff]
        %v915 = vld [vmem:[%s3 + $0x10] sm:$0xff]
        %v916 = vld [vmem:[%s3 + $0x18] sm:$0xff]
        %v917 = vld [vmem:[%s4] sm:$0x1]
        %v919 = vlaneseq
        %v920 = vshrl.u32 %v919, 7
        %v921 = vsub.s32 0, %v920
        %v922 = vrot.slane %v917, %v921
        %vm924 = vcmask 261120
        %v926 = vsel %vm924, %v897, 0
        %v929 = vsel %vm924, %v898, 0
        %v932 = vsel %vm924, %v899, 0
        %v935 = vsel %vm924, %v900, 0
        %v938 = vsel %vm924, %v901, 0
        %v941 = vsel %vm924, %v902, 0
        %v944 = vsel %vm924, %v903, 0
        %v947 = vsel %vm924, %v904, 0
        %v950 = vsel %vm924, %v905, 0
        %v953 = vsel %vm924, %v906, 0
        %v956 = vsel %vm924, %v907, 0
        %v959 = vsel %vm924, %v908, 0
        %v962 = vsel %vm924, %v909, 0
        %v965 = vsel %vm924, %v910, 0
        %v968 = vsel %vm924, %v911, 0
        %v971 = vsel %vm924, %v912, 0
        %973 = vmatprep.subr.mxu0 0.0
        %974 = vmatpush1.msra.mxu0 %v913
        %975 = vmatprep.subr.mxu0 0.0
        %976 = vmatpush1.msra.mxu0 %v914
        %977 = vmatprep.subr.mxu0 0.0
        %978 = vmatpush1.msra.mxu0 %v915
        %979 = vmatprep.subr.mxu0 0.0
        %980 = vmatpush1.msra.mxu0 %v916
        %981 = vmatprep.subr.mxu0 0.0
        %982 = vmatpush1.msra.mxu0 0.0
        %983 = vmatprep.subr.mxu0 0.0
        %984 = vmatpush1.msra.mxu0 0.0
        %985 = vmatprep.subr.mxu0 0.0
        %986 = vmatpush1.msra.mxu0 0.0
        %987 = vmatprep.subr.mxu0 0.0
        %988 = vmatpush1.msra.mxu0 0.0
        %989 = vmatprep.subr.mxu0 0.0
        %990 = vmatpush1.msra.mxu0 0.0
        %991 = vmatprep.subr.mxu0 0.0
        %992 = vmatpush1.msra.mxu0 0.0
        %993 = vmatprep.subr.mxu0 0.0
        %994 = vmatpush1.msra.mxu0 0.0
        %995 = vmatprep.subr.mxu0 0.0
        %996 = vmatpush1.msra.mxu0 0.0
        %997 = vmatprep.subr.mxu0 0.0
        %998 = vmatpush1.msra.mxu0 0.0
        %999 = vmatprep.subr.mxu0 0.0
        %1000 = vmatpush1.msra.mxu0 0.0
        %1001 = vmatprep.subr.mxu0 0.0
        %1002 = vmatpush1.msra.mxu0 0.0
        %1003 = vmatprep.subr.mxu0 0.0
        %1004 = vmatpush1.msra.mxu0 0.0
        %1005 = vmatprep.subr.mxu0 0.0
        %1006 = vmatpush1.msra.mxu0 0.0
        %1007 = vmatprep.subr.mxu0 0.0
        %1008 = vmatpush1.msra.mxu0 0.0
        %1009 = vmatprep.subr.mxu0 0.0
        %1010 = vmatpush1.msra.mxu0 0.0
        %1011 = vmatprep.subr.mxu0 0.0
        %1012 = vmatpush1.msra.mxu0 0.0
        %1013 = vmatprep.subr.mxu0 0.0
        %1014 = vmatpush1.msra.mxu0 0.0
        %1015 = vmatprep.subr.mxu0 0.0
        %1016 = vmatpush1.msra.mxu0 0.0
        %1017 = vmatprep.subr.mxu0 0.0
        %1018 = vmatpush1.msra.mxu0 0.0
        %1019 = vmatprep.subr.mxu0 0.0
        %1020 = vmatpush1.msra.mxu0 0.0
        %1021 = vmatprep.subr.mxu0 0.0
        %1022 = vmatpush1.msra.mxu0 0.0
        %1023 = vmatprep.subr.mxu0 0.0
        %1024 = vmatpush1.msra.mxu0 0.0
        %1025 = vmatprep.subr.mxu0 0.0
        %1026 = vmatpush1.msra.mxu0 0.0
        %1027 = vmatprep.subr.mxu0 0.0
        %1028 = vmatpush1.msra.mxu0 0.0
        %1029 = vmatprep.subr.mxu0 0.0
        %1030 = vmatpush1.msra.mxu0 0.0
        %1031 = vmatprep.subr.mxu0 0.0
        %1032 = vmatpush1.msra.mxu0 0.0
        %1033 = vmatprep.subr.mxu0 0.0
        %1034 = vmatpush1.msra.mxu0 0.0
        %1035 = vmatprep.subr.mxu0 0.0
        %1036 = vmatpush1.msra.mxu0 0.0
        %1037 = vmatprep.mubr.f32.mxu0 0.0
        %1038 = vmatmul.mubr.f32.gmra.mrb[0].mxu0 %v926
        %v1039 = vpop.f32.mrb[0].mxu0
        %v1040 = vadd.f32 %v922, %v1039
        %v1041 = vpop.f32.mrb[0].mxu0
        %1042 = vmatprep.mubr.f32.mxu0 0.0
        %1043 = vmatmul.mubr.f32.gmra.mrb[0].mxu0 %v929
        %v1044 = vpop.f32.mrb[0].mxu0
        %v1045 = vadd.f32 %v922, %v1044
        %v1046 = vpop.f32.mrb[0].mxu0
        %1047 = vmatprep.mubr.f32.mxu0 0.0
        %1048 = vmatmul.mubr.f32.gmra.mrb[0].mxu0 %v932
        %v1049 = vpop.f32.mrb[0].mxu0
        %v1050 = vadd.f32 %v922, %v1049
        %v1051 = vpop.f32.mrb[0].mxu0
        %1052 = vmatprep.mubr.f32.mxu0 0.0
        %1053 = vmatmul.mubr.f32.gmra.mrb[0].mxu0 %v935
        %v1054 = vpop.f32.mrb[0].mxu0
        %v1055 = vadd.f32 %v922, %v1054
        %v1056 = vpop.f32.mrb[0].mxu0
        %1057 = vmatprep.mubr.f32.mxu0 0.0
        %1058 = vmatmul.mubr.f32.gmra.mrb[0].mxu0 %v938
        %v1059 = vpop.f32.mrb[0].mxu0
        %v1060 = vadd.f32 %v922, %v1059
        %v1061 = vpop.f32.mrb[0].mxu0
        %1062 = vmatprep.mubr.f32.mxu0 0.0
        %1063 = vmatmul.mubr.f32.gmra.mrb[0].mxu0 %v941
        %v1064 = vpop.f32.mrb[0].mxu0
        %v1065 = vadd.f32 %v922, %v1064
        %v1066 = vpop.f32.mrb[0].mxu0
        %1067 = vmatprep.mubr.f32.mxu0 0.0
        %1068 = vmatmul.mubr.f32.gmra.mrb[0].mxu0 %v944
        %v1069 = vpop.f32.mrb[0].mxu0
        %v1070 = vadd.f32 %v922, %v1069
        %v1071 = vpop.f32.mrb[0].mxu0
        %1072 = vmatprep.mubr.f32.mxu0 0.0
        %1073 = vmatmul.mubr.f32.gmra.mrb[0].mxu0 %v947
        %v1074 = vpop.f32.mrb[0].mxu0
        %v1075 = vadd.f32 %v922, %v1074
        %v1076 = vpop.f32.mrb[0].mxu0
        %1077 = vmatprep.mubr.f32.mxu0 0.0
        %1078 = vmatmul.mubr.f32.gmra.mrb[0].mxu0 %v950
        %v1079 = vpop.f32.mrb[0].mxu0
        %v1080 = vadd.f32 %v922, %v1079
        %v1081 = vpop.f32.mrb[0].mxu0
        %1082 = vmatprep.mubr.f32.mxu0 0.0
        %1083 = vmatmul.mubr.f32.gmra.mrb[0].mxu0 %v953
        %v1084 = vpop.f32.mrb[0].mxu0
        %v1085 = vadd.f32 %v922, %v1084
        %v1086 = vpop.f32.mrb[0].mxu0
        %1087 = vmatprep.mubr.f32.mxu0 0.0
        %1088 = vmatmul.mubr.f32.gmra.mrb[0].mxu0 %v956
        %v1089 = vpop.f32.mrb[0].mxu0
        %v1090 = vadd.f32 %v922, %v1089
        %v1091 = vpop.f32.mrb[0].mxu0
        %1092 = vmatprep.mubr.f32.mxu0 0.0
        %1093 = vmatmul.mubr.f32.gmra.mrb[0].mxu0 %v959
        %v1094 = vpop.f32.mrb[0].mxu0
        %v1095 = vadd.f32 %v922, %v1094
        %v1096 = vpop.f32.mrb[0].mxu0
        %1097 = vmatprep.mubr.f32.mxu0 0.0
        %1098 = vmatmul.mubr.f32.gmra.mrb[0].mxu0 %v962
        %v1099 = vpop.f32.mrb[0].mxu0
        %v1100 = vadd.f32 %v922, %v1099
        %v1101 = vpop.f32.mrb[0].mxu0
        %1102 = vmatprep.mubr.f32.mxu0 0.0
        %1103 = vmatmul.mubr.f32.gmra.mrb[0].mxu0 %v965
        %v1104 = vpop.f32.mrb[0].mxu0
        %v1105 = vadd.f32 %v922, %v1104
        %v1106 = vpop.f32.mrb[0].mxu0
        %1107 = vmatprep.mubr.f32.mxu0 0.0
        %1108 = vmatmul.mubr.f32.gmra.mrb[0].mxu0 %v968
        %v1109 = vpop.f32.mrb[0].mxu0
        %v1110 = vadd.f32 %v922, %v1109
        %v1111 = vpop.f32.mrb[0].mxu0
        %1112 = vmatprep.mubr.f32.mxu0 0.0
        %1113 = vmatmul.mubr.f32.gmra.mrb[0].mxu0 %v971
        %v1114 = vpop.f32.mrb[0].mxu0
        %v1115 = vadd.f32 %v922, %v1114
        %v1116 = vpop.f32.mrb[0].mxu0
        %1117 = vdwg.mxu0
        %v1118 = vmax.f32 %v1040, 0.0
        %v1119 = vmax.f32 %v1045, 0.0
        %v1120 = vmax.f32 %v1050, 0.0
        %v1121 = vmax.f32 %v1055, 0.0
        %v1122 = vmax.f32 %v1060, 0.0
        %v1123 = vmax.f32 %v1065, 0.0
        %v1124 = vmax.f32 %v1070, 0.0
        %v1125 = vmax.f32 %v1075, 0.0
        %v1126 = vmax.f32 %v1080, 0.0
        %v1127 = vmax.f32 %v1085, 0.0
        %v1128 = vmax.f32 %v1090, 0.0
        %v1129 = vmax.f32 %v1095, 0.0
        %v1130 = vmax.f32 %v1100, 0.0
        %v1131 = vmax.f32 %v1105, 0.0
        %v1132 = vmax.f32 %v1110, 0.0
        %v1133 = vmax.f32 %v1115, 0.0
        %v1134 = vld [vmem:[%s5] sm:$0x1]
        %v1136 = vlaneseq
        %v1137 = vshrl.u32 %v1136, 7
        %v1138 = vsub.s32 0, %v1137
        %v1139 = vrot.slane %v1134, %v1138
        %v1141 = vmul.f32 %v1118, %v1139
        %v1142 = vmul.f32 %v1119, %v1139
        %v1143 = vmul.f32 %v1120, %v1139
        %v1144 = vmul.f32 %v1121, %v1139
        %v1145 = vmul.f32 %v1122, %v1139
        %v1146 = vmul.f32 %v1123, %v1139
        %v1147 = vmul.f32 %v1124, %v1139
        %v1148 = vmul.f32 %v1125, %v1139
        %v1149 = vmul.f32 %v1126, %v1139
        %v1150 = vmul.f32 %v1127, %v1139
        %v1151 = vmul.f32 %v1128, %v1139
        %v1152 = vmul.f32 %v1129, %v1139
        %v1153 = vmul.f32 %v1130, %v1139
        %v1154 = vmul.f32 %v1131, %v1139
        %v1155 = vmul.f32 %v1132, %v1139
        %v1156 = vmul.f32 %v1133, %v1139
        %vm1157 = vcmask 130048
        %v1158 = vsel %vm1157, %v1141, 0.0
        %1159 = vadd.xlane.f32.xlu0 %v1158
        %v1160 = vpop.xlane.xlu0 %1159
        %v1161 = vsel %vm1157, %v1142, 0.0
        %1162 = vadd.xlane.f32.xlu0 %v1161
        %v1163 = vpop.xlane.xlu0 %1162
        %v1164 = vsel %vm1157, %v1143, 0.0
        %1165 = vadd.xlane.f32.xlu0 %v1164
        %v1166 = vpop.xlane.xlu0 %1165
        %v1167 = vsel %vm1157, %v1144, 0.0
        %1168 = vadd.xlane.f32.xlu0 %v1167
        %v1169 = vpop.xlane.xlu0 %1168
        %v1170 = vsel %vm1157, %v1145, 0.0
        %1171 = vadd.xlane.f32.xlu0 %v1170
        %v1172 = vpop.xlane.xlu0 %1171
        %v1173 = vsel %vm1157, %v1146, 0.0
        %1174 = vadd.xlane.f32.xlu0 %v1173
        %v1175 = vpop.xlane.xlu0 %1174
        %v1176 = vsel %vm1157, %v1147, 0.0
        %1177 = vadd.xlane.f32.xlu0 %v1176
        %v1178 = vpop.xlane.xlu0 %1177
        %v1179 = vsel %vm1157, %v1148, 0.0
        %1180 = vadd.xlane.f32.xlu0 %v1179
        %v1181 = vpop.xlane.xlu0 %1180
        %v1182 = vsel %vm1157, %v1149, 0.0
        %1183 = vadd.xlane.f32.xlu0 %v1182
        %v1184 = vpop.xlane.xlu0 %1183
        %v1185 = vsel %vm1157, %v1150, 0.0
        %1186 = vadd.xlane.f32.xlu0 %v1185
        %v1187 = vpop.xlane.xlu0 %1186
        %v1188 = vsel %vm1157, %v1151, 0.0
        %1189 = vadd.xlane.f32.xlu0 %v1188
        %v1190 = vpop.xlane.xlu0 %1189
        %v1191 = vsel %vm1157, %v1152, 0.0
        %1192 = vadd.xlane.f32.xlu0 %v1191
        %v1193 = vpop.xlane.xlu0 %1192
        %v1194 = vsel %vm1157, %v1153, 0.0
        %1195 = vadd.xlane.f32.xlu0 %v1194
        %v1196 = vpop.xlane.xlu0 %1195
        %v1197 = vsel %vm1157, %v1154, 0.0
        %1198 = vadd.xlane.f32.xlu0 %v1197
        %v1199 = vpop.xlane.xlu0 %1198
        %v1200 = vsel %vm1157, %v1155, 0.0
        %1201 = vadd.xlane.f32.xlu0 %v1200
        %v1202 = vpop.xlane.xlu0 %1201
        %v1203 = vsel %vm1157, %v1156, 0.0
        %1204 = vadd.xlane.f32.xlu0 %v1203
        %v1205 = vpop.xlane.xlu0 %1204
        %v1206 = vld [vmem:[#allocation3] sm:$0x1]
        %v1208 = vlaneseq
        %v1209 = vshrl.u32 %v1208, 7
        %v1210 = vsub.s32 0, %v1209
        %v1211 = vrot.slane %v1206, %v1210
        %v1213 = vadd.f32 %v1160, %v1211
        %v1214 = vadd.f32 %v1163, %v1211
        %v1215 = vadd.f32 %v1166, %v1211
        %v1216 = vadd.f32 %v1169, %v1211
        %v1217 = vadd.f32 %v1172, %v1211
        %v1218 = vadd.f32 %v1175, %v1211
        %v1219 = vadd.f32 %v1178, %v1211
        %v1220 = vadd.f32 %v1181, %v1211
        %v1221 = vadd.f32 %v1184, %v1211
        %v1222 = vadd.f32 %v1187, %v1211
        %v1223 = vadd.f32 %v1190, %v1211
        %v1224 = vadd.f32 %v1193, %v1211
        %v1225 = vadd.f32 %v1196, %v1211
        %v1226 = vadd.f32 %v1199, %v1211
        %v1227 = vadd.f32 %v1202, %v1211
        %v1228 = vadd.f32 %v1205, %v1211
        %vm1229 = vcmask 7168
        %1230 = vst.msk [vmem:[%s335] sm:$0xff] %vm1229, %v1213
        %1231 = vst.msk [vmem:[%s335 + $0x8] sm:$0xff] %vm1229, %v1214
        %1232 = vst.msk [vmem:[%s335 + $0x10] sm:$0xff] %vm1229, %v1215
        %1233 = vst.msk [vmem:[%s335 + $0x18] sm:$0xff] %vm1229, %v1216
        %1234 = vst.msk [vmem:[%s335 + $0x20] sm:$0xff] %vm1229, %v1217
        %1235 = vst.msk [vmem:[%s335 + $0x28] sm:$0xff] %vm1229, %v1218
        %1236 = vst.msk [vmem:[%s335 + $0x30] sm:$0xff] %vm1229, %v1219
        %1237 = vst.msk [vmem:[%s335 + $0x38] sm:$0xff] %vm1229, %v1220
        %1238 = vst.msk [vmem:[%s335 + $0x40] sm:$0xff] %vm1229, %v1221
        %1239 = vst.msk [vmem:[%s335 + $0x48] sm:$0xff] %vm1229, %v1222
        %1240 = vst.msk [vmem:[%s335 + $0x50] sm:$0xff] %vm1229, %v1223
        %1241 = vst.msk [vmem:[%s335 + $0x58] sm:$0xff] %vm1229, %v1224
        %1242 = vst.msk [vmem:[%s335 + $0x60] sm:$0xff] %vm1229, %v1225
        %1243 = vst.msk [vmem:[%s335 + $0x68] sm:$0xff] %vm1229, %v1226
        %1244 = vst.msk [vmem:[%s335 + $0x70] sm:$0xff] %vm1229, %v1227
        %1245 = vst.msk [vmem:[%s335 + $0x78] sm:$0xff] %vm1229, %v1228
      $region56: #{point_transformer_net.11} parent=47 // pred_fallthru
        _
      %s1246 = smul.u32 16, %s24
      %p1247 = scmp.lt.s32.totalorder %s1246, 31
      %s1248 = scalar_select %p1247, %s1246, 31
      %s1249 = smul.addr %s1248, 8
      %s1250 = scalar_lea.vmem %s7, %s1249
      // Predicated region
      $region57: #{point_transformer_net.11} parent=47 // pred_check
        %p1251 = pneg %p209
      $region58: #{point_transformer_net.11} parent=47 // pred_check_branch
        %1253 = sbr.rel (%p1251) target = $region60
      $region59: #{point_transformer_net.11} parent=47 // pred_region
        %s1254 = smul.u32 16, %s24
      $region60: #{point_transformer_net.11} parent=47 // pred_fallthru
        _
    $region48: #{point_transformer_net.11} parent=5 // pred_fallthru
      _
    %p1255 = scmp.le.s32.totalorder 2, %s15
    // Predicated region
    $region61: #{point_transformer_net.11} parent=5 // pred_check
      %p1256 = pneg %p1255
    $region62: #{point_transformer_net.11} parent=5 // pred_check_branch
      %1258 = sbr.rel (%p1256) target = $region64
    $region63: #{point_transformer_net.11} parent=5 // pred_region
      %s1259 = ssub.s32 %s15, 2
      // Predicated region
      $region65: #{point_transformer_net.11} parent=63 // pred_check
        %p1260 = pneg %p215
      $region66: #{point_transformer_net.11} parent=63 // pred_check_branch
        %1262 = sbr.rel (%p1260) target = $region68
      $region67: #{point_transformer_net.11} parent=63 // pred_region
        %s1263 = smul.u32 16, %s26
        %p1264 = scmp.lt.s32.totalorder %s1263, 31
        %s1265 = scalar_select %p1264, %s1263, 31
        %s1266 = smul.addr %s1265, 8
        %s1267 = scalar_lea.vmem %s7, %s1266
      $region68: #{point_transformer_net.11} parent=63 // pred_fallthru
        _
    $region64: #{point_transformer_net.11} parent=5 // pred_fallthru
      _
  $region6: #{point_transformer_net.11} parent=0 // loop_footer
    %s19 = sadd.s32 1, %s15
  $region7: #{point_transformer_net.11} parent=0 // loop_footer_branch
    %14 = sbr.rel target = $region3
  $region8: #{point_transformer_net.11} parent=0 // loop_exit
    _

// kernel: point_transformer_net.6
$region0: #{point_transformer_net.6}
  #allocation0 [shape = 'u32[]', space=smem, size = 0x4, offset = 0x4, fixed_abs, tag = 'smem constant byte address 0x4 - core index']
  #allocation1 [shape = 'u32[144,128]{1,0:T(1,128)}', space=vmem, size = 0x12000, scoped, tag = 'internal scratch']
  %s0 = inlined_call_operand.vmem [shape: f32[256,3], index: 0, kind: input, shape index: {}]
  %s1 = inlined_call_operand.vmem [shape: f32[256,3], index: 1, kind: input, shape index: {}]
  %s2 = inlined_call_operand.vmem [shape: f32[3,96], index: 2, kind: input, shape index: {}]
  %s3 = inlined_call_operand.vmem [shape: f32[3,96], index: 3, kind: input, shape index: {}]
  %s4 = inlined_call_operand.vmem [shape: f32[1,32], index: 4, kind: input, shape index: {}]
  %s5 = inlined_call_operand.vmem [shape: f32[1,32], index: 5, kind: input, shape index: {}]
  %s6 = inlined_call_operand.vmem [shape: bf16[256,64], index: 6, kind: output, shape index: {0}]
  %s7 = inlined_call_operand.vmem [shape: f32[256,32], index: 7, kind: output, shape index: {1}]
  %8 = xla_tuple %s6, %s7
  %s9 = sld [smem:[#allocation0]]
  $region42: #{point_transformer_net.6} parent=0
    _
  %s11 = ssub.s32 1, %s9
  %s12 = scalar_select 0, %s11, %s9
  // Predicated region
  $region2: #{point_transformer_net.6} parent=0 // pred_check
    _
  $region3: #{point_transformer_net.6} parent=0 // pred_check_branch
    %14 = sbr.rel (0) target = $region5
  $region4: #{point_transformer_net.6} parent=0 // pred_region
    _
  $region5: #{point_transformer_net.6} parent=0 // pred_fallthru
    _
  // Predicated region
  $region6: #{point_transformer_net.6} parent=0 // pred_check
    _
  $region7: #{point_transformer_net.6} parent=0 // pred_check_branch
    %16 = sbr.rel (0) target = $region9
  $region8: #{point_transformer_net.6} parent=0 // pred_region
    _
  $region9: #{point_transformer_net.6} parent=0 // pred_fallthru
    _
  // Predicated region
  $region10: #{point_transformer_net.6} parent=0 // pred_check
    _
  $region11: #{point_transformer_net.6} parent=0 // pred_check_branch
    %18 = sbr.rel (0) target = $region13
  $region12: #{point_transformer_net.6} parent=0 // pred_region
    _
  $region13: #{point_transformer_net.6} parent=0 // pred_fallthru
    _
  // Predicated region
  $region14: #{point_transformer_net.6} parent=0 // pred_check
    _
  $region15: #{point_transformer_net.6} parent=0 // pred_check_branch
    %20 = sbr.rel (0) target = $region17
  $region16: #{point_transformer_net.6} parent=0 // pred_region
    _
  $region17: #{point_transformer_net.6} parent=0 // pred_fallthru
    _
  // Predicated region
  $region18: #{point_transformer_net.6} parent=0 // pred_check
    _
  $region19: #{point_transformer_net.6} parent=0 // pred_check_branch
    %22 = sbr.rel (0) target = $region21
  $region20: #{point_transformer_net.6} parent=0 // pred_region
    _
  $region21: #{point_transformer_net.6} parent=0 // pred_fallthru
    _
  // Predicated region
  $region22: #{point_transformer_net.6} parent=0 // pred_check
    _
  $region23: #{point_transformer_net.6} parent=0 // pred_check_branch
    %24 = sbr.rel (0) target = $region25
  $region24: #{point_transformer_net.6} parent=0 // pred_region
    _
  $region25: #{point_transformer_net.6} parent=0 // pred_fallthru
    _
  %v25 = vld [vmem:[%s0] sm:$0xff]
  %v26 = vld [vmem:[%s0 + $0x8] sm:$0xff]
  %v27 = vld [vmem:[%s0 + $0x10] sm:$0xff]
  %v28 = vld [vmem:[%s0 + $0x18] sm:$0xff]
  %v29 = vld [vmem:[%s0 + $0x20] sm:$0xff]
  %v30 = vld [vmem:[%s0 + $0x28] sm:$0xff]
  %v31 = vld [vmem:[%s0 + $0x30] sm:$0xff]
  %v32 = vld [vmem:[%s0 + $0x38] sm:$0xff]
  %v33 = vld [vmem:[%s0 + $0x40] sm:$0xff]
  %v34 = vld [vmem:[%s0 + $0x48] sm:$0xff]
  %v35 = vld [vmem:[%s0 + $0x50] sm:$0xff]
  %v36 = vld [vmem:[%s0 + $0x58] sm:$0xff]
  %v37 = vld [vmem:[%s0 + $0x60] sm:$0xff]
  %v38 = vld [vmem:[%s0 + $0x68] sm:$0xff]
  %v39 = vld [vmem:[%s0 + $0x70] sm:$0xff]
  %v40 = vld [vmem:[%s0 + $0x78] sm:$0xff]
  %v41 = vld [vmem:[%s0 + $0x80] sm:$0xff]
  %v42 = vld [vmem:[%s0 + $0x88] sm:$0xff]
  %v43 = vld [vmem:[%s0 + $0x90] sm:$0xff]
  %v44 = vld [vmem:[%s0 + $0x98] sm:$0xff]
  %v45 = vld [vmem:[%s0 + $0xa0] sm:$0xff]
  %v46 = vld [vmem:[%s0 + $0xa8] sm:$0xff]
  %v47 = vld [vmem:[%s0 + $0xb0] sm:$0xff]
  %v48 = vld [vmem:[%s0 + $0xb8] sm:$0xff]
  %v49 = vld [vmem:[%s0 + $0xc0] sm:$0xff]
  %v50 = vld [vmem:[%s0 + $0xc8] sm:$0xff]
  %v51 = vld [vmem:[%s0 + $0xd0] sm:$0xff]
  %v52 = vld [vmem:[%s0 + $0xd8] sm:$0xff]
  %v53 = vld [vmem:[%s0 + $0xe0] sm:$0xff]
  %v54 = vld [vmem:[%s0 + $0xe8] sm:$0xff]
  %v55 = vld [vmem:[%s0 + $0xf0] sm:$0xff]
  %v56 = vld [vmem:[%s0 + $0xf8] sm:$0xff]
  %v57 = vld [vmem:[%s2] sm:$0x7]
  %v58 = vld [vmem:[%s1] sm:$0xff]
  %v59 = vld [vmem:[%s1 + $0x8] sm:$0xff]
  %v60 = vld [vmem:[%s1 + $0x10] sm:$0xff]
  %v61 = vld [vmem:[%s1 + $0x18] sm:$0xff]
  %v62 = vld [vmem:[%s1 + $0x20] sm:$0xff]
  %v63 = vld [vmem:[%s1 + $0x28] sm:$0xff]
  %v64 = vld [vmem:[%s1 + $0x30] sm:$0xff]
  %v65 = vld [vmem:[%s1 + $0x38] sm:$0xff]
  %v66 = vld [vmem:[%s1 + $0x40] sm:$0xff]
  %v67 = vld [vmem:[%s1 + $0x48] sm:$0xff]
  %v68 = vld [vmem:[%s1 + $0x50] sm:$0xff]
  %v69 = vld [vmem:[%s1 + $0x58] sm:$0xff]
  %v70 = vld [vmem:[%s1 + $0x60] sm:$0xff]
  %v71 = vld [vmem:[%s1 + $0x68] sm:$0xff]
  %v72 = vld [vmem:[%s1 + $0x70] sm:$0xff]
  %v73 = vld [vmem:[%s1 + $0x78] sm:$0xff]
  %v74 = vld [vmem:[%s1 + $0x80] sm:$0xff]
  %v75 = vld [vmem:[%s1 + $0x88] sm:$0xff]
  %v76 = vld [vmem:[%s1 + $0x90] sm:$0xff]
  %v77 = vld [vmem:[%s1 + $0x98] sm:$0xff]
  %v78 = vld [vmem:[%s1 + $0xa0] sm:$0xff]
  %v79 = vld [vmem:[%s1 + $0xa8] sm:$0xff]
  %v80 = vld [vmem:[%s1 + $0xb0] sm:$0xff]
  %v81 = vld [vmem:[%s1 + $0xb8] sm:$0xff]
  %v82 = vld [vmem:[%s1 + $0xc0] sm:$0xff]
  %v83 = vld [vmem:[%s1 + $0xc8] sm:$0xff]
  %v84 = vld [vmem:[%s1 + $0xd0] sm:$0xff]
  %v85 = vld [vmem:[%s1 + $0xd8] sm:$0xff]
  %v86 = vld [vmem:[%s1 + $0xe0] sm:$0xff]
  %v87 = vld [vmem:[%s1 + $0xe8] sm:$0xff]
  %v88 = vld [vmem:[%s1 + $0xf0] sm:$0xff]
  %v89 = vld [vmem:[%s1 + $0xf8] sm:$0xff]
  %v90 = vld [vmem:[%s3] sm:$0x7]
  %vm91 = vcmask 23552
  %v93 = vsel %vm91, %v58, 0
  %v96 = vsel %vm91, %v59, 0
  %v99 = vsel %vm91, %v60, 0
  %v102 = vsel %vm91, %v61, 0
  %v105 = vsel %vm91, %v62, 0
  %v108 = vsel %vm91, %v63, 0
  %v111 = vsel %vm91, %v64, 0
  %v114 = vsel %vm91, %v65, 0
  %v117 = vsel %vm91, %v66, 0
  %v120 = vsel %vm91, %v67, 0
  %v123 = vsel %vm91, %v68, 0
  %v126 = vsel %vm91, %v69, 0
  %v129 = vsel %vm91, %v70, 0
  %v132 = vsel %vm91, %v71, 0
  %v135 = vsel %vm91, %v72, 0
  %v138 = vsel %vm91, %v73, 0
  %v141 = vsel %vm91, %v74, 0
  %v144 = vsel %vm91, %v75, 0
  %v147 = vsel %vm91, %v76, 0
  %v150 = vsel %vm91, %v77, 0
  %v153 = vsel %vm91, %v78, 0
  %v156 = vsel %vm91, %v79, 0
  %v159 = vsel %vm91, %v80, 0
  %v162 = vsel %vm91, %v81, 0
  %v165 = vsel %vm91, %v82, 0
  %v168 = vsel %vm91, %v83, 0
  %v171 = vsel %vm91, %v84, 0
  %v174 = vsel %vm91, %v85, 0
  %v177 = vsel %vm91, %v86, 0
  %v180 = vsel %vm91, %v87, 0
  %v183 = vsel %vm91, %v88, 0
  %v186 = vsel %vm91, %v89, 0
  %vm188 = vcmask 1042432
  %v190 = vsel %vm188, %v90, 0
  %192 = vmatprep.subr.mxu0 0.0
  %193 = vmatpush1.msra.mxu0 %v190
  %194 = vmatprep.subr.mxu0 0.0
  %195 = vmatpush1.msra.mxu0 0.0
  %196 = vmatprep.subr.mxu0 0.0
  %197 = vmatpush1.msra.mxu0 0.0
  %198 = vmatprep.subr.mxu0 0.0
  %199 = vmatpush1.msra.mxu0 0.0
  %200 = vmatprep.subr.mxu0 0.0
  %201 = vmatpush1.msra.mxu0 0.0
  %202 = vmatprep.subr.mxu0 0.0
  %203 = vmatpush1.msra.mxu0 0.0
  %204 = vmatprep.subr.mxu0 0.0
  %205 = vmatpush1.msra.mxu0 0.0
  %206 = vmatprep.subr.mxu0 0.0
  %207 = vmatpush1.msra.mxu0 0.0
  %208 = vmatprep.subr.mxu0 0.0
  %209 = vmatpush1.msra.mxu0 0.0
  %210 = vmatprep.subr.mxu0 0.0
  %211 = vmatpush1.msra.mxu0 0.0
  %212 = vmatprep.subr.mxu0 0.0
  %213 = vmatpush1.msra.mxu0 0.0
  %214 = vmatprep.subr.mxu0 0.0
  %215 = vmatpush1.msra.mxu0 0.0
  %216 = vmatprep.subr.mxu0 0.0
  %217 = vmatpush1.msra.mxu0 0.0
  %218 = vmatprep.subr.mxu0 0.0
  %219 = vmatpush1.msra.mxu0 0.0
  %220 = vmatprep.subr.mxu0 0.0
  %221 = vmatpush1.msra.mxu0 0.0
  %222 = vmatprep.subr.mxu0 0.0
  %223 = vmatpush1.msra.mxu0 0.0
  %224 = vmatprep.subr.mxu0 0.0
  %225 = vmatpush1.msra.mxu0 0.0
  %226 = vmatprep.subr.mxu0 0.0
  %227 = vmatpush1.msra.mxu0 0.0
  %228 = vmatprep.subr.mxu0 0.0
  %229 = vmatpush1.msra.mxu0 0.0
  %230 = vmatprep.subr.mxu0 0.0
  %231 = vmatpush1.msra.mxu0 0.0
  %232 = vmatprep.subr.mxu0 0.0
  %233 = vmatpush1.msra.mxu0 0.0
  %234 = vmatprep.subr.mxu0 0.0
  %235 = vmatpush1.msra.mxu0 0.0
  %236 = vmatprep.subr.mxu0 0.0
  %237 = vmatpush1.msra.mxu0 0.0
  %238 = vmatprep.subr.mxu0 0.0
  %239 = vmatpush1.msra.mxu0 0.0
  %240 = vmatprep.subr.mxu0 0.0
  %241 = vmatpush1.msra.mxu0 0.0
  %242 = vmatprep.subr.mxu0 0.0
  %243 = vmatpush1.msra.mxu0 0.0
  %244 = vmatprep.subr.mxu0 0.0
  %245 = vmatpush1.msra.mxu0 0.0
  %246 = vmatprep.subr.mxu0 0.0
  %247 = vmatpush1.msra.mxu0 0.0
  %248 = vmatprep.subr.mxu0 0.0
  %249 = vmatpush1.msra.mxu0 0.0
  %250 = vmatprep.subr.mxu0 0.0
  %251 = vmatpush1.msra.mxu0 0.0
  %252 = vmatprep.subr.mxu0 0.0
  %253 = vmatpush1.msra.mxu0 0.0
  %254 = vmatprep.subr.mxu0 0.0
  %255 = vmatpush1.msra.mxu0 0.0
  %256 = vmatprep.mubr.f32.mxu0 0.0
  %257 = vmatmul.mubr.f32.gmra.mrb[0].mxu0 %v93
  %v258 = vpop.f32.mrb[0].mxu0
  %v259 = vadd.f32 0.0, %v258
  %v260 = vpop.f32.mrb[0].mxu0
  %261 = vmatprep.mubr.f32.mxu0 0.0
  %262 = vmatmul.mubr.f32.gmra.mrb[0].mxu0 %v96
  %v263 = vpop.f32.mrb[0].mxu0
  %v264 = vadd.f32 0.0, %v263
  %v265 = vpop.f32.mrb[0].mxu0
  %266 = vmatprep.mubr.f32.mxu0 0.0
  %267 = vmatmul.mubr.f32.gmra.mrb[0].mxu0 %v99
  %v268 = vpop.f32.mrb[0].mxu0
  %v269 = vadd.f32 0.0, %v268
  %v270 = vpop.f32.mrb[0].mxu0
  %271 = vmatprep.mubr.f32.mxu0 0.0
  %272 = vmatmul.mubr.f32.gmra.mrb[0].mxu0 %v102
  %v273 = vpop.f32.mrb[0].mxu0
  %v274 = vadd.f32 0.0, %v273
  %v275 = vpop.f32.mrb[0].mxu0
  %276 = vmatprep.mubr.f32.mxu0 0.0
  %277 = vmatmul.mubr.f32.gmra.mrb[0].mxu0 %v105
  %v278 = vpop.f32.mrb[0].mxu0
  %v279 = vadd.f32 0.0, %v278
  %v280 = vpop.f32.mrb[0].mxu0
  %281 = vmatprep.mubr.f32.mxu0 0.0
  %282 = vmatmul.mubr.f32.gmra.mrb[0].mxu0 %v108
  %v283 = vpop.f32.mrb[0].mxu0
  %v284 = vadd.f32 0.0, %v283
  %v285 = vpop.f32.mrb[0].mxu0
  %286 = vmatprep.mubr.f32.mxu0 0.0
  %287 = vmatmul.mubr.f32.gmra.mrb[0].mxu0 %v111
  %v288 = vpop.f32.mrb[0].mxu0
  %v289 = vadd.f32 0.0, %v288
  %v290 = vpop.f32.mrb[0].mxu0
  %291 = vmatprep.mubr.f32.mxu0 0.0
  %292 = vmatmul.mubr.f32.gmra.mrb[0].mxu0 %v114
  %v293 = vpop.f32.mrb[0].mxu0
  %v294 = vadd.f32 0.0, %v293
  %v295 = vpop.f32.mrb[0].mxu0
  %296 = vmatprep.mubr.f32.mxu0 0.0
  %297 = vmatmul.mubr.f32.gmra.mrb[0].mxu0 %v117
  %v298 = vpop.f32.mrb[0].mxu0
  %v299 = vadd.f32 0.0, %v298
  %v300 = vpop.f32.mrb[0].mxu0
  %301 = vmatprep.mubr.f32.mxu0 0.0
  %302 = vmatmul.mubr.f32.gmra.mrb[0].mxu0 %v120
  %v303 = vpop.f32.mrb[0].mxu0
  %v304 = vadd.f32 0.0, %v303
  %v305 = vpop.f32.mrb[0].mxu0
  %306 = vmatprep.mubr.f32.mxu0 0.0
  %307 = vmatmul.mubr.f32.gmra.mrb[0].mxu0 %v123
  %v308 = vpop.f32.mrb[0].mxu0
  %v309 = vadd.f32 0.0, %v308
  %v310 = vpop.f32.mrb[0].mxu0
  %311 = vmatprep.mubr.f32.mxu0 0.0
  %312 = vmatmul.mubr.f32.gmra.mrb[0].mxu0 %v126
  %v313 = vpop.f32.mrb[0].mxu0
  %v314 = vadd.f32 0.0, %v313
  %v315 = vpop.f32.mrb[0].mxu0
  %316 = vmatprep.mubr.f32.mxu0 0.0
  %317 = vmatmul.mubr.f32.gmra.mrb[0].mxu0 %v129
  %v318 = vpop.f32.mrb[0].mxu0
  %v319 = vadd.f32 0.0, %v318
  %v320 = vpop.f32.mrb[0].mxu0
  %321 = vmatprep.mubr.f32.mxu0 0.0
  %322 = vmatmul.mubr.f32.gmra.mrb[0].mxu0 %v132
  %v323 = vpop.f32.mrb[0].mxu0
  %v324 = vadd.f32 0.0, %v323
  %v325 = vpop.f32.mrb[0].mxu0
  %326 = vmatprep.mubr.f32.mxu0 0.0
  %327 = vmatmul.mubr.f32.gmra.mrb[0].mxu0 %v135
  %v328 = vpop.f32.mrb[0].mxu0
  %v329 = vadd.f32 0.0, %v328
  %v330 = vpop.f32.mrb[0].mxu0
  %331 = vmatprep.mubr.f32.mxu0 0.0
  %332 = vmatmul.mubr.f32.gmra.mrb[0].mxu0 %v138
  %v333 = vpop.f32.mrb[0].mxu0
  %v334 = vadd.f32 0.0, %v333
  %v335 = vpop.f32.mrb[0].mxu0
  %336 = vmatprep.mubr.f32.mxu0 0.0
  %337 = vmatmul.mubr.f32.gmra.mrb[0].mxu0 %v141
  %v338 = vpop.f32.mrb[0].mxu0
  %v339 = vadd.f32 0.0, %v338
  %v340 = vpop.f32.mrb[0].mxu0
  %341 = vmatprep.mubr.f32.mxu0 0.0
  %342 = vmatmul.mubr.f32.gmra.mrb[0].mxu0 %v144
  %v343 = vpop.f32.mrb[0].mxu0
  %v344 = vadd.f32 0.0, %v343
  %v345 = vpop.f32.mrb[0].mxu0
  %346 = vmatprep.mubr.f32.mxu0 0.0
  %347 = vmatmul.mubr.f32.gmra.mrb[0].mxu0 %v147
  %v348 = vpop.f32.mrb[0].mxu0
  %v349 = vadd.f32 0.0, %v348
  %v350 = vpop.f32.mrb[0].mxu0
  %351 = vmatprep.mubr.f32.mxu0 0.0
  %352 = vmatmul.mubr.f32.gmra.mrb[0].mxu0 %v150
  %v353 = vpop.f32.mrb[0].mxu0
  %v354 = vadd.f32 0.0, %v353
  %v355 = vpop.f32.mrb[0].mxu0
  %356 = vmatprep.mubr.f32.mxu0 0.0
  %357 = vmatmul.mubr.f32.gmra.mrb[0].mxu0 %v153
  %v358 = vpop.f32.mrb[0].mxu0
  %v359 = vadd.f32 0.0, %v358
  %v360 = vpop.f32.mrb[0].mxu0
  %361 = vmatprep.mubr.f32.mxu0 0.0
  %362 = vmatmul.mubr.f32.gmra.mrb[0].mxu0 %v156
  %v363 = vpop.f32.mrb[0].mxu0
  %v364 = vadd.f32 0.0, %v363
  %v365 = vpop.f32.mrb[0].mxu0
  %366 = vmatprep.mubr.f32.mxu0 0.0
  %367 = vmatmul.mubr.f32.gmra.mrb[0].mxu0 %v159
  %v368 = vpop.f32.mrb[0].mxu0
  %v369 = vadd.f32 0.0, %v368
  %v370 = vpop.f32.mrb[0].mxu0
  %371 = vmatprep.mubr.f32.mxu0 0.0
  %372 = vmatmul.mubr.f32.gmra.mrb[0].mxu0 %v162
  %v373 = vpop.f32.mrb[0].mxu0
  %v374 = vadd.f32 0.0, %v373
  %v375 = vpop.f32.mrb[0].mxu0
  %376 = vmatprep.mubr.f32.mxu0 0.0
  %377 = vmatmul.mubr.f32.gmra.mrb[0].mxu0 %v165
  %v378 = vpop.f32.mrb[0].mxu0
  %v379 = vadd.f32 0.0, %v378
  %v380 = vpop.f32.mrb[0].mxu0
  %381 = vmatprep.mubr.f32.mxu0 0.0
  %382 = vmatmul.mubr.f32.gmra.mrb[0].mxu0 %v168
  %v383 = vpop.f32.mrb[0].mxu0
  %v384 = vadd.f32 0.0, %v383
  %v385 = vpop.f32.mrb[0].mxu0
  %386 = vmatprep.mubr.f32.mxu0 0.0
  %387 = vmatmul.mubr.f32.gmra.mrb[0].mxu0 %v171
  %v388 = vpop.f32.mrb[0].mxu0
  %v389 = vadd.f32 0.0, %v388
  %v390 = vpop.f32.mrb[0].mxu0
  %391 = vmatprep.mubr.f32.mxu0 0.0
  %392 = vmatmul.mubr.f32.gmra.mrb[0].mxu0 %v174
  %v393 = vpop.f32.mrb[0].mxu0
  %v394 = vadd.f32 0.0, %v393
  %v395 = vpop.f32.mrb[0].mxu0
  %396 = vmatprep.mubr.f32.mxu0 0.0
  %397 = vmatmul.mubr.f32.gmra.mrb[0].mxu0 %v177
  %v398 = vpop.f32.mrb[0].mxu0
  %v399 = vadd.f32 0.0, %v398
  %v400 = vpop.f32.mrb[0].mxu0
  %401 = vmatprep.mubr.f32.mxu0 0.0
  %402 = vmatmul.mubr.f32.gmra.mrb[0].mxu0 %v180
  %v403 = vpop.f32.mrb[0].mxu0
  %v404 = vadd.f32 0.0, %v403
  %v405 = vpop.f32.mrb[0].mxu0
  %406 = vmatprep.mubr.f32.mxu0 0.0
  %407 = vmatmul.mubr.f32.gmra.mrb[0].mxu0 %v183
  %v408 = vpop.f32.mrb[0].mxu0
  %v409 = vadd.f32 0.0, %v408
  %v410 = vpop.f32.mrb[0].mxu0
  %411 = vmatprep.mubr.f32.mxu0 0.0
  %412 = vmatmul.mubr.f32.gmra.mrb[0].mxu0 %v186
  %v413 = vpop.f32.mrb[0].mxu0
  %v414 = vadd.f32 0.0, %v413
  %v415 = vpop.f32.mrb[0].mxu0
  %416 = vdwg.mxu0
  %v418 = vsel %vm91, %v25, 0
  %v421 = vsel %vm91, %v26, 0
  %v424 = vsel %vm91, %v27, 0
  %v427 = vsel %vm91, %v28, 0
  %v430 = vsel %vm91, %v29, 0
  %v433 = vsel %vm91, %v30, 0
  %v436 = vsel %vm91, %v31, 0
  %v439 = vsel %vm91, %v32, 0
  %v442 = vsel %vm91, %v33, 0
  %v445 = vsel %vm91, %v34, 0
  %v448 = vsel %vm91, %v35, 0
  %v451 = vsel %vm91, %v36, 0
  %v454 = vsel %vm91, %v37, 0
  %v457 = vsel %vm91, %v38, 0
  %v460 = vsel %vm91, %v39, 0
  %v463 = vsel %vm91, %v40, 0
  %v466 = vsel %vm91, %v41, 0
  %v469 = vsel %vm91, %v42, 0
  %v472 = vsel %vm91, %v43, 0
  %v475 = vsel %vm91, %v44, 0
  %v478 = vsel %vm91, %v45, 0
  %v481 = vsel %vm91, %v46, 0
  %v484 = vsel %vm91, %v47, 0
  %v487 = vsel %vm91, %v48, 0
  %v490 = vsel %vm91, %v49, 0
  %v493 = vsel %vm91, %v50, 0
  %v496 = vsel %vm91, %v51, 0
  %v499 = vsel %vm91, %v52, 0
  %v502 = vsel %vm91, %v53, 0
  %v505 = vsel %vm91, %v54, 0
  %v508 = vsel %vm91, %v55, 0
  %v511 = vsel %vm91, %v56, 0
  %v514 = vsel %vm188, %v57, 0
  %516 = vmatprep.subr.mxu0 0.0
  %517 = vmatpush1.msra.mxu0 %v514
  %518 = vmatprep.subr.mxu0 0.0
  %519 = vmatpush1.msra.mxu0 0.0
  %520 = vmatprep.subr.mxu0 0.0
  %521 = vmatpush1.msra.mxu0 0.0
  %522 = vmatprep.subr.mxu0 0.0
  %523 = vmatpush1.msra.mxu0 0.0
  %524 = vmatprep.subr.mxu0 0.0
  %525 = vmatpush1.msra.mxu0 0.0
  %526 = vmatprep.subr.mxu0 0.0
  %527 = vmatpush1.msra.mxu0 0.0
  %528 = vmatprep.subr.mxu0 0.0
  %529 = vmatpush1.msra.mxu0 0.0
  %530 = vmatprep.subr.mxu0 0.0
  %531 = vmatpush1.msra.mxu0 0.0
  %532 = vmatprep.subr.mxu0 0.0
  %533 = vmatpush1.msra.mxu0 0.0
  %534 = vmatprep.subr.mxu0 0.0
  %535 = vmatpush1.msra.mxu0 0.0
  %536 = vmatprep.subr.mxu0 0.0
  %537 = vmatpush1.msra.mxu0 0.0
  %538 = vmatprep.subr.mxu0 0.0
  %539 = vmatpush1.msra.mxu0 0.0
  %540 = vmatprep.subr.mxu0 0.0
  %541 = vmatpush1.msra.mxu0 0.0
  %542 = vmatprep.subr.mxu0 0.0
  %543 = vmatpush1.msra.mxu0 0.0
  %544 = vmatprep.subr.mxu0 0.0
  %545 = vmatpush1.msra.mxu0 0.0
  %546 = vmatprep.subr.mxu0 0.0
  %547 = vmatpush1.msra.mxu0 0.0
  %548 = vmatprep.subr.mxu0 0.0
  %549 = vmatpush1.msra.mxu0 0.0
  %550 = vmatprep.subr.mxu0 0.0
  %551 = vmatpush1.msra.mxu0 0.0
  %552 = vmatprep.subr.mxu0 0.0
  %553 = vmatpush1.msra.mxu0 0.0
  %554 = vmatprep.subr.mxu0 0.0
  %555 = vmatpush1.msra.mxu0 0.0
  %556 = vmatprep.subr.mxu0 0.0
  %557 = vmatpush1.msra.mxu0 0.0
  %558 = vmatprep.subr.mxu0 0.0
  %559 = vmatpush1.msra.mxu0 0.0
  %560 = vmatprep.subr.mxu0 0.0
  %561 = vmatpush1.msra.mxu0 0.0
  %562 = vmatprep.subr.mxu0 0.0
  %563 = vmatpush1.msra.mxu0 0.0
  %564 = vmatprep.subr.mxu0 0.0
  %565 = vmatpush1.msra.mxu0 0.0
  %566 = vmatprep.subr.mxu0 0.0
  %567 = vmatpush1.msra.mxu0 0.0
  %568 = vmatprep.subr.mxu0 0.0
  %569 = vmatpush1.msra.mxu0 0.0
  %570 = vmatprep.subr.mxu0 0.0
  %571 = vmatpush1.msra.mxu0 0.0
  %572 = vmatprep.subr.mxu0 0.0
  %573 = vmatpush1.msra.mxu0 0.0
  %574 = vmatprep.subr.mxu0 0.0
  %575 = vmatpush1.msra.mxu0 0.0
  %576 = vmatprep.subr.mxu0 0.0
  %577 = vmatpush1.msra.mxu0 0.0
  %578 = vmatprep.subr.mxu0 0.0
  %579 = vmatpush1.msra.mxu0 0.0
  %580 = vmatprep.mubr.f32.mxu0 0.0
  %581 = vmatmul.mubr.f32.gmra.mrb[0].mxu0 %v418
  %v582 = vpop.f32.mrb[0].mxu0
  %v583 = vadd.f32 %v259, %v582
  %v584 = vpop.f32.mrb[0].mxu0
  %585 = vmatprep.mubr.f32.mxu0 0.0
  %586 = vmatmul.mubr.f32.gmra.mrb[0].mxu0 %v421
  %v587 = vpop.f32.mrb[0].mxu0
  %v588 = vadd.f32 %v264, %v587
  %v589 = vpop.f32.mrb[0].mxu0
  %590 = vmatprep.mubr.f32.mxu0 0.0
  %591 = vmatmul.mubr.f32.gmra.mrb[0].mxu0 %v424
  %v592 = vpop.f32.mrb[0].mxu0
  %v593 = vadd.f32 %v269, %v592
  %v594 = vpop.f32.mrb[0].mxu0
  %595 = vmatprep.mubr.f32.mxu0 0.0
  %596 = vmatmul.mubr.f32.gmra.mrb[0].mxu0 %v427
  %v597 = vpop.f32.mrb[0].mxu0
  %v598 = vadd.f32 %v274, %v597
  %v599 = vpop.f32.mrb[0].mxu0
  %600 = vmatprep.mubr.f32.mxu0 0.0
  %601 = vmatmul.mubr.f32.gmra.mrb[0].mxu0 %v430
  %v602 = vpop.f32.mrb[0].mxu0
  %v603 = vadd.f32 %v279, %v602
  %v604 = vpop.f32.mrb[0].mxu0
  %605 = vmatprep.mubr.f32.mxu0 0.0
  %606 = vmatmul.mubr.f32.gmra.mrb[0].mxu0 %v433
  %v607 = vpop.f32.mrb[0].mxu0
  %v608 = vadd.f32 %v284, %v607
  %v609 = vpop.f32.mrb[0].mxu0
  %610 = vmatprep.mubr.f32.mxu0 0.0
  %611 = vmatmul.mubr.f32.gmra.mrb[0].mxu0 %v436
  %v612 = vpop.f32.mrb[0].mxu0
  %v613 = vadd.f32 %v289, %v612
  %v614 = vpop.f32.mrb[0].mxu0
  %615 = vmatprep.mubr.f32.mxu0 0.0
  %616 = vmatmul.mubr.f32.gmra.mrb[0].mxu0 %v439
  %v617 = vpop.f32.mrb[0].mxu0
  %v618 = vadd.f32 %v294, %v617
  %v619 = vpop.f32.mrb[0].mxu0
  %620 = vmatprep.mubr.f32.mxu0 0.0
  %621 = vmatmul.mubr.f32.gmra.mrb[0].mxu0 %v442
  %v622 = vpop.f32.mrb[0].mxu0
  %v623 = vadd.f32 %v299, %v622
  %v624 = vpop.f32.mrb[0].mxu0
  %625 = vmatprep.mubr.f32.mxu0 0.0
  %626 = vmatmul.mubr.f32.gmra.mrb[0].mxu0 %v445
  %v627 = vpop.f32.mrb[0].mxu0
  %v628 = vadd.f32 %v304, %v627
  %v629 = vpop.f32.mrb[0].mxu0
  %630 = vmatprep.mubr.f32.mxu0 0.0
  %631 = vmatmul.mubr.f32.gmra.mrb[0].mxu0 %v448
  %v632 = vpop.f32.mrb[0].mxu0
  %v633 = vadd.f32 %v309, %v632
  %v634 = vpop.f32.mrb[0].mxu0
  %635 = vmatprep.mubr.f32.mxu0 0.0
  %636 = vmatmul.mubr.f32.gmra.mrb[0].mxu0 %v451
  %v637 = vpop.f32.mrb[0].mxu0
  %v638 = vadd.f32 %v314, %v637
  %v639 = vpop.f32.mrb[0].mxu0
  %640 = vmatprep.mubr.f32.mxu0 0.0
  %641 = vmatmul.mubr.f32.gmra.mrb[0].mxu0 %v454
  %v642 = vpop.f32.mrb[0].mxu0
  %v643 = vadd.f32 %v319, %v642
  %v644 = vpop.f32.mrb[0].mxu0
  %645 = vmatprep.mubr.f32.mxu0 0.0
  %646 = vmatmul.mubr.f32.gmra.mrb[0].mxu0 %v457
  %v647 = vpop.f32.mrb[0].mxu0
  %v648 = vadd.f32 %v324, %v647
  %v649 = vpop.f32.mrb[0].mxu0
  %650 = vmatprep.mubr.f32.mxu0 0.0
  %651 = vmatmul.mubr.f32.gmra.mrb[0].mxu0 %v460
  %v652 = vpop.f32.mrb[0].mxu0
  %v653 = vadd.f32 %v329, %v652
  %v654 = vpop.f32.mrb[0].mxu0
  %655 = vmatprep.mubr.f32.mxu0 0.0
  %656 = vmatmul.mubr.f32.gmra.mrb[0].mxu0 %v463
  %v657 = vpop.f32.mrb[0].mxu0
  %v658 = vadd.f32 %v334, %v657
  %v659 = vpop.f32.mrb[0].mxu0
  %660 = vmatprep.mubr.f32.mxu0 0.0
  %661 = vmatmul.mubr.f32.gmra.mrb[0].mxu0 %v466
  %v662 = vpop.f32.mrb[0].mxu0
  %v663 = vadd.f32 %v339, %v662
  %v664 = vpop.f32.mrb[0].mxu0
  %665 = vmatprep.mubr.f32.mxu0 0.0
  %666 = vmatmul.mubr.f32.gmra.mrb[0].mxu0 %v469
  %v667 = vpop.f32.mrb[0].mxu0
  %v668 = vadd.f32 %v344, %v667
  %v669 = vpop.f32.mrb[0].mxu0
  %670 = vmatprep.mubr.f32.mxu0 0.0
  %671 = vmatmul.mubr.f32.gmra.mrb[0].mxu0 %v472
  %v672 = vpop.f32.mrb[0].mxu0
  %v673 = vadd.f32 %v349, %v672
  %v674 = vpop.f32.mrb[0].mxu0
  %675 = vmatprep.mubr.f32.mxu0 0.0
  %676 = vmatmul.mubr.f32.gmra.mrb[0].mxu0 %v475
  %v677 = vpop.f32.mrb[0].mxu0
  %v678 = vadd.f32 %v354, %v677
  %v679 = vpop.f32.mrb[0].mxu0
  %680 = vmatprep.mubr.f32.mxu0 0.0
  %681 = vmatmul.mubr.f32.gmra.mrb[0].mxu0 %v478
  %v682 = vpop.f32.mrb[0].mxu0
  %v683 = vadd.f32 %v359, %v682
  %v684 = vpop.f32.mrb[0].mxu0
  %685 = vmatprep.mubr.f32.mxu0 0.0
  %686 = vmatmul.mubr.f32.gmra.mrb[0].mxu0 %v481
  %v687 = vpop.f32.mrb[0].mxu0
  %v688 = vadd.f32 %v364, %v687
  %v689 = vpop.f32.mrb[0].mxu0
  %690 = vmatprep.mubr.f32.mxu0 0.0
  %691 = vmatmul.mubr.f32.gmra.mrb[0].mxu0 %v484
  %v692 = vpop.f32.mrb[0].mxu0
  %v693 = vadd.f32 %v369, %v692
  %v694 = vpop.f32.mrb[0].mxu0
  %695 = vmatprep.mubr.f32.mxu0 0.0
  %696 = vmatmul.mubr.f32.gmra.mrb[0].mxu0 %v487
  %v697 = vpop.f32.mrb[0].mxu0
  %v698 = vadd.f32 %v374, %v697
  %v699 = vpop.f32.mrb[0].mxu0
  %700 = vmatprep.mubr.f32.mxu0 0.0
  %701 = vmatmul.mubr.f32.gmra.mrb[0].mxu0 %v490
  %v702 = vpop.f32.mrb[0].mxu0
  %v703 = vadd.f32 %v379, %v702
  %v704 = vpop.f32.mrb[0].mxu0
  %705 = vmatprep.mubr.f32.mxu0 0.0
  %706 = vmatmul.mubr.f32.gmra.mrb[0].mxu0 %v493
  %v707 = vpop.f32.mrb[0].mxu0
  %v708 = vadd.f32 %v384, %v707
  %v709 = vpop.f32.mrb[0].mxu0
  %710 = vmatprep.mubr.f32.mxu0 0.0
  %711 = vmatmul.mubr.f32.gmra.mrb[0].mxu0 %v496
  %v712 = vpop.f32.mrb[0].mxu0
  %v713 = vadd.f32 %v389, %v712
  %v714 = vpop.f32.mrb[0].mxu0
  %715 = vmatprep.mubr.f32.mxu0 0.0
  %716 = vmatmul.mubr.f32.gmra.mrb[0].mxu0 %v499
  %v717 = vpop.f32.mrb[0].mxu0
  %v718 = vadd.f32 %v394, %v717
  %v719 = vpop.f32.mrb[0].mxu0
  %720 = vmatprep.mubr.f32.mxu0 0.0
  %721 = vmatmul.mubr.f32.gmra.mrb[0].mxu0 %v502
  %v722 = vpop.f32.mrb[0].mxu0
  %v723 = vadd.f32 %v399, %v722
  %v724 = vpop.f32.mrb[0].mxu0
  %725 = vmatprep.mubr.f32.mxu0 0.0
  %726 = vmatmul.mubr.f32.gmra.mrb[0].mxu0 %v505
  %v727 = vpop.f32.mrb[0].mxu0
  %v728 = vadd.f32 %v404, %v727
  %v729 = vpop.f32.mrb[0].mxu0
  %730 = vmatprep.mubr.f32.mxu0 0.0
  %731 = vmatmul.mubr.f32.gmra.mrb[0].mxu0 %v508
  %v732 = vpop.f32.mrb[0].mxu0
  %v733 = vadd.f32 %v409, %v732
  %v734 = vpop.f32.mrb[0].mxu0
  %735 = vmatprep.mubr.f32.mxu0 0.0
  %736 = vmatmul.mubr.f32.gmra.mrb[0].mxu0 %v511
  %v737 = vpop.f32.mrb[0].mxu0
  %v738 = vadd.f32 %v414, %v737
  %v739 = vpop.f32.mrb[0].mxu0
  %740 = vdwg.mxu0
  %v741 = vld [vmem:[%s5] sm:$0x1]
  %v743 = vlaneseq
  %v744 = vshrl.u32 %v743, 7
  %v745 = vsub.s32 0, %v744
  %v746 = vrot.slane %v741, %v745
  %v748 = vsub.f32 %v746, %v583
  %v749 = vsub.f32 %v746, %v588
  %v750 = vsub.f32 %v746, %v593
  %v751 = vsub.f32 %v746, %v598
  %v752 = vsub.f32 %v746, %v603
  %v753 = vsub.f32 %v746, %v608
  %v754 = vsub.f32 %v746, %v613
  %v755 = vsub.f32 %v746, %v618
  %v756 = vsub.f32 %v746, %v623
  %v757 = vsub.f32 %v746, %v628
  %v758 = vsub.f32 %v746, %v633
  %v759 = vsub.f32 %v746, %v638
  %v760 = vsub.f32 %v746, %v643
  %v761 = vsub.f32 %v746, %v648
  %v762 = vsub.f32 %v746, %v653
  %v763 = vsub.f32 %v746, %v658
  %v764 = vsub.f32 %v746, %v663
  %v765 = vsub.f32 %v746, %v668
  %v766 = vsub.f32 %v746, %v673
  %v767 = vsub.f32 %v746, %v678
  %v768 = vsub.f32 %v746, %v683
  %v769 = vsub.f32 %v746, %v688
  %v770 = vsub.f32 %v746, %v693
  %v771 = vsub.f32 %v746, %v698
  %v772 = vsub.f32 %v746, %v703
  %v773 = vsub.f32 %v746, %v708
  %v774 = vsub.f32 %v746, %v713
  %v775 = vsub.f32 %v746, %v718
  %v776 = vsub.f32 %v746, %v723
  %v777 = vsub.f32 %v746, %v728
  %v778 = vsub.f32 %v746, %v733
  %v779 = vsub.f32 %v746, %v738
  %v780 = vmul.f32 %v748, 1.442695
  %v781 = vpow.pop %v780
  %v782 = vmul.f32 %v749, 1.442695
  %v783 = vpow.pop %v782
  %v784 = vmul.f32 %v750, 1.442695
  %v785 = vpow.pop %v784
  %v786 = vmul.f32 %v751, 1.442695
  %v787 = vpow.pop %v786
  %v788 = vmul.f32 %v752, 1.442695
  %v789 = vpow.pop %v788
  %v790 = vmul.f32 %v753, 1.442695
  %v791 = vpow.pop %v790
  %v792 = vmul.f32 %v754, 1.442695
  %v793 = vpow.pop %v792
  %v794 = vmul.f32 %v755, 1.442695
  %v795 = vpow.pop %v794
  %v796 = vmul.f32 %v756, 1.442695
  %v797 = vpow.pop %v796
  %v798 = vmul.f32 %v757, 1.442695
  %v799 = vpow.pop %v798
  %v800 = vmul.f32 %v758, 1.442695
  %v801 = vpow.pop %v800
  %v802 = vmul.f32 %v759, 1.442695
  %v803 = vpow.pop %v802
  %v804 = vmul.f32 %v760, 1.442695
  %v805 = vpow.pop %v804
  %v806 = vmul.f32 %v761, 1.442695
  %v807 = vpow.pop %v806
  %v808 = vmul.f32 %v762, 1.442695
  %v809 = vpow.pop %v808
  %v810 = vmul.f32 %v763, 1.442695
  %v811 = vpow.pop %v810
  %v812 = vmul.f32 %v764, 1.442695
  %v813 = vpow.pop %v812
  %v814 = vmul.f32 %v765, 1.442695
  %v815 = vpow.pop %v814
  %v816 = vmul.f32 %v766, 1.442695
  %v817 = vpow.pop %v816
  %v818 = vmul.f32 %v767, 1.442695
  %v819 = vpow.pop %v818
  %v820 = vmul.f32 %v768, 1.442695
  %v821 = vpow.pop %v820
  %v822 = vmul.f32 %v769, 1.442695
  %v823 = vpow.pop %v822
  %v824 = vmul.f32 %v770, 1.442695
  %v825 = vpow.pop %v824
  %v826 = vmul.f32 %v771, 1.442695
  %v827 = vpow.pop %v826
  %v828 = vmul.f32 %v772, 1.442695
  %v829 = vpow.pop %v828
  %v830 = vmul.f32 %v773, 1.442695
  %v831 = vpow.pop %v830
  %v832 = vmul.f32 %v774, 1.442695
  %v833 = vpow.pop %v832
  %v834 = vmul.f32 %v775, 1.442695
  %v835 = vpow.pop %v834
  %v836 = vmul.f32 %v776, 1.442695
  %v837 = vpow.pop %v836
  %v838 = vmul.f32 %v777, 1.442695
  %v839 = vpow.pop %v838
  %v840 = vmul.f32 %v778, 1.442695
  %v841 = vpow.pop %v840
  %v842 = vmul.f32 %v779, 1.442695
  %v843 = vpow.pop %v842
  %v844 = vld [vmem:[%s4] sm:$0x1]
  %v846 = vlaneseq
  %v847 = vshrl.u32 %v846, 7
  %v848 = vsub.s32 0, %v847
  %v849 = vrot.slane %v844, %v848
  %850 = vrot.lane.b32.xlu0 %v849, 32
  %v851 = vpop.permute.xlu0 %850
  %v853 = vadd.f32 %v583, %v851
  %v854 = vadd.f32 %v588, %v851
  %v855 = vadd.f32 %v593, %v851
  %v856 = vadd.f32 %v598, %v851
  %v857 = vadd.f32 %v603, %v851
  %v858 = vadd.f32 %v608, %v851
  %v859 = vadd.f32 %v613, %v851
  %v860 = vadd.f32 %v618, %v851
  %v861 = vadd.f32 %v623, %v851
  %v862 = vadd.f32 %v628, %v851
  %v863 = vadd.f32 %v633, %v851
  %v864 = vadd.f32 %v638, %v851
  %v865 = vadd.f32 %v643, %v851
  %v866 = vadd.f32 %v648, %v851
  %v867 = vadd.f32 %v653, %v851
  %v868 = vadd.f32 %v658, %v851
  %v869 = vadd.f32 %v663, %v851
  %v870 = vadd.f32 %v668, %v851
  %v871 = vadd.f32 %v673, %v851
  %v872 = vadd.f32 %v678, %v851
  %v873 = vadd.f32 %v683, %v851
  %v874 = vadd.f32 %v688, %v851
  %v875 = vadd.f32 %v693, %v851
  %v876 = vadd.f32 %v698, %v851
  %v877 = vadd.f32 %v703, %v851
  %v878 = vadd.f32 %v708, %v851
  %v879 = vadd.f32 %v713, %v851
  %v880 = vadd.f32 %v718, %v851
  %v881 = vadd.f32 %v723, %v851
  %v882 = vadd.f32 %v728, %v851
  %v883 = vadd.f32 %v733, %v851
  %v884 = vadd.f32 %v738, %v851
  %917 = vrot.lane.b32.xlu0 %v853, 96
  %v918 = vpop.permute.xlu0 %917
  %919 = vrot.lane.b32.xlu0 %v854, 96
  %v920 = vpop.permute.xlu0 %919
  %921 = vrot.lane.b32.xlu0 %v855, 96
  %v922 = vpop.permute.xlu0 %921
  %923 = vrot.lane.b32.xlu0 %v856, 96
  %v924 = vpop.permute.xlu0 %923
  %925 = vrot.lane.b32.xlu0 %v857, 96
  %v926 = vpop.permute.xlu0 %925
  %927 = vrot.lane.b32.xlu0 %v858, 96
  %v928 = vpop.permute.xlu0 %927
  %929 = vrot.lane.b32.xlu0 %v859, 96
  %v930 = vpop.permute.xlu0 %929
  %931 = vrot.lane.b32.xlu0 %v860, 96
  %v932 = vpop.permute.xlu0 %931
  %933 = vrot.lane.b32.xlu0 %v861, 96
  %v934 = vpop.permute.xlu0 %933
  %935 = vrot.lane.b32.xlu0 %v862, 96
  %v936 = vpop.permute.xlu0 %935
  %937 = vrot.lane.b32.xlu0 %v863, 96
  %v938 = vpop.permute.xlu0 %937
  %939 = vrot.lane.b32.xlu0 %v864, 96
  %v940 = vpop.permute.xlu0 %939
  %941 = vrot.lane.b32.xlu0 %v865, 96
  %v942 = vpop.permute.xlu0 %941
  %943 = vrot.lane.b32.xlu0 %v866, 96
  %v944 = vpop.permute.xlu0 %943
  %945 = vrot.lane.b32.xlu0 %v867, 96
  %v946 = vpop.permute.xlu0 %945
  %947 = vrot.lane.b32.xlu0 %v868, 96
  %v948 = vpop.permute.xlu0 %947
  %949 = vrot.lane.b32.xlu0 %v869, 96
  %v950 = vpop.permute.xlu0 %949
  %951 = vrot.lane.b32.xlu0 %v870, 96
  %v952 = vpop.permute.xlu0 %951
  %953 = vrot.lane.b32.xlu0 %v871, 96
  %v954 = vpop.permute.xlu0 %953
  %955 = vrot.lane.b32.xlu0 %v872, 96
  %v956 = vpop.permute.xlu0 %955
  %957 = vrot.lane.b32.xlu0 %v873, 96
  %v958 = vpop.permute.xlu0 %957
  %959 = vrot.lane.b32.xlu0 %v874, 96
  %v960 = vpop.permute.xlu0 %959
  %961 = vrot.lane.b32.xlu0 %v875, 96
  %v962 = vpop.permute.xlu0 %961
  %963 = vrot.lane.b32.xlu0 %v876, 96
  %v964 = vpop.permute.xlu0 %963
  %965 = vrot.lane.b32.xlu0 %v877, 96
  %v966 = vpop.permute.xlu0 %965
  %967 = vrot.lane.b32.xlu0 %v878, 96
  %v968 = vpop.permute.xlu0 %967
  %969 = vrot.lane.b32.xlu0 %v879, 96
  %v970 = vpop.permute.xlu0 %969
  %971 = vrot.lane.b32.xlu0 %v880, 96
  %v972 = vpop.permute.xlu0 %971
  %973 = vrot.lane.b32.xlu0 %v881, 96
  %v974 = vpop.permute.xlu0 %973
  %975 = vrot.lane.b32.xlu0 %v882, 96
  %v976 = vpop.permute.xlu0 %975
  %977 = vrot.lane.b32.xlu0 %v883, 96
  %v978 = vpop.permute.xlu0 %977
  %979 = vrot.lane.b32.xlu0 %v884, 96
  %v980 = vpop.permute.xlu0 %979
  %v1013 = vmul.f32 %v781, %v918
  %v1014 = vmul.f32 %v783, %v920
  %v1015 = vmul.f32 %v785, %v922
  %v1016 = vmul.f32 %v787, %v924
  %v1017 = vmul.f32 %v789, %v926
  %v1018 = vmul.f32 %v791, %v928
  %v1019 = vmul.f32 %v793, %v930
  %v1020 = vmul.f32 %v795, %v932
  %v1021 = vmul.f32 %v797, %v934
  %v1022 = vmul.f32 %v799, %v936
  %v1023 = vmul.f32 %v801, %v938
  %v1024 = vmul.f32 %v803, %v940
  %v1025 = vmul.f32 %v805, %v942
  %v1026 = vmul.f32 %v807, %v944
  %v1027 = vmul.f32 %v809, %v946
  %v1028 = vmul.f32 %v811, %v948
  %v1029 = vmul.f32 %v813, %v950
  %v1030 = vmul.f32 %v815, %v952
  %v1031 = vmul.f32 %v817, %v954
  %v1032 = vmul.f32 %v819, %v956
  %v1033 = vmul.f32 %v821, %v958
  %v1034 = vmul.f32 %v823, %v960
  %v1035 = vmul.f32 %v825, %v962
  %v1036 = vmul.f32 %v827, %v964
  %v1037 = vmul.f32 %v829, %v966
  %v1038 = vmul.f32 %v831, %v968
  %v1039 = vmul.f32 %v833, %v970
  %v1040 = vmul.f32 %v835, %v972
  %v1041 = vmul.f32 %v837, %v974
  %v1042 = vmul.f32 %v839, %v976
  %v1043 = vmul.f32 %v841, %v978
  %v1044 = vmul.f32 %v843, %v980
  %v1045 = vpack.c.bf16 %v1014, %v1013
  %v1046 = vpack.c.bf16 %v1016, %v1015
  %v1047 = vpack.c.bf16 %v1018, %v1017
  %v1048 = vpack.c.bf16 %v1020, %v1019
  %v1049 = vpack.c.bf16 %v1022, %v1021
  %v1050 = vpack.c.bf16 %v1024, %v1023
  %v1051 = vpack.c.bf16 %v1026, %v1025
  %v1052 = vpack.c.bf16 %v1028, %v1027
  %v1053 = vpack.c.bf16 %v1030, %v1029
  %v1054 = vpack.c.bf16 %v1032, %v1031
  %v1055 = vpack.c.bf16 %v1034, %v1033
  %v1056 = vpack.c.bf16 %v1036, %v1035
  %v1057 = vpack.c.bf16 %v1038, %v1037
  %v1058 = vpack.c.bf16 %v1040, %v1039
  %v1059 = vpack.c.bf16 %v1042, %v1041
  %v1060 = vpack.c.bf16 %v1044, %v1043
  %v1077 = vunpack.c.l.b16 %v1045
  %v1078 = vunpack.c.h.b16 %v1045
  %v1079 = vunpack.c.l.b16 %v1046
  %v1080 = vunpack.c.h.b16 %v1046
  %v1081 = vunpack.c.l.b16 %v1047
  %v1082 = vunpack.c.h.b16 %v1047
  %v1083 = vunpack.c.l.b16 %v1048
  %v1084 = vunpack.c.h.b16 %v1048
  %v1085 = vunpack.c.l.b16 %v1049
  %v1086 = vunpack.c.h.b16 %v1049
  %v1087 = vunpack.c.l.b16 %v1050
  %v1088 = vunpack.c.h.b16 %v1050
  %v1089 = vunpack.c.l.b16 %v1051
  %v1090 = vunpack.c.h.b16 %v1051
  %v1091 = vunpack.c.l.b16 %v1052
  %v1092 = vunpack.c.h.b16 %v1052
  %v1093 = vunpack.c.l.b16 %v1053
  %v1094 = vunpack.c.h.b16 %v1053
  %v1095 = vunpack.c.l.b16 %v1054
  %v1096 = vunpack.c.h.b16 %v1054
  %v1097 = vunpack.c.l.b16 %v1055
  %v1098 = vunpack.c.h.b16 %v1055
  %v1099 = vunpack.c.l.b16 %v1056
  %v1100 = vunpack.c.h.b16 %v1056
  %v1101 = vunpack.c.l.b16 %v1057
  %v1102 = vunpack.c.h.b16 %v1057
  %v1103 = vunpack.c.l.b16 %v1058
  %v1104 = vunpack.c.h.b16 %v1058
  %v1105 = vunpack.c.l.b16 %v1059
  %v1106 = vunpack.c.h.b16 %v1059
  %v1107 = vunpack.c.l.b16 %v1060
  %v1108 = vunpack.c.h.b16 %v1060
  %v1109 = vpack.c.b16 %v1077, %v1077
  %v1110 = vpack.c.b16 %v1078, %v1078
  %v1111 = vpack.c.b16 %v1079, %v1079
  %v1112 = vpack.c.b16 %v1080, %v1080
  %v1113 = vpack.c.b16 %v1081, %v1081
  %v1114 = vpack.c.b16 %v1082, %v1082
  %v1115 = vpack.c.b16 %v1083, %v1083
  %v1116 = vpack.c.b16 %v1084, %v1084
  %v1117 = vpack.c.b16 %v1085, %v1085
  %v1118 = vpack.c.b16 %v1086, %v1086
  %v1119 = vpack.c.b16 %v1087, %v1087
  %v1120 = vpack.c.b16 %v1088, %v1088
  %v1121 = vpack.c.b16 %v1089, %v1089
  %v1122 = vpack.c.b16 %v1090, %v1090
  %v1123 = vpack.c.b16 %v1091, %v1091
  %v1124 = vpack.c.b16 %v1092, %v1092
  %v1125 = vpack.c.b16 %v1093, %v1093
  %v1126 = vpack.c.b16 %v1094, %v1094
  %v1127 = vpack.c.b16 %v1095, %v1095
  %v1128 = vpack.c.b16 %v1096, %v1096
  %v1129 = vpack.c.b16 %v1097, %v1097
  %v1130 = vpack.c.b16 %v1098, %v1098
  %v1131 = vpack.c.b16 %v1099, %v1099
  %v1132 = vpack.c.b16 %v1100, %v1100
  %v1133 = vpack.c.b16 %v1101, %v1101
  %v1134 = vpack.c.b16 %v1102, %v1102
  %v1135 = vpack.c.b16 %v1103, %v1103
  %v1136 = vpack.c.b16 %v1104, %v1104
  %v1137 = vpack.c.b16 %v1105, %v1105
  %v1138 = vpack.c.b16 %v1106, %v1106
  %v1139 = vpack.c.b16 %v1107, %v1107
  %v1140 = vpack.c.b16 %v1108, %v1108
  %vm1173 = vcmask 257024
  %1174 = vst.msk [vmem:[%s6] sm:$0xf] %vm1173, %v1109
  %1175 = vst.msk [vmem:[%s6 + $0x4] sm:$0xf] %vm1173, %v1110
  %1176 = vst.msk [vmem:[%s6 + $0x8] sm:$0xf] %vm1173, %v1111
  %1177 = vst.msk [vmem:[%s6 + $0xc] sm:$0xf] %vm1173, %v1112
  %1178 = vst.msk [vmem:[%s6 + $0x10] sm:$0xf] %vm1173, %v1113
  %1179 = vst.msk [vmem:[%s6 + $0x14] sm:$0xf] %vm1173, %v1114
  %1180 = vst.msk [vmem:[%s6 + $0x18] sm:$0xf] %vm1173, %v1115
  %1181 = vst.msk [vmem:[%s6 + $0x1c] sm:$0xf] %vm1173, %v1116
  %1182 = vst.msk [vmem:[%s6 + $0x20] sm:$0xf] %vm1173, %v1117
  %1183 = vst.msk [vmem:[%s6 + $0x24] sm:$0xf] %vm1173, %v1118
  %1184 = vst.msk [vmem:[%s6 + $0x28] sm:$0xf] %vm1173, %v1119
  %1185 = vst.msk [vmem:[%s6 + $0x2c] sm:$0xf] %vm1173, %v1120
  %1186 = vst.msk [vmem:[%s6 + $0x30] sm:$0xf] %vm1173, %v1121
  %1187 = vst.msk [vmem:[%s6 + $0x34] sm:$0xf] %vm1173, %v1122
  %1188 = vst.msk [vmem:[%s6 + $0x38] sm:$0xf] %vm1173, %v1123
  %1189 = vst.msk [vmem:[%s6 + $0x3c] sm:$0xf] %vm1173, %v1124
  %1190 = vst.msk [vmem:[%s6 + $0x40] sm:$0xf] %vm1173, %v1125
  %1191 = vst.msk [vmem:[%s6 + $0x44] sm:$0xf] %vm1173, %v1126
  %1192 = vst.msk [vmem:[%s6 + $0x48] sm:$0xf] %vm1173, %v1127
  %1193 = vst.msk [vmem:[%s6 + $0x4c] sm:$0xf] %vm1173, %v1128
  %1194 = vst.msk [vmem:[%s6 + $0x50] sm:$0xf] %vm1173, %v1129
  %1195 = vst.msk [vmem:[%s6 + $0x54] sm:$0xf] %vm1173, %v1130
  %1196 = vst.msk [vmem:[%s6 + $0x58] sm:$0xf] %vm1173, %v1131
  %1197 = vst.msk [vmem:[%s6 + $0x5c] sm:$0xf] %vm1173, %v1132
  %1198 = vst.msk [vmem:[%s6 + $0x60] sm:$0xf] %vm1173, %v1133
  %1199 = vst.msk [vmem:[%s6 + $0x64] sm:$0xf] %vm1173, %v1134
  %1200 = vst.msk [vmem:[%s6 + $0x68] sm:$0xf] %vm1173, %v1135
  %1201 = vst.msk [vmem:[%s6 + $0x6c] sm:$0xf] %vm1173, %v1136
  %1202 = vst.msk [vmem:[%s6 + $0x70] sm:$0xf] %vm1173, %v1137
  %1203 = vst.msk [vmem:[%s6 + $0x74] sm:$0xf] %vm1173, %v1138
  %1204 = vst.msk [vmem:[%s6 + $0x78] sm:$0xf] %vm1173, %v1139
  %1205 = vst.msk [vmem:[%s6 + $0x7c] sm:$0xf] %vm1173, %v1140
  %v1206 = vpack.c.bf16 %v783, %v781
  %v1207 = vpack.c.bf16 %v787, %v785
  %v1208 = vpack.c.bf16 %v791, %v789
  %v1209 = vpack.c.bf16 %v795, %v793
  %v1210 = vpack.c.bf16 %v799, %v797
  %v1211 = vpack.c.bf16 %v803, %v801
  %v1212 = vpack.c.bf16 %v807, %v805
  %v1213 = vpack.c.bf16 %v811, %v809
  %v1214 = vpack.c.bf16 %v815, %v813
  %v1215 = vpack.c.bf16 %v819, %v817
  %v1216 = vpack.c.bf16 %v823, %v821
  %v1217 = vpack.c.bf16 %v827, %v825
  %v1218 = vpack.c.bf16 %v831, %v829
  %v1219 = vpack.c.bf16 %v835, %v833
  %v1220 = vpack.c.bf16 %v839, %v837
  %v1221 = vpack.c.bf16 %v843, %v841
  %v1238 = vunpack.c.l.b16 %v1206
  %v1239 = vunpack.c.h.b16 %v1206
  %v1240 = vunpack.c.l.b16 %v1207
  %v1241 = vunpack.c.h.b16 %v1207
  %v1242 = vunpack.c.l.b16 %v1208
  %v1243 = vunpack.c.h.b16 %v1208
  %v1244 = vunpack.c.l.b16 %v1209
  %v1245 = vunpack.c.h.b16 %v1209
  %v1246 = vunpack.c.l.b16 %v1210
  %v1247 = vunpack.c.h.b16 %v1210
  %v1248 = vunpack.c.l.b16 %v1211
  %v1249 = vunpack.c.h.b16 %v1211
  %v1250 = vunpack.c.l.b16 %v1212
  %v1251 = vunpack.c.h.b16 %v1212
  %v1252 = vunpack.c.l.b16 %v1213
  %v1253 = vunpack.c.h.b16 %v1213
  %v1254 = vunpack.c.l.b16 %v1214
  %v1255 = vunpack.c.h.b16 %v1214
  %v1256 = vunpack.c.l.b16 %v1215
  %v1257 = vunpack.c.h.b16 %v1215
  %v1258 = vunpack.c.l.b16 %v1216
  %v1259 = vunpack.c.h.b16 %v1216
  %v1260 = vunpack.c.l.b16 %v1217
  %v1261 = vunpack.c.h.b16 %v1217
  %v1262 = vunpack.c.l.b16 %v1218
  %v1263 = vunpack.c.h.b16 %v1218
  %v1264 = vunpack.c.l.b16 %v1219
  %v1265 = vunpack.c.h.b16 %v1219
  %v1266 = vunpack.c.l.b16 %v1220
  %v1267 = vunpack.c.h.b16 %v1220
  %v1268 = vunpack.c.l.b16 %v1221
  %v1269 = vunpack.c.h.b16 %v1221
  %v1270 = vpack.c.b16 %v1238, %v1238
  %v1271 = vpack.c.b16 %v1239, %v1239
  %v1272 = vpack.c.b16 %v1240, %v1240
  %v1273 = vpack.c.b16 %v1241, %v1241
  %v1274 = vpack.c.b16 %v1242, %v1242
  %v1275 = vpack.c.b16 %v1243, %v1243
  %v1276 = vpack.c.b16 %v1244, %v1244
  %v1277 = vpack.c.b16 %v1245, %v1245
  %v1278 = vpack.c.b16 %v1246, %v1246
  %v1279 = vpack.c.b16 %v1247, %v1247
  %v1280 = vpack.c.b16 %v1248, %v1248
  %v1281 = vpack.c.b16 %v1249, %v1249
  %v1282 = vpack.c.b16 %v1250, %v1250
  %v1283 = vpack.c.b16 %v1251, %v1251
  %v1284 = vpack.c.b16 %v1252, %v1252
  %v1285 = vpack.c.b16 %v1253, %v1253
  %v1286 = vpack.c.b16 %v1254, %v1254
  %v1287 = vpack.c.b16 %v1255, %v1255
  %v1288 = vpack.c.b16 %v1256, %v1256
  %v1289 = vpack.c.b16 %v1257, %v1257
  %v1290 = vpack.c.b16 %v1258, %v1258
  %v1291 = vpack.c.b16 %v1259, %v1259
  %v1292 = vpack.c.b16 %v1260, %v1260
  %v1293 = vpack.c.b16 %v1261, %v1261
  %v1294 = vpack.c.b16 %v1262, %v1262
  %v1295 = vpack.c.b16 %v1263, %v1263
  %v1296 = vpack.c.b16 %v1264, %v1264
  %v1297 = vpack.c.b16 %v1265, %v1265
  %v1298 = vpack.c.b16 %v1266, %v1266
  %v1299 = vpack.c.b16 %v1267, %v1267
  %v1300 = vpack.c.b16 %v1268, %v1268
  %v1301 = vpack.c.b16 %v1269, %v1269
  %1302 = vrot.lane.b32.xlu0 %v1270, 32
  %v1303 = vpop.permute.xlu0 %1302
  %1304 = vrot.lane.b32.xlu0 %v1271, 32
  %v1305 = vpop.permute.xlu0 %1304
  %1306 = vrot.lane.b32.xlu0 %v1272, 32
  %v1307 = vpop.permute.xlu0 %1306
  %1308 = vrot.lane.b32.xlu0 %v1273, 32
  %v1309 = vpop.permute.xlu0 %1308
  %1310 = vrot.lane.b32.xlu0 %v1274, 32
  %v1311 = vpop.permute.xlu0 %1310
  %1312 = vrot.lane.b32.xlu0 %v1275, 32
  %v1313 = vpop.permute.xlu0 %1312
  %1314 = vrot.lane.b32.xlu0 %v1276, 32
  %v1315 = vpop.permute.xlu0 %1314
  %1316 = vrot.lane.b32.xlu0 %v1277, 32
  %v1317 = vpop.permute.xlu0 %1316
  %1318 = vrot.lane.b32.xlu0 %v1278, 32
  %v1319 = vpop.permute.xlu0 %1318
  %1320 = vrot.lane.b32.xlu0 %v1279, 32
  %v1321 = vpop.permute.xlu0 %1320
  %1322 = vrot.lane.b32.xlu0 %v1280, 32
  %v1323 = vpop.permute.xlu0 %1322
  %1324 = vrot.lane.b32.xlu0 %v1281, 32
  %v1325 = vpop.permute.xlu0 %1324
  %1326 = vrot.lane.b32.xlu0 %v1282, 32
  %v1327 = vpop.permute.xlu0 %1326
  %1328 = vrot.lane.b32.xlu0 %v1283, 32
  %v1329 = vpop.permute.xlu0 %1328
  %1330 = vrot.lane.b32.xlu0 %v1284, 32
  %v1331 = vpop.permute.xlu0 %1330
  %1332 = vrot.lane.b32.xlu0 %v1285, 32
  %v1333 = vpop.permute.xlu0 %1332
  %1334 = vrot.lane.b32.xlu0 %v1286, 32
  %v1335 = vpop.permute.xlu0 %1334
  %1336 = vrot.lane.b32.xlu0 %v1287, 32
  %v1337 = vpop.permute.xlu0 %1336
  %1338 = vrot.lane.b32.xlu0 %v1288, 32
  %v1339 = vpop.permute.xlu0 %1338
  %1340 = vrot.lane.b32.xlu0 %v1289, 32
  %v1341 = vpop.permute.xlu0 %1340
  %1342 = vrot.lane.b32.xlu0 %v1290, 32
  %v1343 = vpop.permute.xlu0 %1342
  %1344 = vrot.lane.b32.xlu0 %v1291, 32
  %v1345 = vpop.permute.xlu0 %1344
  %1346 = vrot.lane.b32.xlu0 %v1292, 32
  %v1347 = vpop.permute.xlu0 %1346
  %1348 = vrot.lane.b32.xlu0 %v1293, 32
  %v1349 = vpop.permute.xlu0 %1348
  %1350 = vrot.lane.b32.xlu0 %v1294, 32
  %v1351 = vpop.permute.xlu0 %1350
  %1352 = vrot.lane.b32.xlu0 %v1295, 32
  %v1353 = vpop.permute.xlu0 %1352
  %1354 = vrot.lane.b32.xlu0 %v1296, 32
  %v1355 = vpop.permute.xlu0 %1354
  %1356 = vrot.lane.b32.xlu0 %v1297, 32
  %v1357 = vpop.permute.xlu0 %1356
  %1358 = vrot.lane.b32.xlu0 %v1298, 32
  %v1359 = vpop.permute.xlu0 %1358
  %1360 = vrot.lane.b32.xlu0 %v1299, 32
  %v1361 = vpop.permute.xlu0 %1360
  %1362 = vrot.lane.b32.xlu0 %v1300, 32
  %v1363 = vpop.permute.xlu0 %1362
  %1364 = vrot.lane.b32.xlu0 %v1301, 32
  %v1365 = vpop.permute.xlu0 %1364
  %vm1398 = vcmask 519424
  %1399 = vst.msk [vmem:[%s6] sm:$0xf] %vm1398, %v1303
  %1400 = vst.msk [vmem:[%s6 + $0x4] sm:$0xf] %vm1398, %v1305
  %1401 = vst.msk [vmem:[%s6 + $0x8] sm:$0xf] %vm1398, %v1307
  %1402 = vst.msk [vmem:[%s6 + $0xc] sm:$0xf] %vm1398, %v1309
  %1403 = vst.msk [vmem:[%s6 + $0x10] sm:$0xf] %vm1398, %v1311
  %1404 = vst.msk [vmem:[%s6 + $0x14] sm:$0xf] %vm1398, %v1313
  %1405 = vst.msk [vmem:[%s6 + $0x18] sm:$0xf] %vm1398, %v1315
  %1406 = vst.msk [vmem:[%s6 + $0x1c] sm:$0xf] %vm1398, %v1317
  %1407 = vst.msk [vmem:[%s6 + $0x20] sm:$0xf] %vm1398, %v1319
  %1408 = vst.msk [vmem:[%s6 + $0x24] sm:$0xf] %vm1398, %v1321
  %1409 = vst.msk [vmem:[%s6 + $0x28] sm:$0xf] %vm1398, %v1323
  %1410 = vst.msk [vmem:[%s6 + $0x2c] sm:$0xf] %vm1398, %v1325
  %1411 = vst.msk [vmem:[%s6 + $0x30] sm:$0xf] %vm1398, %v1327
  %1412 = vst.msk [vmem:[%s6 + $0x34] sm:$0xf] %vm1398, %v1329
  %1413 = vst.msk [vmem:[%s6 + $0x38] sm:$0xf] %vm1398, %v1331
  %1414 = vst.msk [vmem:[%s6 + $0x3c] sm:$0xf] %vm1398, %v1333
  %1415 = vst.msk [vmem:[%s6 + $0x40] sm:$0xf] %vm1398, %v1335
  %1416 = vst.msk [vmem:[%s6 + $0x44] sm:$0xf] %vm1398, %v1337
  %1417 = vst.msk [vmem:[%s6 + $0x48] sm:$0xf] %vm1398, %v1339
  %1418 = vst.msk [vmem:[%s6 + $0x4c] sm:$0xf] %vm1398, %v1341
  %1419 = vst.msk [vmem:[%s6 + $0x50] sm:$0xf] %vm1398, %v1343
  %1420 = vst.msk [vmem:[%s6 + $0x54] sm:$0xf] %vm1398, %v1345
  %1421 = vst.msk [vmem:[%s6 + $0x58] sm:$0xf] %vm1398, %v1347
  %1422 = vst.msk [vmem:[%s6 + $0x5c] sm:$0xf] %vm1398, %v1349
  %1423 = vst.msk [vmem:[%s6 + $0x60] sm:$0xf] %vm1398, %v1351
  %1424 = vst.msk [vmem:[%s6 + $0x64] sm:$0xf] %vm1398, %v1353
  %1425 = vst.msk [vmem:[%s6 + $0x68] sm:$0xf] %vm1398, %v1355
  %1426 = vst.msk [vmem:[%s6 + $0x6c] sm:$0xf] %vm1398, %v1357
  %1427 = vst.msk [vmem:[%s6 + $0x70] sm:$0xf] %vm1398, %v1359
  %1428 = vst.msk [vmem:[%s6 + $0x74] sm:$0xf] %vm1398, %v1361
  %1429 = vst.msk [vmem:[%s6 + $0x78] sm:$0xf] %vm1398, %v1363
  %1430 = vst.msk [vmem:[%s6 + $0x7c] sm:$0xf] %vm1398, %v1365
  %1463 = vrot.lane.b32.xlu0 %v583, 64
  %v1464 = vpop.permute.xlu0 %1463
  %1465 = vrot.lane.b32.xlu0 %v588, 64
  %v1466 = vpop.permute.xlu0 %1465
  %1467 = vrot.lane.b32.xlu0 %v593, 64
  %v1468 = vpop.permute.xlu0 %1467
  %1469 = vrot.lane.b32.xlu0 %v598, 64
  %v1470 = vpop.permute.xlu0 %1469
  %1471 = vrot.lane.b32.xlu0 %v603, 64
  %v1472 = vpop.permute.xlu0 %1471
  %1473 = vrot.lane.b32.xlu0 %v608, 64
  %v1474 = vpop.permute.xlu0 %1473
  %1475 = vrot.lane.b32.xlu0 %v613, 64
  %v1476 = vpop.permute.xlu0 %1475
  %1477 = vrot.lane.b32.xlu0 %v618, 64
  %v1478 = vpop.permute.xlu0 %1477
  %1479 = vrot.lane.b32.xlu0 %v623, 64
  %v1480 = vpop.permute.xlu0 %1479
  %1481 = vrot.lane.b32.xlu0 %v628, 64
  %v1482 = vpop.permute.xlu0 %1481
  %1483 = vrot.lane.b32.xlu0 %v633, 64
  %v1484 = vpop.permute.xlu0 %1483
  %1485 = vrot.lane.b32.xlu0 %v638, 64
  %v1486 = vpop.permute.xlu0 %1485
  %1487 = vrot.lane.b32.xlu0 %v643, 64
  %v1488 = vpop.permute.xlu0 %1487
  %1489 = vrot.lane.b32.xlu0 %v648, 64
  %v1490 = vpop.permute.xlu0 %1489
  %1491 = vrot.lane.b32.xlu0 %v653, 64
  %v1492 = vpop.permute.xlu0 %1491
  %1493 = vrot.lane.b32.xlu0 %v658, 64
  %v1494 = vpop.permute.xlu0 %1493
  %1495 = vrot.lane.b32.xlu0 %v663, 64
  %v1496 = vpop.permute.xlu0 %1495
  %1497 = vrot.lane.b32.xlu0 %v668, 64
  %v1498 = vpop.permute.xlu0 %1497
  %1499 = vrot.lane.b32.xlu0 %v673, 64
  %v1500 = vpop.permute.xlu0 %1499
  %1501 = vrot.lane.b32.xlu0 %v678, 64
  %v1502 = vpop.permute.xlu0 %1501
  %1503 = vrot.lane.b32.xlu0 %v683, 64
  %v1504 = vpop.permute.xlu0 %1503
  %1505 = vrot.lane.b32.xlu0 %v688, 64
  %v1506 = vpop.permute.xlu0 %1505
  %1507 = vrot.lane.b32.xlu0 %v693, 64
  %v1508 = vpop.permute.xlu0 %1507
  %1509 = vrot.lane.b32.xlu0 %v698, 64
  %v1510 = vpop.permute.xlu0 %1509
  %1511 = vrot.lane.b32.xlu0 %v703, 64
  %v1512 = vpop.permute.xlu0 %1511
  %1513 = vrot.lane.b32.xlu0 %v708, 64
  %v1514 = vpop.permute.xlu0 %1513
  %1515 = vrot.lane.b32.xlu0 %v713, 64
  %v1516 = vpop.permute.xlu0 %1515
  %1517 = vrot.lane.b32.xlu0 %v718, 64
  %v1518 = vpop.permute.xlu0 %1517
  %1519 = vrot.lane.b32.xlu0 %v723, 64
  %v1520 = vpop.permute.xlu0 %1519
  %1521 = vrot.lane.b32.xlu0 %v728, 64
  %v1522 = vpop.permute.xlu0 %1521
  %1523 = vrot.lane.b32.xlu0 %v733, 64
  %v1524 = vpop.permute.xlu0 %1523
  %1525 = vrot.lane.b32.xlu0 %v738, 64
  %v1526 = vpop.permute.xlu0 %1525
  %vm1559 = vcmask 261120
  %1560 = vst.msk [vmem:[%s7] sm:$0xff] %vm1559, %v1464
  %1561 = vst.msk [vmem:[%s7 + $0x8] sm:$0xff] %vm1559, %v1466
  %1562 = vst.msk [vmem:[%s7 + $0x10] sm:$0xff] %vm1559, %v1468
  %1563 = vst.msk [vmem:[%s7 + $0x18] sm:$0xff] %vm1559, %v1470
  %1564 = vst.msk [vmem:[%s7 + $0x20] sm:$0xff] %vm1559, %v1472
  %1565 = vst.msk [vmem:[%s7 + $0x28] sm:$0xff] %vm1559, %v1474
  %1566 = vst.msk [vmem:[%s7 + $0x30] sm:$0xff] %vm1559, %v1476
  %1567 = vst.msk [vmem:[%s7 + $0x38] sm:$0xff] %vm1559, %v1478
  %1568 = vst.msk [vmem:[%s7 + $0x40] sm:$0xff] %vm1559, %v1480
  %1569 = vst.msk [vmem:[%s7 + $0x48] sm:$0xff] %vm1559, %v1482
  %1570 = vst.msk [vmem:[%s7 + $0x50] sm:$0xff] %vm1559, %v1484
  %1571 = vst.msk [vmem:[%s7 + $0x58] sm:$0xff] %vm1559, %v1486
  %1572 = vst.msk [vmem:[%s7 + $0x60] sm:$0xff] %vm1559, %v1488
  %1573 = vst.msk [vmem:[%s7 + $0x68] sm:$0xff] %vm1559, %v1490
  %1574 = vst.msk [vmem:[%s7 + $0x70] sm:$0xff] %vm1559, %v1492
  %1575 = vst.msk [vmem:[%s7 + $0x78] sm:$0xff] %vm1559, %v1494
  %1576 = vst.msk [vmem:[%s7 + $0x80] sm:$0xff] %vm1559, %v1496
  %1577 = vst.msk [vmem:[%s7 + $0x88] sm:$0xff] %vm1559, %v1498
  %1578 = vst.msk [vmem:[%s7 + $0x90] sm:$0xff] %vm1559, %v1500
  %1579 = vst.msk [vmem:[%s7 + $0x98] sm:$0xff] %vm1559, %v1502
  %1580 = vst.msk [vmem:[%s7 + $0xa0] sm:$0xff] %vm1559, %v1504
  %1581 = vst.msk [vmem:[%s7 + $0xa8] sm:$0xff] %vm1559, %v1506
  %1582 = vst.msk [vmem:[%s7 + $0xb0] sm:$0xff] %vm1559, %v1508
  %1583 = vst.msk [vmem:[%s7 + $0xb8] sm:$0xff] %vm1559, %v1510
  %1584 = vst.msk [vmem:[%s7 + $0xc0] sm:$0xff] %vm1559, %v1512
  %1585 = vst.msk [vmem:[%s7 + $0xc8] sm:$0xff] %vm1559, %v1514
  %1586 = vst.msk [vmem:[%s7 + $0xd0] sm:$0xff] %vm1559, %v1516
  %1587 = vst.msk [vmem:[%s7 + $0xd8] sm:$0xff] %vm1559, %v1518
  %1588 = vst.msk [vmem:[%s7 + $0xe0] sm:$0xff] %vm1559, %v1520
  %1589 = vst.msk [vmem:[%s7 + $0xe8] sm:$0xff] %vm1559, %v1522
  %1590 = vst.msk [vmem:[%s7 + $0xf0] sm:$0xff] %vm1559, %v1524
  %1591 = vst.msk [vmem:[%s7 + $0xf8] sm:$0xff] %vm1559, %v1526
  // Predicated region
  $region26: #{point_transformer_net.6} parent=0 // pred_check
    _
  $region27: #{point_transformer_net.6} parent=0 // pred_check_branch
    %1593 = sbr.rel (0) target = $region29
  $region28: #{point_transformer_net.6} parent=0 // pred_region
    _
  $region29: #{point_transformer_net.6} parent=0 // pred_fallthru
    _
  // Predicated region
  $region30: #{point_transformer_net.6} parent=0 // pred_check
    _
  $region31: #{point_transformer_net.6} parent=0 // pred_check_branch
    %1595 = sbr.rel (0) target = $region33
  $region32: #{point_transformer_net.6} parent=0 // pred_region
    _
  $region33: #{point_transformer_net.6} parent=0 // pred_fallthru
    _
  // Predicated region
  $region34: #{point_transformer_net.6} parent=0 // pred_check
    _
  $region35: #{point_transformer_net.6} parent=0 // pred_check_branch
    %1597 = sbr.rel (0) target = $region37
  $region36: #{point_transformer_net.6} parent=0 // pred_region
    _
  $region37: #{point_transformer_net.6} parent=0 // pred_fallthru
    _
  // Predicated region
  $region38: #{point_transformer_net.6} parent=0 // pred_check
    _
  $region39: #{point_transformer_net.6} parent=0 // pred_check_branch
    %1599 = sbr.rel (0) target = $region41
  $region40: #{point_transformer_net.6} parent=0 // pred_region
    _
  $region41: #{point_transformer_net.6} parent=0 // pred_fallthru
    _

// kernel: point_transformer_net.8
$region0: #{point_transformer_net.8}
  #allocation0 [shape = 'u32[]', space=smem, size = 0x4, offset = 0x4, fixed_abs, tag = 'smem constant byte address 0x4 - core index']
  #allocation1 [shape = 'u32[144,128]{1,0:T(1,128)}', space=vmem, size = 0x12000, scoped, tag = 'internal scratch']
  %s0 = inlined_call_operand.vmem [shape: bf16[256,32], index: 0, kind: input, shape index: {}]
  %s1 = inlined_call_operand.vmem [shape: f32[256,3], index: 1, kind: input, shape index: {}]
  %s2 = inlined_call_operand.vmem [shape: f32[32,96], index: 2, kind: input, shape index: {}]
  %s3 = inlined_call_operand.vmem [shape: f32[3,96], index: 3, kind: input, shape index: {}]
  %s4 = inlined_call_operand.vmem [shape: f32[1,32], index: 4, kind: input, shape index: {}]
  %s5 = inlined_call_operand.vmem [shape: f32[1,32], index: 5, kind: input, shape index: {}]
  %s6 = inlined_call_operand.vmem [shape: bf16[256,64], index: 6, kind: output, shape index: {0}]
  %s7 = inlined_call_operand.vmem [shape: f32[256,32], index: 7, kind: output, shape index: {1}]
  %8 = xla_tuple %s6, %s7
  %s9 = sld [smem:[#allocation0]]
  $region42: #{point_transformer_net.8} parent=0
    _
  %s11 = ssub.s32 1, %s9
  %s12 = scalar_select 0, %s11, %s9
  // Predicated region
  $region2: #{point_transformer_net.8} parent=0 // pred_check
    _
  $region3: #{point_transformer_net.8} parent=0 // pred_check_branch
    %14 = sbr.rel (0) target = $region5
  $region4: #{point_transformer_net.8} parent=0 // pred_region
    _
  $region5: #{point_transformer_net.8} parent=0 // pred_fallthru
    _
  // Predicated region
  $region6: #{point_transformer_net.8} parent=0 // pred_check
    _
  $region7: #{point_transformer_net.8} parent=0 // pred_check_branch
    %16 = sbr.rel (0) target = $region9
  $region8: #{point_transformer_net.8} parent=0 // pred_region
    _
  $region9: #{point_transformer_net.8} parent=0 // pred_fallthru
    _
  // Predicated region
  $region10: #{point_transformer_net.8} parent=0 // pred_check
    _
  $region11: #{point_transformer_net.8} parent=0 // pred_check_branch
    %18 = sbr.rel (0) target = $region13
  $region12: #{point_transformer_net.8} parent=0 // pred_region
    _
  $region13: #{point_transformer_net.8} parent=0 // pred_fallthru
    _
  // Predicated region
  $region14: #{point_transformer_net.8} parent=0 // pred_check
    _
  $region15: #{point_transformer_net.8} parent=0 // pred_check_branch
    %20 = sbr.rel (0) target = $region17
  $region16: #{point_transformer_net.8} parent=0 // pred_region
    _
  $region17: #{point_transformer_net.8} parent=0 // pred_fallthru
    _
  // Predicated region
  $region18: #{point_transformer_net.8} parent=0 // pred_check
    _
  $region19: #{point_transformer_net.8} parent=0 // pred_check_branch
    %22 = sbr.rel (0) target = $region21
  $region20: #{point_transformer_net.8} parent=0 // pred_region
    _
  $region21: #{point_transformer_net.8} parent=0 // pred_fallthru
    _
  // Predicated region
  $region22: #{point_transformer_net.8} parent=0 // pred_check
    _
  $region23: #{point_transformer_net.8} parent=0 // pred_check_branch
    %24 = sbr.rel (0) target = $region25
  $region24: #{point_transformer_net.8} parent=0 // pred_region
    _
  $region25: #{point_transformer_net.8} parent=0 // pred_fallthru
    _
  %v25 = vld [vmem:[%s0] sm:$0xf]
  %v26 = vld [vmem:[%s0 + $0x4] sm:$0xf]
  %v27 = vld [vmem:[%s0 + $0x8] sm:$0xf]
  %v28 = vld [vmem:[%s0 + $0xc] sm:$0xf]
  %v29 = vld [vmem:[%s0 + $0x10] sm:$0xf]
  %v30 = vld [vmem:[%s0 + $0x14] sm:$0xf]
  %v31 = vld [vmem:[%s0 + $0x18] sm:$0xf]
  %v32 = vld [vmem:[%s0 + $0x1c] sm:$0xf]
  %v33 = vld [vmem:[%s0 + $0x20] sm:$0xf]
  %v34 = vld [vmem:[%s0 + $0x24] sm:$0xf]
  %v35 = vld [vmem:[%s0 + $0x28] sm:$0xf]
  %v36 = vld [vmem:[%s0 + $0x2c] sm:$0xf]
  %v37 = vld [vmem:[%s0 + $0x30] sm:$0xf]
  %v38 = vld [vmem:[%s0 + $0x34] sm:$0xf]
  %v39 = vld [vmem:[%s0 + $0x38] sm:$0xf]
  %v40 = vld [vmem:[%s0 + $0x3c] sm:$0xf]
  %v41 = vld [vmem:[%s0 + $0x40] sm:$0xf]
  %v42 = vld [vmem:[%s0 + $0x44] sm:$0xf]
  %v43 = vld [vmem:[%s0 + $0x48] sm:$0xf]
  %v44 = vld [vmem:[%s0 + $0x4c] sm:$0xf]
  %v45 = vld [vmem:[%s0 + $0x50] sm:$0xf]
  %v46 = vld [vmem:[%s0 + $0x54] sm:$0xf]
  %v47 = vld [vmem:[%s0 + $0x58] sm:$0xf]
  %v48 = vld [vmem:[%s0 + $0x5c] sm:$0xf]
  %v49 = vld [vmem:[%s0 + $0x60] sm:$0xf]
  %v50 = vld [vmem:[%s0 + $0x64] sm:$0xf]
  %v51 = vld [vmem:[%s0 + $0x68] sm:$0xf]
  %v52 = vld [vmem:[%s0 + $0x6c] sm:$0xf]
  %v53 = vld [vmem:[%s0 + $0x70] sm:$0xf]
  %v54 = vld [vmem:[%s0 + $0x74] sm:$0xf]
  %v55 = vld [vmem:[%s0 + $0x78] sm:$0xf]
  %v56 = vld [vmem:[%s0 + $0x7c] sm:$0xf]
  %v57 = vunpack.c.l.bf16 %v25
  %v58 = vunpack.c.l.bf16 %v26
  %v59 = vunpack.c.l.bf16 %v27
  %v60 = vunpack.c.l.bf16 %v28
  %v61 = vunpack.c.l.bf16 %v29
  %v62 = vunpack.c.l.bf16 %v30
  %v63 = vunpack.c.l.bf16 %v31
  %v64 = vunpack.c.l.bf16 %v32
  %v65 = vunpack.c.l.bf16 %v33
  %v66 = vunpack.c.l.bf16 %v34
  %v67 = vunpack.c.l.bf16 %v35
  %v68 = vunpack.c.l.bf16 %v36
  %v69 = vunpack.c.l.bf16 %v37
  %v70 = vunpack.c.l.bf16 %v38
  %v71 = vunpack.c.l.bf16 %v39
  %v72 = vunpack.c.l.bf16 %v40
  %v73 = vunpack.c.l.bf16 %v41
  %v74 = vunpack.c.l.bf16 %v42
  %v75 = vunpack.c.l.bf16 %v43
  %v76 = vunpack.c.l.bf16 %v44
  %v77 = vunpack.c.l.bf16 %v45
  %v78 = vunpack.c.l.bf16 %v46
  %v79 = vunpack.c.l.bf16 %v47
  %v80 = vunpack.c.l.bf16 %v48
  %v81 = vunpack.c.l.bf16 %v49
  %v82 = vunpack.c.l.bf16 %v50
  %v83 = vunpack.c.l.bf16 %v51
  %v84 = vunpack.c.l.bf16 %v52
  %v85 = vunpack.c.l.bf16 %v53
  %v86 = vunpack.c.l.bf16 %v54
  %v87 = vunpack.c.l.bf16 %v55
  %v88 = vunpack.c.l.bf16 %v56
  %v89 = vld [vmem:[%s2] sm:$0xff]
  %v90 = vld [vmem:[%s2 + $0x8] sm:$0xff]
  %v91 = vld [vmem:[%s2 + $0x10] sm:$0xff]
  %v92 = vld [vmem:[%s2 + $0x18] sm:$0xff]
  %v93 = vld [vmem:[%s1] sm:$0xff]
  %v94 = vld [vmem:[%s1 + $0x8] sm:$0xff]
  %v95 = vld [vmem:[%s1 + $0x10] sm:$0xff]
  %v96 = vld [vmem:[%s1 + $0x18] sm:$0xff]
  %v97 = vld [vmem:[%s1 + $0x20] sm:$0xff]
  %v98 = vld [vmem:[%s1 + $0x28] sm:$0xff]
  %v99 = vld [vmem:[%s1 + $0x30] sm:$0xff]
  %v100 = vld [vmem:[%s1 + $0x38] sm:$0xff]
  %v101 = vld [vmem:[%s1 + $0x40] sm:$0xff]
  %v102 = vld [vmem:[%s1 + $0x48] sm:$0xff]
  %v103 = vld [vmem:[%s1 + $0x50] sm:$0xff]
  %v104 = vld [vmem:[%s1 + $0x58] sm:$0xff]
  %v105 = vld [vmem:[%s1 + $0x60] sm:$0xff]
  %v106 = vld [vmem:[%s1 + $0x68] sm:$0xff]
  %v107 = vld [vmem:[%s1 + $0x70] sm:$0xff]
  %v108 = vld [vmem:[%s1 + $0x78] sm:$0xff]
  %v109 = vld [vmem:[%s1 + $0x80] sm:$0xff]
  %v110 = vld [vmem:[%s1 + $0x88] sm:$0xff]
  %v111 = vld [vmem:[%s1 + $0x90] sm:$0xff]
  %v112 = vld [vmem:[%s1 + $0x98] sm:$0xff]
  %v113 = vld [vmem:[%s1 + $0xa0] sm:$0xff]
  %v114 = vld [vmem:[%s1 + $0xa8] sm:$0xff]
  %v115 = vld [vmem:[%s1 + $0xb0] sm:$0xff]
  %v116 = vld [vmem:[%s1 + $0xb8] sm:$0xff]
  %v117 = vld [vmem:[%s1 + $0xc0] sm:$0xff]
  %v118 = vld [vmem:[%s1 + $0xc8] sm:$0xff]
  %v119 = vld [vmem:[%s1 + $0xd0] sm:$0xff]
  %v120 = vld [vmem:[%s1 + $0xd8] sm:$0xff]
  %v121 = vld [vmem:[%s1 + $0xe0] sm:$0xff]
  %v122 = vld [vmem:[%s1 + $0xe8] sm:$0xff]
  %v123 = vld [vmem:[%s1 + $0xf0] sm:$0xff]
  %v124 = vld [vmem:[%s1 + $0xf8] sm:$0xff]
  %v125 = vld [vmem:[%s3] sm:$0x7]
  %vm126 = vcmask 23552
  %v128 = vsel %vm126, %v93, 0
  %v131 = vsel %vm126, %v94, 0
  %v134 = vsel %vm126, %v95, 0
  %v137 = vsel %vm126, %v96, 0
  %v140 = vsel %vm126, %v97, 0
  %v143 = vsel %vm126, %v98, 0
  %v146 = vsel %vm126, %v99, 0
  %v149 = vsel %vm126, %v100, 0
  %v152 = vsel %vm126, %v101, 0
  %v155 = vsel %vm126, %v102, 0
  %v158 = vsel %vm126, %v103, 0
  %v161 = vsel %vm126, %v104, 0
  %v164 = vsel %vm126, %v105, 0
  %v167 = vsel %vm126, %v106, 0
  %v170 = vsel %vm126, %v107, 0
  %v173 = vsel %vm126, %v108, 0
  %v176 = vsel %vm126, %v109, 0
  %v179 = vsel %vm126, %v110, 0
  %v182 = vsel %vm126, %v111, 0
  %v185 = vsel %vm126, %v112, 0
  %v188 = vsel %vm126, %v113, 0
  %v191 = vsel %vm126, %v114, 0
  %v194 = vsel %vm126, %v115, 0
  %v197 = vsel %vm126, %v116, 0
  %v200 = vsel %vm126, %v117, 0
  %v203 = vsel %vm126, %v118, 0
  %v206 = vsel %vm126, %v119, 0
  %v209 = vsel %vm126, %v120, 0
  %v212 = vsel %vm126, %v121, 0
  %v215 = vsel %vm126, %v122, 0
  %v218 = vsel %vm126, %v123, 0
  %v221 = vsel %vm126, %v124, 0
  %vm223 = vcmask 1042432
  %v225 = vsel %vm223, %v125, 0
  %227 = vmatprep.subr.mxu0 0.0
  %228 = vmatpush1.msra.mxu0 %v225
  %229 = vmatprep.subr.mxu0 0.0
  %230 = vmatpush1.msra.mxu0 0.0
  %231 = vmatprep.subr.mxu0 0.0
  %232 = vmatpush1.msra.mxu0 0.0
  %233 = vmatprep.subr.mxu0 0.0
  %234 = vmatpush1.msra.mxu0 0.0
  %235 = vmatprep.subr.mxu0 0.0
  %236 = vmatpush1.msra.mxu0 0.0
  %237 = vmatprep.subr.mxu0 0.0
  %238 = vmatpush1.msra.mxu0 0.0
  %239 = vmatprep.subr.mxu0 0.0
  %240 = vmatpush1.msra.mxu0 0.0
  %241 = vmatprep.subr.mxu0 0.0
  %242 = vmatpush1.msra.mxu0 0.0
  %243 = vmatprep.subr.mxu0 0.0
  %244 = vmatpush1.msra.mxu0 0.0
  %245 = vmatprep.subr.mxu0 0.0
  %246 = vmatpush1.msra.mxu0 0.0
  %247 = vmatprep.subr.mxu0 0.0
  %248 = vmatpush1.msra.mxu0 0.0
  %249 = vmatprep.subr.mxu0 0.0
  %250 = vmatpush1.msra.mxu0 0.0
  %251 = vmatprep.subr.mxu0 0.0
  %252 = vmatpush1.msra.mxu0 0.0
  %253 = vmatprep.subr.mxu0 0.0
  %254 = vmatpush1.msra.mxu0 0.0
  %255 = vmatprep.subr.mxu0 0.0
  %256 = vmatpush1.msra.mxu0 0.0
  %257 = vmatprep.subr.mxu0 0.0
  %258 = vmatpush1.msra.mxu0 0.0
  %259 = vmatprep.subr.mxu0 0.0
  %260 = vmatpush1.msra.mxu0 0.0
  %261 = vmatprep.subr.mxu0 0.0
  %262 = vmatpush1.msra.mxu0 0.0
  %263 = vmatprep.subr.mxu0 0.0
  %264 = vmatpush1.msra.mxu0 0.0
  %265 = vmatprep.subr.mxu0 0.0
  %266 = vmatpush1.msra.mxu0 0.0
  %267 = vmatprep.subr.mxu0 0.0
  %268 = vmatpush1.msra.mxu0 0.0
  %269 = vmatprep.subr.mxu0 0.0
  %270 = vmatpush1.msra.mxu0 0.0
  %271 = vmatprep.subr.mxu0 0.0
  %272 = vmatpush1.msra.mxu0 0.0
  %273 = vmatprep.subr.mxu0 0.0
  %274 = vmatpush1.msra.mxu0 0.0
  %275 = vmatprep.subr.mxu0 0.0
  %276 = vmatpush1.msra.mxu0 0.0
  %277 = vmatprep.subr.mxu0 0.0
  %278 = vmatpush1.msra.mxu0 0.0
  %279 = vmatprep.subr.mxu0 0.0
  %280 = vmatpush1.msra.mxu0 0.0
  %281 = vmatprep.subr.mxu0 0.0
  %282 = vmatpush1.msra.mxu0 0.0
  %283 = vmatprep.subr.mxu0 0.0
  %284 = vmatpush1.msra.mxu0 0.0
  %285 = vmatprep.subr.mxu0 0.0
  %286 = vmatpush1.msra.mxu0 0.0
  %287 = vmatprep.subr.mxu0 0.0
  %288 = vmatpush1.msra.mxu0 0.0
  %289 = vmatprep.subr.mxu0 0.0
  %290 = vmatpush1.msra.mxu0 0.0
  %291 = vmatprep.mubr.f32.mxu0 0.0
  %292 = vmatmul.mubr.f32.gmra.mrb[0].mxu0 %v128
  %v293 = vpop.f32.mrb[0].mxu0
  %v294 = vadd.f32 0.0, %v293
  %v295 = vpop.f32.mrb[0].mxu0
  %296 = vmatprep.mubr.f32.mxu0 0.0
  %297 = vmatmul.mubr.f32.gmra.mrb[0].mxu0 %v131
  %v298 = vpop.f32.mrb[0].mxu0
  %v299 = vadd.f32 0.0, %v298
  %v300 = vpop.f32.mrb[0].mxu0
  %301 = vmatprep.mubr.f32.mxu0 0.0
  %302 = vmatmul.mubr.f32.gmra.mrb[0].mxu0 %v134
  %v303 = vpop.f32.mrb[0].mxu0
  %v304 = vadd.f32 0.0, %v303
  %v305 = vpop.f32.mrb[0].mxu0
  %306 = vmatprep.mubr.f32.mxu0 0.0
  %307 = vmatmul.mubr.f32.gmra.mrb[0].mxu0 %v137
  %v308 = vpop.f32.mrb[0].mxu0
  %v309 = vadd.f32 0.0, %v308
  %v310 = vpop.f32.mrb[0].mxu0
  %311 = vmatprep.mubr.f32.mxu0 0.0
  %312 = vmatmul.mubr.f32.gmra.mrb[0].mxu0 %v140
  %v313 = vpop.f32.mrb[0].mxu0
  %v314 = vadd.f32 0.0, %v313
  %v315 = vpop.f32.mrb[0].mxu0
  %316 = vmatprep.mubr.f32.mxu0 0.0
  %317 = vmatmul.mubr.f32.gmra.mrb[0].mxu0 %v143
  %v318 = vpop.f32.mrb[0].mxu0
  %v319 = vadd.f32 0.0, %v318
  %v320 = vpop.f32.mrb[0].mxu0
  %321 = vmatprep.mubr.f32.mxu0 0.0
  %322 = vmatmul.mubr.f32.gmra.mrb[0].mxu0 %v146
  %v323 = vpop.f32.mrb[0].mxu0
  %v324 = vadd.f32 0.0, %v323
  %v325 = vpop.f32.mrb[0].mxu0
  %326 = vmatprep.mubr.f32.mxu0 0.0
  %327 = vmatmul.mubr.f32.gmra.mrb[0].mxu0 %v149
  %v328 = vpop.f32.mrb[0].mxu0
  %v329 = vadd.f32 0.0, %v328
  %v330 = vpop.f32.mrb[0].mxu0
  %331 = vmatprep.mubr.f32.mxu0 0.0
  %332 = vmatmul.mubr.f32.gmra.mrb[0].mxu0 %v152
  %v333 = vpop.f32.mrb[0].mxu0
  %v334 = vadd.f32 0.0, %v333
  %v335 = vpop.f32.mrb[0].mxu0
  %336 = vmatprep.mubr.f32.mxu0 0.0
  %337 = vmatmul.mubr.f32.gmra.mrb[0].mxu0 %v155
  %v338 = vpop.f32.mrb[0].mxu0
  %v339 = vadd.f32 0.0, %v338
  %v340 = vpop.f32.mrb[0].mxu0
  %341 = vmatprep.mubr.f32.mxu0 0.0
  %342 = vmatmul.mubr.f32.gmra.mrb[0].mxu0 %v158
  %v343 = vpop.f32.mrb[0].mxu0
  %v344 = vadd.f32 0.0, %v343
  %v345 = vpop.f32.mrb[0].mxu0
  %346 = vmatprep.mubr.f32.mxu0 0.0
  %347 = vmatmul.mubr.f32.gmra.mrb[0].mxu0 %v161
  %v348 = vpop.f32.mrb[0].mxu0
  %v349 = vadd.f32 0.0, %v348
  %v350 = vpop.f32.mrb[0].mxu0
  %351 = vmatprep.mubr.f32.mxu0 0.0
  %352 = vmatmul.mubr.f32.gmra.mrb[0].mxu0 %v164
  %v353 = vpop.f32.mrb[0].mxu0
  %v354 = vadd.f32 0.0, %v353
  %v355 = vpop.f32.mrb[0].mxu0
  %356 = vmatprep.mubr.f32.mxu0 0.0
  %357 = vmatmul.mubr.f32.gmra.mrb[0].mxu0 %v167
  %v358 = vpop.f32.mrb[0].mxu0
  %v359 = vadd.f32 0.0, %v358
  %v360 = vpop.f32.mrb[0].mxu0
  %361 = vmatprep.mubr.f32.mxu0 0.0
  %362 = vmatmul.mubr.f32.gmra.mrb[0].mxu0 %v170
  %v363 = vpop.f32.mrb[0].mxu0
  %v364 = vadd.f32 0.0, %v363
  %v365 = vpop.f32.mrb[0].mxu0
  %366 = vmatprep.mubr.f32.mxu0 0.0
  %367 = vmatmul.mubr.f32.gmra.mrb[0].mxu0 %v173
  %v368 = vpop.f32.mrb[0].mxu0
  %v369 = vadd.f32 0.0, %v368
  %v370 = vpop.f32.mrb[0].mxu0
  %371 = vmatprep.mubr.f32.mxu0 0.0
  %372 = vmatmul.mubr.f32.gmra.mrb[0].mxu0 %v176
  %v373 = vpop.f32.mrb[0].mxu0
  %v374 = vadd.f32 0.0, %v373
  %v375 = vpop.f32.mrb[0].mxu0
  %376 = vmatprep.mubr.f32.mxu0 0.0
  %377 = vmatmul.mubr.f32.gmra.mrb[0].mxu0 %v179
  %v378 = vpop.f32.mrb[0].mxu0
  %v379 = vadd.f32 0.0, %v378
  %v380 = vpop.f32.mrb[0].mxu0
  %381 = vmatprep.mubr.f32.mxu0 0.0
  %382 = vmatmul.mubr.f32.gmra.mrb[0].mxu0 %v182
  %v383 = vpop.f32.mrb[0].mxu0
  %v384 = vadd.f32 0.0, %v383
  %v385 = vpop.f32.mrb[0].mxu0
  %386 = vmatprep.mubr.f32.mxu0 0.0
  %387 = vmatmul.mubr.f32.gmra.mrb[0].mxu0 %v185
  %v388 = vpop.f32.mrb[0].mxu0
  %v389 = vadd.f32 0.0, %v388
  %v390 = vpop.f32.mrb[0].mxu0
  %391 = vmatprep.mubr.f32.mxu0 0.0
  %392 = vmatmul.mubr.f32.gmra.mrb[0].mxu0 %v188
  %v393 = vpop.f32.mrb[0].mxu0
  %v394 = vadd.f32 0.0, %v393
  %v395 = vpop.f32.mrb[0].mxu0
  %396 = vmatprep.mubr.f32.mxu0 0.0
  %397 = vmatmul.mubr.f32.gmra.mrb[0].mxu0 %v191
  %v398 = vpop.f32.mrb[0].mxu0
  %v399 = vadd.f32 0.0, %v398
  %v400 = vpop.f32.mrb[0].mxu0
  %401 = vmatprep.mubr.f32.mxu0 0.0
  %402 = vmatmul.mubr.f32.gmra.mrb[0].mxu0 %v194
  %v403 = vpop.f32.mrb[0].mxu0
  %v404 = vadd.f32 0.0, %v403
  %v405 = vpop.f32.mrb[0].mxu0
  %406 = vmatprep.mubr.f32.mxu0 0.0
  %407 = vmatmul.mubr.f32.gmra.mrb[0].mxu0 %v197
  %v408 = vpop.f32.mrb[0].mxu0
  %v409 = vadd.f32 0.0, %v408
  %v410 = vpop.f32.mrb[0].mxu0
  %411 = vmatprep.mubr.f32.mxu0 0.0
  %412 = vmatmul.mubr.f32.gmra.mrb[0].mxu0 %v200
  %v413 = vpop.f32.mrb[0].mxu0
  %v414 = vadd.f32 0.0, %v413
  %v415 = vpop.f32.mrb[0].mxu0
  %416 = vmatprep.mubr.f32.mxu0 0.0
  %417 = vmatmul.mubr.f32.gmra.mrb[0].mxu0 %v203
  %v418 = vpop.f32.mrb[0].mxu0
  %v419 = vadd.f32 0.0, %v418
  %v420 = vpop.f32.mrb[0].mxu0
  %421 = vmatprep.mubr.f32.mxu0 0.0
  %422 = vmatmul.mubr.f32.gmra.mrb[0].mxu0 %v206
  %v423 = vpop.f32.mrb[0].mxu0
  %v424 = vadd.f32 0.0, %v423
  %v425 = vpop.f32.mrb[0].mxu0
  %426 = vmatprep.mubr.f32.mxu0 0.0
  %427 = vmatmul.mubr.f32.gmra.mrb[0].mxu0 %v209
  %v428 = vpop.f32.mrb[0].mxu0
  %v429 = vadd.f32 0.0, %v428
  %v430 = vpop.f32.mrb[0].mxu0
  %431 = vmatprep.mubr.f32.mxu0 0.0
  %432 = vmatmul.mubr.f32.gmra.mrb[0].mxu0 %v212
  %v433 = vpop.f32.mrb[0].mxu0
  %v434 = vadd.f32 0.0, %v433
  %v435 = vpop.f32.mrb[0].mxu0
  %436 = vmatprep.mubr.f32.mxu0 0.0
  %437 = vmatmul.mubr.f32.gmra.mrb[0].mxu0 %v215
  %v438 = vpop.f32.mrb[0].mxu0
  %v439 = vadd.f32 0.0, %v438
  %v440 = vpop.f32.mrb[0].mxu0
  %441 = vmatprep.mubr.f32.mxu0 0.0
  %442 = vmatmul.mubr.f32.gmra.mrb[0].mxu0 %v218
  %v443 = vpop.f32.mrb[0].mxu0
  %v444 = vadd.f32 0.0, %v443
  %v445 = vpop.f32.mrb[0].mxu0
  %446 = vmatprep.mubr.f32.mxu0 0.0
  %447 = vmatmul.mubr.f32.gmra.mrb[0].mxu0 %v221
  %v448 = vpop.f32.mrb[0].mxu0
  %v449 = vadd.f32 0.0, %v448
  %v450 = vpop.f32.mrb[0].mxu0
  %451 = vdwg.mxu0
  %vm452 = vcmask 261120
  %v454 = vsel %vm452, %v57, 0
  %v457 = vsel %vm452, %v58, 0
  %v460 = vsel %vm452, %v59, 0
  %v463 = vsel %vm452, %v60, 0
  %v466 = vsel %vm452, %v61, 0
  %v469 = vsel %vm452, %v62, 0
  %v472 = vsel %vm452, %v63, 0
  %v475 = vsel %vm452, %v64, 0
  %v478 = vsel %vm452, %v65, 0
  %v481 = vsel %vm452, %v66, 0
  %v484 = vsel %vm452, %v67, 0
  %v487 = vsel %vm452, %v68, 0
  %v490 = vsel %vm452, %v69, 0
  %v493 = vsel %vm452, %v70, 0
  %v496 = vsel %vm452, %v71, 0
  %v499 = vsel %vm452, %v72, 0
  %v502 = vsel %vm452, %v73, 0
  %v505 = vsel %vm452, %v74, 0
  %v508 = vsel %vm452, %v75, 0
  %v511 = vsel %vm452, %v76, 0
  %v514 = vsel %vm452, %v77, 0
  %v517 = vsel %vm452, %v78, 0
  %v520 = vsel %vm452, %v79, 0
  %v523 = vsel %vm452, %v80, 0
  %v526 = vsel %vm452, %v81, 0
  %v529 = vsel %vm452, %v82, 0
  %v532 = vsel %vm452, %v83, 0
  %v535 = vsel %vm452, %v84, 0
  %v538 = vsel %vm452, %v85, 0
  %v541 = vsel %vm452, %v86, 0
  %v544 = vsel %vm452, %v87, 0
  %v547 = vsel %vm452, %v88, 0
  %549 = vmatprep.subr.mxu0 0.0
  %550 = vmatpush1.msra.mxu0 %v89
  %551 = vmatprep.subr.mxu0 0.0
  %552 = vmatpush1.msra.mxu0 %v90
  %553 = vmatprep.subr.mxu0 0.0
  %554 = vmatpush1.msra.mxu0 %v91
  %555 = vmatprep.subr.mxu0 0.0
  %556 = vmatpush1.msra.mxu0 %v92
  %557 = vmatprep.subr.mxu0 0.0
  %558 = vmatpush1.msra.mxu0 0.0
  %559 = vmatprep.subr.mxu0 0.0
  %560 = vmatpush1.msra.mxu0 0.0
  %561 = vmatprep.subr.mxu0 0.0
  %562 = vmatpush1.msra.mxu0 0.0
  %563 = vmatprep.subr.mxu0 0.0
  %564 = vmatpush1.msra.mxu0 0.0
  %565 = vmatprep.subr.mxu0 0.0
  %566 = vmatpush1.msra.mxu0 0.0
  %567 = vmatprep.subr.mxu0 0.0
  %568 = vmatpush1.msra.mxu0 0.0
  %569 = vmatprep.subr.mxu0 0.0
  %570 = vmatpush1.msra.mxu0 0.0
  %571 = vmatprep.subr.mxu0 0.0
  %572 = vmatpush1.msra.mxu0 0.0
  %573 = vmatprep.subr.mxu0 0.0
  %574 = vmatpush1.msra.mxu0 0.0
  %575 = vmatprep.subr.mxu0 0.0
  %576 = vmatpush1.msra.mxu0 0.0
  %577 = vmatprep.subr.mxu0 0.0
  %578 = vmatpush1.msra.mxu0 0.0
  %579 = vmatprep.subr.mxu0 0.0
  %580 = vmatpush1.msra.mxu0 0.0
  %581 = vmatprep.subr.mxu0 0.0
  %582 = vmatpush1.msra.mxu0 0.0
  %583 = vmatprep.subr.mxu0 0.0
  %584 = vmatpush1.msra.mxu0 0.0
  %585 = vmatprep.subr.mxu0 0.0
  %586 = vmatpush1.msra.mxu0 0.0
  %587 = vmatprep.subr.mxu0 0.0
  %588 = vmatpush1.msra.mxu0 0.0
  %589 = vmatprep.subr.mxu0 0.0
  %590 = vmatpush1.msra.mxu0 0.0
  %591 = vmatprep.subr.mxu0 0.0
  %592 = vmatpush1.msra.mxu0 0.0
  %593 = vmatprep.subr.mxu0 0.0
  %594 = vmatpush1.msra.mxu0 0.0
  %595 = vmatprep.subr.mxu0 0.0
  %596 = vmatpush1.msra.mxu0 0.0
  %597 = vmatprep.subr.mxu0 0.0
  %598 = vmatpush1.msra.mxu0 0.0
  %599 = vmatprep.subr.mxu0 0.0
  %600 = vmatpush1.msra.mxu0 0.0
  %601 = vmatprep.subr.mxu0 0.0
  %602 = vmatpush1.msra.mxu0 0.0
  %603 = vmatprep.subr.mxu0 0.0
  %604 = vmatpush1.msra.mxu0 0.0
  %605 = vmatprep.subr.mxu0 0.0
  %606 = vmatpush1.msra.mxu0 0.0
  %607 = vmatprep.subr.mxu0 0.0
  %608 = vmatpush1.msra.mxu0 0.0
  %609 = vmatprep.subr.mxu0 0.0
  %610 = vmatpush1.msra.mxu0 0.0
  %611 = vmatprep.subr.mxu0 0.0
  %612 = vmatpush1.msra.mxu0 0.0
  %613 = vmatprep.mubr.f32.mxu0 0.0
  %614 = vmatmul.mubr.f32.gmra.mrb[0].mxu0 %v454
  %v615 = vpop.f32.mrb[0].mxu0
  %v616 = vadd.f32 %v294, %v615
  %v617 = vpop.f32.mrb[0].mxu0
  %618 = vmatprep.mubr.f32.mxu0 0.0
  %619 = vmatmul.mubr.f32.gmra.mrb[0].mxu0 %v457
  %v620 = vpop.f32.mrb[0].mxu0
  %v621 = vadd.f32 %v299, %v620
  %v622 = vpop.f32.mrb[0].mxu0
  %623 = vmatprep.mubr.f32.mxu0 0.0
  %624 = vmatmul.mubr.f32.gmra.mrb[0].mxu0 %v460
  %v625 = vpop.f32.mrb[0].mxu0
  %v626 = vadd.f32 %v304, %v625
  %v627 = vpop.f32.mrb[0].mxu0
  %628 = vmatprep.mubr.f32.mxu0 0.0
  %629 = vmatmul.mubr.f32.gmra.mrb[0].mxu0 %v463
  %v630 = vpop.f32.mrb[0].mxu0
  %v631 = vadd.f32 %v309, %v630
  %v632 = vpop.f32.mrb[0].mxu0
  %633 = vmatprep.mubr.f32.mxu0 0.0
  %634 = vmatmul.mubr.f32.gmra.mrb[0].mxu0 %v466
  %v635 = vpop.f32.mrb[0].mxu0
  %v636 = vadd.f32 %v314, %v635
  %v637 = vpop.f32.mrb[0].mxu0
  %638 = vmatprep.mubr.f32.mxu0 0.0
  %639 = vmatmul.mubr.f32.gmra.mrb[0].mxu0 %v469
  %v640 = vpop.f32.mrb[0].mxu0
  %v641 = vadd.f32 %v319, %v640
  %v642 = vpop.f32.mrb[0].mxu0
  %643 = vmatprep.mubr.f32.mxu0 0.0
  %644 = vmatmul.mubr.f32.gmra.mrb[0].mxu0 %v472
  %v645 = vpop.f32.mrb[0].mxu0
  %v646 = vadd.f32 %v324, %v645
  %v647 = vpop.f32.mrb[0].mxu0
  %648 = vmatprep.mubr.f32.mxu0 0.0
  %649 = vmatmul.mubr.f32.gmra.mrb[0].mxu0 %v475
  %v650 = vpop.f32.mrb[0].mxu0
  %v651 = vadd.f32 %v329, %v650
  %v652 = vpop.f32.mrb[0].mxu0
  %653 = vmatprep.mubr.f32.mxu0 0.0
  %654 = vmatmul.mubr.f32.gmra.mrb[0].mxu0 %v478
  %v655 = vpop.f32.mrb[0].mxu0
  %v656 = vadd.f32 %v334, %v655
  %v657 = vpop.f32.mrb[0].mxu0
  %658 = vmatprep.mubr.f32.mxu0 0.0
  %659 = vmatmul.mubr.f32.gmra.mrb[0].mxu0 %v481
  %v660 = vpop.f32.mrb[0].mxu0
  %v661 = vadd.f32 %v339, %v660
  %v662 = vpop.f32.mrb[0].mxu0
  %663 = vmatprep.mubr.f32.mxu0 0.0
  %664 = vmatmul.mubr.f32.gmra.mrb[0].mxu0 %v484
  %v665 = vpop.f32.mrb[0].mxu0
  %v666 = vadd.f32 %v344, %v665
  %v667 = vpop.f32.mrb[0].mxu0
  %668 = vmatprep.mubr.f32.mxu0 0.0
  %669 = vmatmul.mubr.f32.gmra.mrb[0].mxu0 %v487
  %v670 = vpop.f32.mrb[0].mxu0
  %v671 = vadd.f32 %v349, %v670
  %v672 = vpop.f32.mrb[0].mxu0
  %673 = vmatprep.mubr.f32.mxu0 0.0
  %674 = vmatmul.mubr.f32.gmra.mrb[0].mxu0 %v490
  %v675 = vpop.f32.mrb[0].mxu0
  %v676 = vadd.f32 %v354, %v675
  %v677 = vpop.f32.mrb[0].mxu0
  %678 = vmatprep.mubr.f32.mxu0 0.0
  %679 = vmatmul.mubr.f32.gmra.mrb[0].mxu0 %v493
  %v680 = vpop.f32.mrb[0].mxu0
  %v681 = vadd.f32 %v359, %v680
  %v682 = vpop.f32.mrb[0].mxu0
  %683 = vmatprep.mubr.f32.mxu0 0.0
  %684 = vmatmul.mubr.f32.gmra.mrb[0].mxu0 %v496
  %v685 = vpop.f32.mrb[0].mxu0
  %v686 = vadd.f32 %v364, %v685
  %v687 = vpop.f32.mrb[0].mxu0
  %688 = vmatprep.mubr.f32.mxu0 0.0
  %689 = vmatmul.mubr.f32.gmra.mrb[0].mxu0 %v499
  %v690 = vpop.f32.mrb[0].mxu0
  %v691 = vadd.f32 %v369, %v690
  %v692 = vpop.f32.mrb[0].mxu0
  %693 = vmatprep.mubr.f32.mxu0 0.0
  %694 = vmatmul.mubr.f32.gmra.mrb[0].mxu0 %v502
  %v695 = vpop.f32.mrb[0].mxu0
  %v696 = vadd.f32 %v374, %v695
  %v697 = vpop.f32.mrb[0].mxu0
  %698 = vmatprep.mubr.f32.mxu0 0.0
  %699 = vmatmul.mubr.f32.gmra.mrb[0].mxu0 %v505
  %v700 = vpop.f32.mrb[0].mxu0
  %v701 = vadd.f32 %v379, %v700
  %v702 = vpop.f32.mrb[0].mxu0
  %703 = vmatprep.mubr.f32.mxu0 0.0
  %704 = vmatmul.mubr.f32.gmra.mrb[0].mxu0 %v508
  %v705 = vpop.f32.mrb[0].mxu0
  %v706 = vadd.f32 %v384, %v705
  %v707 = vpop.f32.mrb[0].mxu0
  %708 = vmatprep.mubr.f32.mxu0 0.0
  %709 = vmatmul.mubr.f32.gmra.mrb[0].mxu0 %v511
  %v710 = vpop.f32.mrb[0].mxu0
  %v711 = vadd.f32 %v389, %v710
  %v712 = vpop.f32.mrb[0].mxu0
  %713 = vmatprep.mubr.f32.mxu0 0.0
  %714 = vmatmul.mubr.f32.gmra.mrb[0].mxu0 %v514
  %v715 = vpop.f32.mrb[0].mxu0
  %v716 = vadd.f32 %v394, %v715
  %v717 = vpop.f32.mrb[0].mxu0
  %718 = vmatprep.mubr.f32.mxu0 0.0
  %719 = vmatmul.mubr.f32.gmra.mrb[0].mxu0 %v517
  %v720 = vpop.f32.mrb[0].mxu0
  %v721 = vadd.f32 %v399, %v720
  %v722 = vpop.f32.mrb[0].mxu0
  %723 = vmatprep.mubr.f32.mxu0 0.0
  %724 = vmatmul.mubr.f32.gmra.mrb[0].mxu0 %v520
  %v725 = vpop.f32.mrb[0].mxu0
  %v726 = vadd.f32 %v404, %v725
  %v727 = vpop.f32.mrb[0].mxu0
  %728 = vmatprep.mubr.f32.mxu0 0.0
  %729 = vmatmul.mubr.f32.gmra.mrb[0].mxu0 %v523
  %v730 = vpop.f32.mrb[0].mxu0
  %v731 = vadd.f32 %v409, %v730
  %v732 = vpop.f32.mrb[0].mxu0
  %733 = vmatprep.mubr.f32.mxu0 0.0
  %734 = vmatmul.mubr.f32.gmra.mrb[0].mxu0 %v526
  %v735 = vpop.f32.mrb[0].mxu0
  %v736 = vadd.f32 %v414, %v735
  %v737 = vpop.f32.mrb[0].mxu0
  %738 = vmatprep.mubr.f32.mxu0 0.0
  %739 = vmatmul.mubr.f32.gmra.mrb[0].mxu0 %v529
  %v740 = vpop.f32.mrb[0].mxu0
  %v741 = vadd.f32 %v419, %v740
  %v742 = vpop.f32.mrb[0].mxu0
  %743 = vmatprep.mubr.f32.mxu0 0.0
  %744 = vmatmul.mubr.f32.gmra.mrb[0].mxu0 %v532
  %v745 = vpop.f32.mrb[0].mxu0
  %v746 = vadd.f32 %v424, %v745
  %v747 = vpop.f32.mrb[0].mxu0
  %748 = vmatprep.mubr.f32.mxu0 0.0
  %749 = vmatmul.mubr.f32.gmra.mrb[0].mxu0 %v535
  %v750 = vpop.f32.mrb[0].mxu0
  %v751 = vadd.f32 %v429, %v750
  %v752 = vpop.f32.mrb[0].mxu0
  %753 = vmatprep.mubr.f32.mxu0 0.0
  %754 = vmatmul.mubr.f32.gmra.mrb[0].mxu0 %v538
  %v755 = vpop.f32.mrb[0].mxu0
  %v756 = vadd.f32 %v434, %v755
  %v757 = vpop.f32.mrb[0].mxu0
  %758 = vmatprep.mubr.f32.mxu0 0.0
  %759 = vmatmul.mubr.f32.gmra.mrb[0].mxu0 %v541
  %v760 = vpop.f32.mrb[0].mxu0
  %v761 = vadd.f32 %v439, %v760
  %v762 = vpop.f32.mrb[0].mxu0
  %763 = vmatprep.mubr.f32.mxu0 0.0
  %764 = vmatmul.mubr.f32.gmra.mrb[0].mxu0 %v544
  %v765 = vpop.f32.mrb[0].mxu0
  %v766 = vadd.f32 %v444, %v765
  %v767 = vpop.f32.mrb[0].mxu0
  %768 = vmatprep.mubr.f32.mxu0 0.0
  %769 = vmatmul.mubr.f32.gmra.mrb[0].mxu0 %v547
  %v770 = vpop.f32.mrb[0].mxu0
  %v771 = vadd.f32 %v449, %v770
  %v772 = vpop.f32.mrb[0].mxu0
  %773 = vdwg.mxu0
  %v774 = vld [vmem:[%s5] sm:$0x1]
  %v776 = vlaneseq
  %v777 = vshrl.u32 %v776, 7
  %v778 = vsub.s32 0, %v777
  %v779 = vrot.slane %v774, %v778
  %v781 = vsub.f32 %v779, %v616
  %v782 = vsub.f32 %v779, %v621
  %v783 = vsub.f32 %v779, %v626
  %v784 = vsub.f32 %v779, %v631
  %v785 = vsub.f32 %v779, %v636
  %v786 = vsub.f32 %v779, %v641
  %v787 = vsub.f32 %v779, %v646
  %v788 = vsub.f32 %v779, %v651
  %v789 = vsub.f32 %v779, %v656
  %v790 = vsub.f32 %v779, %v661
  %v791 = vsub.f32 %v779, %v666
  %v792 = vsub.f32 %v779, %v671
  %v793 = vsub.f32 %v779, %v676
  %v794 = vsub.f32 %v779, %v681
  %v795 = vsub.f32 %v779, %v686
  %v796 = vsub.f32 %v779, %v691
  %v797 = vsub.f32 %v779, %v696
  %v798 = vsub.f32 %v779, %v701
  %v799 = vsub.f32 %v779, %v706
  %v800 = vsub.f32 %v779, %v711
  %v801 = vsub.f32 %v779, %v716
  %v802 = vsub.f32 %v779, %v721
  %v803 = vsub.f32 %v779, %v726
  %v804 = vsub.f32 %v779, %v731
  %v805 = vsub.f32 %v779, %v736
  %v806 = vsub.f32 %v779, %v741
  %v807 = vsub.f32 %v779, %v746
  %v808 = vsub.f32 %v779, %v751
  %v809 = vsub.f32 %v779, %v756
  %v810 = vsub.f32 %v779, %v761
  %v811 = vsub.f32 %v779, %v766
  %v812 = vsub.f32 %v779, %v771
  %v813 = vmul.f32 %v781, 1.442695
  %v814 = vpow.pop %v813
  %v815 = vmul.f32 %v782, 1.442695
  %v816 = vpow.pop %v815
  %v817 = vmul.f32 %v783, 1.442695
  %v818 = vpow.pop %v817
  %v819 = vmul.f32 %v784, 1.442695
  %v820 = vpow.pop %v819
  %v821 = vmul.f32 %v785, 1.442695
  %v822 = vpow.pop %v821
  %v823 = vmul.f32 %v786, 1.442695
  %v824 = vpow.pop %v823
  %v825 = vmul.f32 %v787, 1.442695
  %v826 = vpow.pop %v825
  %v827 = vmul.f32 %v788, 1.442695
  %v828 = vpow.pop %v827
  %v829 = vmul.f32 %v789, 1.442695
  %v830 = vpow.pop %v829
  %v831 = vmul.f32 %v790, 1.442695
  %v832 = vpow.pop %v831
  %v833 = vmul.f32 %v791, 1.442695
  %v834 = vpow.pop %v833
  %v835 = vmul.f32 %v792, 1.442695
  %v836 = vpow.pop %v835
  %v837 = vmul.f32 %v793, 1.442695
  %v838 = vpow.pop %v837
  %v839 = vmul.f32 %v794, 1.442695
  %v840 = vpow.pop %v839
  %v841 = vmul.f32 %v795, 1.442695
  %v842 = vpow.pop %v841
  %v843 = vmul.f32 %v796, 1.442695
  %v844 = vpow.pop %v843
  %v845 = vmul.f32 %v797, 1.442695
  %v846 = vpow.pop %v845
  %v847 = vmul.f32 %v798, 1.442695
  %v848 = vpow.pop %v847
  %v849 = vmul.f32 %v799, 1.442695
  %v850 = vpow.pop %v849
  %v851 = vmul.f32 %v800, 1.442695
  %v852 = vpow.pop %v851
  %v853 = vmul.f32 %v801, 1.442695
  %v854 = vpow.pop %v853
  %v855 = vmul.f32 %v802, 1.442695
  %v856 = vpow.pop %v855
  %v857 = vmul.f32 %v803, 1.442695
  %v858 = vpow.pop %v857
  %v859 = vmul.f32 %v804, 1.442695
  %v860 = vpow.pop %v859
  %v861 = vmul.f32 %v805, 1.442695
  %v862 = vpow.pop %v861
  %v863 = vmul.f32 %v806, 1.442695
  %v864 = vpow.pop %v863
  %v865 = vmul.f32 %v807, 1.442695
  %v866 = vpow.pop %v865
  %v867 = vmul.f32 %v808, 1.442695
  %v868 = vpow.pop %v867
  %v869 = vmul.f32 %v809, 1.442695
  %v870 = vpow.pop %v869
  %v871 = vmul.f32 %v810, 1.442695
  %v872 = vpow.pop %v871
  %v873 = vmul.f32 %v811, 1.442695
  %v874 = vpow.pop %v873
  %v875 = vmul.f32 %v812, 1.442695
  %v876 = vpow.pop %v875
  %v877 = vld [vmem:[%s4] sm:$0x1]
  %v879 = vlaneseq
  %v880 = vshrl.u32 %v879, 7
  %v881 = vsub.s32 0, %v880
  %v882 = vrot.slane %v877, %v881
  %883 = vrot.lane.b32.xlu0 %v882, 32
  %v884 = vpop.permute.xlu0 %883
  %v886 = vadd.f32 %v616, %v884
  %v887 = vadd.f32 %v621, %v884
  %v888 = vadd.f32 %v626, %v884
  %v889 = vadd.f32 %v631, %v884
  %v890 = vadd.f32 %v636, %v884
  %v891 = vadd.f32 %v641, %v884
  %v892 = vadd.f32 %v646, %v884
  %v893 = vadd.f32 %v651, %v884
  %v894 = vadd.f32 %v656, %v884
  %v895 = vadd.f32 %v661, %v884
  %v896 = vadd.f32 %v666, %v884
  %v897 = vadd.f32 %v671, %v884
  %v898 = vadd.f32 %v676, %v884
  %v899 = vadd.f32 %v681, %v884
  %v900 = vadd.f32 %v686, %v884
  %v901 = vadd.f32 %v691, %v884
  %v902 = vadd.f32 %v696, %v884
  %v903 = vadd.f32 %v701, %v884
  %v904 = vadd.f32 %v706, %v884
  %v905 = vadd.f32 %v711, %v884
  %v906 = vadd.f32 %v716, %v884
  %v907 = vadd.f32 %v721, %v884
  %v908 = vadd.f32 %v726, %v884
  %v909 = vadd.f32 %v731, %v884
  %v910 = vadd.f32 %v736, %v884
  %v911 = vadd.f32 %v741, %v884
  %v912 = vadd.f32 %v746, %v884
  %v913 = vadd.f32 %v751, %v884
  %v914 = vadd.f32 %v756, %v884
  %v915 = vadd.f32 %v761, %v884
  %v916 = vadd.f32 %v766, %v884
  %v917 = vadd.f32 %v771, %v884
  %950 = vrot.lane.b32.xlu0 %v886, 96
  %v951 = vpop.permute.xlu0 %950
  %952 = vrot.lane.b32.xlu0 %v887, 96
  %v953 = vpop.permute.xlu0 %952
  %954 = vrot.lane.b32.xlu0 %v888, 96
  %v955 = vpop.permute.xlu0 %954
  %956 = vrot.lane.b32.xlu0 %v889, 96
  %v957 = vpop.permute.xlu0 %956
  %958 = vrot.lane.b32.xlu0 %v890, 96
  %v959 = vpop.permute.xlu0 %958
  %960 = vrot.lane.b32.xlu0 %v891, 96
  %v961 = vpop.permute.xlu0 %960
  %962 = vrot.lane.b32.xlu0 %v892, 96
  %v963 = vpop.permute.xlu0 %962
  %964 = vrot.lane.b32.xlu0 %v893, 96
  %v965 = vpop.permute.xlu0 %964
  %966 = vrot.lane.b32.xlu0 %v894, 96
  %v967 = vpop.permute.xlu0 %966
  %968 = vrot.lane.b32.xlu0 %v895, 96
  %v969 = vpop.permute.xlu0 %968
  %970 = vrot.lane.b32.xlu0 %v896, 96
  %v971 = vpop.permute.xlu0 %970
  %972 = vrot.lane.b32.xlu0 %v897, 96
  %v973 = vpop.permute.xlu0 %972
  %974 = vrot.lane.b32.xlu0 %v898, 96
  %v975 = vpop.permute.xlu0 %974
  %976 = vrot.lane.b32.xlu0 %v899, 96
  %v977 = vpop.permute.xlu0 %976
  %978 = vrot.lane.b32.xlu0 %v900, 96
  %v979 = vpop.permute.xlu0 %978
  %980 = vrot.lane.b32.xlu0 %v901, 96
  %v981 = vpop.permute.xlu0 %980
  %982 = vrot.lane.b32.xlu0 %v902, 96
  %v983 = vpop.permute.xlu0 %982
  %984 = vrot.lane.b32.xlu0 %v903, 96
  %v985 = vpop.permute.xlu0 %984
  %986 = vrot.lane.b32.xlu0 %v904, 96
  %v987 = vpop.permute.xlu0 %986
  %988 = vrot.lane.b32.xlu0 %v905, 96
  %v989 = vpop.permute.xlu0 %988
  %990 = vrot.lane.b32.xlu0 %v906, 96
  %v991 = vpop.permute.xlu0 %990
  %992 = vrot.lane.b32.xlu0 %v907, 96
  %v993 = vpop.permute.xlu0 %992
  %994 = vrot.lane.b32.xlu0 %v908, 96
  %v995 = vpop.permute.xlu0 %994
  %996 = vrot.lane.b32.xlu0 %v909, 96
  %v997 = vpop.permute.xlu0 %996
  %998 = vrot.lane.b32.xlu0 %v910, 96
  %v999 = vpop.permute.xlu0 %998
  %1000 = vrot.lane.b32.xlu0 %v911, 96
  %v1001 = vpop.permute.xlu0 %1000
  %1002 = vrot.lane.b32.xlu0 %v912, 96
  %v1003 = vpop.permute.xlu0 %1002
  %1004 = vrot.lane.b32.xlu0 %v913, 96
  %v1005 = vpop.permute.xlu0 %1004
  %1006 = vrot.lane.b32.xlu0 %v914, 96
  %v1007 = vpop.permute.xlu0 %1006
  %1008 = vrot.lane.b32.xlu0 %v915, 96
  %v1009 = vpop.permute.xlu0 %1008
  %1010 = vrot.lane.b32.xlu0 %v916, 96
  %v1011 = vpop.permute.xlu0 %1010
  %1012 = vrot.lane.b32.xlu0 %v917, 96
  %v1013 = vpop.permute.xlu0 %1012
  %v1046 = vmul.f32 %v814, %v951
  %v1047 = vmul.f32 %v816, %v953
  %v1048 = vmul.f32 %v818, %v955
  %v1049 = vmul.f32 %v820, %v957
  %v1050 = vmul.f32 %v822, %v959
  %v1051 = vmul.f32 %v824, %v961
  %v1052 = vmul.f32 %v826, %v963
  %v1053 = vmul.f32 %v828, %v965
  %v1054 = vmul.f32 %v830, %v967
  %v1055 = vmul.f32 %v832, %v969
  %v1056 = vmul.f32 %v834, %v971
  %v1057 = vmul.f32 %v836, %v973
  %v1058 = vmul.f32 %v838, %v975
  %v1059 = vmul.f32 %v840, %v977
  %v1060 = vmul.f32 %v842, %v979
  %v1061 = vmul.f32 %v844, %v981
  %v1062 = vmul.f32 %v846, %v983
  %v1063 = vmul.f32 %v848, %v985
  %v1064 = vmul.f32 %v850, %v987
  %v1065 = vmul.f32 %v852, %v989
  %v1066 = vmul.f32 %v854, %v991
  %v1067 = vmul.f32 %v856, %v993
  %v1068 = vmul.f32 %v858, %v995
  %v1069 = vmul.f32 %v860, %v997
  %v1070 = vmul.f32 %v862, %v999
  %v1071 = vmul.f32 %v864, %v1001
  %v1072 = vmul.f32 %v866, %v1003
  %v1073 = vmul.f32 %v868, %v1005
  %v1074 = vmul.f32 %v870, %v1007
  %v1075 = vmul.f32 %v872, %v1009
  %v1076 = vmul.f32 %v874, %v1011
  %v1077 = vmul.f32 %v876, %v1013
  %v1078 = vpack.c.bf16 %v1047, %v1046
  %v1079 = vpack.c.bf16 %v1049, %v1048
  %v1080 = vpack.c.bf16 %v1051, %v1050
  %v1081 = vpack.c.bf16 %v1053, %v1052
  %v1082 = vpack.c.bf16 %v1055, %v1054
  %v1083 = vpack.c.bf16 %v1057, %v1056
  %v1084 = vpack.c.bf16 %v1059, %v1058
  %v1085 = vpack.c.bf16 %v1061, %v1060
  %v1086 = vpack.c.bf16 %v1063, %v1062
  %v1087 = vpack.c.bf16 %v1065, %v1064
  %v1088 = vpack.c.bf16 %v1067, %v1066
  %v1089 = vpack.c.bf16 %v1069, %v1068
  %v1090 = vpack.c.bf16 %v1071, %v1070
  %v1091 = vpack.c.bf16 %v1073, %v1072
  %v1092 = vpack.c.bf16 %v1075, %v1074
  %v1093 = vpack.c.bf16 %v1077, %v1076
  %v1110 = vunpack.c.l.b16 %v1078
  %v1111 = vunpack.c.h.b16 %v1078
  %v1112 = vunpack.c.l.b16 %v1079
  %v1113 = vunpack.c.h.b16 %v1079
  %v1114 = vunpack.c.l.b16 %v1080
  %v1115 = vunpack.c.h.b16 %v1080
  %v1116 = vunpack.c.l.b16 %v1081
  %v1117 = vunpack.c.h.b16 %v1081
  %v1118 = vunpack.c.l.b16 %v1082
  %v1119 = vunpack.c.h.b16 %v1082
  %v1120 = vunpack.c.l.b16 %v1083
  %v1121 = vunpack.c.h.b16 %v1083
  %v1122 = vunpack.c.l.b16 %v1084
  %v1123 = vunpack.c.h.b16 %v1084
  %v1124 = vunpack.c.l.b16 %v1085
  %v1125 = vunpack.c.h.b16 %v1085
  %v1126 = vunpack.c.l.b16 %v1086
  %v1127 = vunpack.c.h.b16 %v1086
  %v1128 = vunpack.c.l.b16 %v1087
  %v1129 = vunpack.c.h.b16 %v1087
  %v1130 = vunpack.c.l.b16 %v1088
  %v1131 = vunpack.c.h.b16 %v1088
  %v1132 = vunpack.c.l.b16 %v1089
  %v1133 = vunpack.c.h.b16 %v1089
  %v1134 = vunpack.c.l.b16 %v1090
  %v1135 = vunpack.c.h.b16 %v1090
  %v1136 = vunpack.c.l.b16 %v1091
  %v1137 = vunpack.c.h.b16 %v1091
  %v1138 = vunpack.c.l.b16 %v1092
  %v1139 = vunpack.c.h.b16 %v1092
  %v1140 = vunpack.c.l.b16 %v1093
  %v1141 = vunpack.c.h.b16 %v1093
  %v1142 = vpack.c.b16 %v1110, %v1110
  %v1143 = vpack.c.b16 %v1111, %v1111
  %v1144 = vpack.c.b16 %v1112, %v1112
  %v1145 = vpack.c.b16 %v1113, %v1113
  %v1146 = vpack.c.b16 %v1114, %v1114
  %v1147 = vpack.c.b16 %v1115, %v1115
  %v1148 = vpack.c.b16 %v1116, %v1116
  %v1149 = vpack.c.b16 %v1117, %v1117
  %v1150 = vpack.c.b16 %v1118, %v1118
  %v1151 = vpack.c.b16 %v1119, %v1119
  %v1152 = vpack.c.b16 %v1120, %v1120
  %v1153 = vpack.c.b16 %v1121, %v1121
  %v1154 = vpack.c.b16 %v1122, %v1122
  %v1155 = vpack.c.b16 %v1123, %v1123
  %v1156 = vpack.c.b16 %v1124, %v1124
  %v1157 = vpack.c.b16 %v1125, %v1125
  %v1158 = vpack.c.b16 %v1126, %v1126
  %v1159 = vpack.c.b16 %v1127, %v1127
  %v1160 = vpack.c.b16 %v1128, %v1128
  %v1161 = vpack.c.b16 %v1129, %v1129
  %v1162 = vpack.c.b16 %v1130, %v1130
  %v1163 = vpack.c.b16 %v1131, %v1131
  %v1164 = vpack.c.b16 %v1132, %v1132
  %v1165 = vpack.c.b16 %v1133, %v1133
  %v1166 = vpack.c.b16 %v1134, %v1134
  %v1167 = vpack.c.b16 %v1135, %v1135
  %v1168 = vpack.c.b16 %v1136, %v1136
  %v1169 = vpack.c.b16 %v1137, %v1137
  %v1170 = vpack.c.b16 %v1138, %v1138
  %v1171 = vpack.c.b16 %v1139, %v1139
  %v1172 = vpack.c.b16 %v1140, %v1140
  %v1173 = vpack.c.b16 %v1141, %v1141
  %vm1206 = vcmask 257024
  %1207 = vst.msk [vmem:[%s6] sm:$0xf] %vm1206, %v1142
  %1208 = vst.msk [vmem:[%s6 + $0x4] sm:$0xf] %vm1206, %v1143
  %1209 = vst.msk [vmem:[%s6 + $0x8] sm:$0xf] %vm1206, %v1144
  %1210 = vst.msk [vmem:[%s6 + $0xc] sm:$0xf] %vm1206, %v1145
  %1211 = vst.msk [vmem:[%s6 + $0x10] sm:$0xf] %vm1206, %v1146
  %1212 = vst.msk [vmem:[%s6 + $0x14] sm:$0xf] %vm1206, %v1147
  %1213 = vst.msk [vmem:[%s6 + $0x18] sm:$0xf] %vm1206, %v1148
  %1214 = vst.msk [vmem:[%s6 + $0x1c] sm:$0xf] %vm1206, %v1149
  %1215 = vst.msk [vmem:[%s6 + $0x20] sm:$0xf] %vm1206, %v1150
  %1216 = vst.msk [vmem:[%s6 + $0x24] sm:$0xf] %vm1206, %v1151
  %1217 = vst.msk [vmem:[%s6 + $0x28] sm:$0xf] %vm1206, %v1152
  %1218 = vst.msk [vmem:[%s6 + $0x2c] sm:$0xf] %vm1206, %v1153
  %1219 = vst.msk [vmem:[%s6 + $0x30] sm:$0xf] %vm1206, %v1154
  %1220 = vst.msk [vmem:[%s6 + $0x34] sm:$0xf] %vm1206, %v1155
  %1221 = vst.msk [vmem:[%s6 + $0x38] sm:$0xf] %vm1206, %v1156
  %1222 = vst.msk [vmem:[%s6 + $0x3c] sm:$0xf] %vm1206, %v1157
  %1223 = vst.msk [vmem:[%s6 + $0x40] sm:$0xf] %vm1206, %v1158
  %1224 = vst.msk [vmem:[%s6 + $0x44] sm:$0xf] %vm1206, %v1159
  %1225 = vst.msk [vmem:[%s6 + $0x48] sm:$0xf] %vm1206, %v1160
  %1226 = vst.msk [vmem:[%s6 + $0x4c] sm:$0xf] %vm1206, %v1161
  %1227 = vst.msk [vmem:[%s6 + $0x50] sm:$0xf] %vm1206, %v1162
  %1228 = vst.msk [vmem:[%s6 + $0x54] sm:$0xf] %vm1206, %v1163
  %1229 = vst.msk [vmem:[%s6 + $0x58] sm:$0xf] %vm1206, %v1164
  %1230 = vst.msk [vmem:[%s6 + $0x5c] sm:$0xf] %vm1206, %v1165
  %1231 = vst.msk [vmem:[%s6 + $0x60] sm:$0xf] %vm1206, %v1166
  %1232 = vst.msk [vmem:[%s6 + $0x64] sm:$0xf] %vm1206, %v1167
  %1233 = vst.msk [vmem:[%s6 + $0x68] sm:$0xf] %vm1206, %v1168
  %1234 = vst.msk [vmem:[%s6 + $0x6c] sm:$0xf] %vm1206, %v1169
  %1235 = vst.msk [vmem:[%s6 + $0x70] sm:$0xf] %vm1206, %v1170
  %1236 = vst.msk [vmem:[%s6 + $0x74] sm:$0xf] %vm1206, %v1171
  %1237 = vst.msk [vmem:[%s6 + $0x78] sm:$0xf] %vm1206, %v1172
  %1238 = vst.msk [vmem:[%s6 + $0x7c] sm:$0xf] %vm1206, %v1173
  %v1239 = vpack.c.bf16 %v816, %v814
  %v1240 = vpack.c.bf16 %v820, %v818
  %v1241 = vpack.c.bf16 %v824, %v822
  %v1242 = vpack.c.bf16 %v828, %v826
  %v1243 = vpack.c.bf16 %v832, %v830
  %v1244 = vpack.c.bf16 %v836, %v834
  %v1245 = vpack.c.bf16 %v840, %v838
  %v1246 = vpack.c.bf16 %v844, %v842
  %v1247 = vpack.c.bf16 %v848, %v846
  %v1248 = vpack.c.bf16 %v852, %v850
  %v1249 = vpack.c.bf16 %v856, %v854
  %v1250 = vpack.c.bf16 %v860, %v858
  %v1251 = vpack.c.bf16 %v864, %v862
  %v1252 = vpack.c.bf16 %v868, %v866
  %v1253 = vpack.c.bf16 %v872, %v870
  %v1254 = vpack.c.bf16 %v876, %v874
  %v1271 = vunpack.c.l.b16 %v1239
  %v1272 = vunpack.c.h.b16 %v1239
  %v1273 = vunpack.c.l.b16 %v1240
  %v1274 = vunpack.c.h.b16 %v1240
  %v1275 = vunpack.c.l.b16 %v1241
  %v1276 = vunpack.c.h.b16 %v1241
  %v1277 = vunpack.c.l.b16 %v1242
  %v1278 = vunpack.c.h.b16 %v1242
  %v1279 = vunpack.c.l.b16 %v1243
  %v1280 = vunpack.c.h.b16 %v1243
  %v1281 = vunpack.c.l.b16 %v1244
  %v1282 = vunpack.c.h.b16 %v1244
  %v1283 = vunpack.c.l.b16 %v1245
  %v1284 = vunpack.c.h.b16 %v1245
  %v1285 = vunpack.c.l.b16 %v1246
  %v1286 = vunpack.c.h.b16 %v1246
  %v1287 = vunpack.c.l.b16 %v1247
  %v1288 = vunpack.c.h.b16 %v1247
  %v1289 = vunpack.c.l.b16 %v1248
  %v1290 = vunpack.c.h.b16 %v1248
  %v1291 = vunpack.c.l.b16 %v1249
  %v1292 = vunpack.c.h.b16 %v1249
  %v1293 = vunpack.c.l.b16 %v1250
  %v1294 = vunpack.c.h.b16 %v1250
  %v1295 = vunpack.c.l.b16 %v1251
  %v1296 = vunpack.c.h.b16 %v1251
  %v1297 = vunpack.c.l.b16 %v1252
  %v1298 = vunpack.c.h.b16 %v1252
  %v1299 = vunpack.c.l.b16 %v1253
  %v1300 = vunpack.c.h.b16 %v1253
  %v1301 = vunpack.c.l.b16 %v1254
  %v1302 = vunpack.c.h.b16 %v1254
  %v1303 = vpack.c.b16 %v1271, %v1271
  %v1304 = vpack.c.b16 %v1272, %v1272
  %v1305 = vpack.c.b16 %v1273, %v1273
  %v1306 = vpack.c.b16 %v1274, %v1274
  %v1307 = vpack.c.b16 %v1275, %v1275
  %v1308 = vpack.c.b16 %v1276, %v1276
  %v1309 = vpack.c.b16 %v1277, %v1277
  %v1310 = vpack.c.b16 %v1278, %v1278
  %v1311 = vpack.c.b16 %v1279, %v1279
  %v1312 = vpack.c.b16 %v1280, %v1280
  %v1313 = vpack.c.b16 %v1281, %v1281
  %v1314 = vpack.c.b16 %v1282, %v1282
  %v1315 = vpack.c.b16 %v1283, %v1283
  %v1316 = vpack.c.b16 %v1284, %v1284
  %v1317 = vpack.c.b16 %v1285, %v1285
  %v1318 = vpack.c.b16 %v1286, %v1286
  %v1319 = vpack.c.b16 %v1287, %v1287
  %v1320 = vpack.c.b16 %v1288, %v1288
  %v1321 = vpack.c.b16 %v1289, %v1289
  %v1322 = vpack.c.b16 %v1290, %v1290
  %v1323 = vpack.c.b16 %v1291, %v1291
  %v1324 = vpack.c.b16 %v1292, %v1292
  %v1325 = vpack.c.b16 %v1293, %v1293
  %v1326 = vpack.c.b16 %v1294, %v1294
  %v1327 = vpack.c.b16 %v1295, %v1295
  %v1328 = vpack.c.b16 %v1296, %v1296
  %v1329 = vpack.c.b16 %v1297, %v1297
  %v1330 = vpack.c.b16 %v1298, %v1298
  %v1331 = vpack.c.b16 %v1299, %v1299
  %v1332 = vpack.c.b16 %v1300, %v1300
  %v1333 = vpack.c.b16 %v1301, %v1301
  %v1334 = vpack.c.b16 %v1302, %v1302
  %1335 = vrot.lane.b32.xlu0 %v1303, 32
  %v1336 = vpop.permute.xlu0 %1335
  %1337 = vrot.lane.b32.xlu0 %v1304, 32
  %v1338 = vpop.permute.xlu0 %1337
  %1339 = vrot.lane.b32.xlu0 %v1305, 32
  %v1340 = vpop.permute.xlu0 %1339
  %1341 = vrot.lane.b32.xlu0 %v1306, 32
  %v1342 = vpop.permute.xlu0 %1341
  %1343 = vrot.lane.b32.xlu0 %v1307, 32
  %v1344 = vpop.permute.xlu0 %1343
  %1345 = vrot.lane.b32.xlu0 %v1308, 32
  %v1346 = vpop.permute.xlu0 %1345
  %1347 = vrot.lane.b32.xlu0 %v1309, 32
  %v1348 = vpop.permute.xlu0 %1347
  %1349 = vrot.lane.b32.xlu0 %v1310, 32
  %v1350 = vpop.permute.xlu0 %1349
  %1351 = vrot.lane.b32.xlu0 %v1311, 32
  %v1352 = vpop.permute.xlu0 %1351
  %1353 = vrot.lane.b32.xlu0 %v1312, 32
  %v1354 = vpop.permute.xlu0 %1353
  %1355 = vrot.lane.b32.xlu0 %v1313, 32
  %v1356 = vpop.permute.xlu0 %1355
  %1357 = vrot.lane.b32.xlu0 %v1314, 32
  %v1358 = vpop.permute.xlu0 %1357
  %1359 = vrot.lane.b32.xlu0 %v1315, 32
  %v1360 = vpop.permute.xlu0 %1359
  %1361 = vrot.lane.b32.xlu0 %v1316, 32
  %v1362 = vpop.permute.xlu0 %1361
  %1363 = vrot.lane.b32.xlu0 %v1317, 32
  %v1364 = vpop.permute.xlu0 %1363
  %1365 = vrot.lane.b32.xlu0 %v1318, 32
  %v1366 = vpop.permute.xlu0 %1365
  %1367 = vrot.lane.b32.xlu0 %v1319, 32
  %v1368 = vpop.permute.xlu0 %1367
  %1369 = vrot.lane.b32.xlu0 %v1320, 32
  %v1370 = vpop.permute.xlu0 %1369
  %1371 = vrot.lane.b32.xlu0 %v1321, 32
  %v1372 = vpop.permute.xlu0 %1371
  %1373 = vrot.lane.b32.xlu0 %v1322, 32
  %v1374 = vpop.permute.xlu0 %1373
  %1375 = vrot.lane.b32.xlu0 %v1323, 32
  %v1376 = vpop.permute.xlu0 %1375
  %1377 = vrot.lane.b32.xlu0 %v1324, 32
  %v1378 = vpop.permute.xlu0 %1377
  %1379 = vrot.lane.b32.xlu0 %v1325, 32
  %v1380 = vpop.permute.xlu0 %1379
  %1381 = vrot.lane.b32.xlu0 %v1326, 32
  %v1382 = vpop.permute.xlu0 %1381
  %1383 = vrot.lane.b32.xlu0 %v1327, 32
  %v1384 = vpop.permute.xlu0 %1383
  %1385 = vrot.lane.b32.xlu0 %v1328, 32
  %v1386 = vpop.permute.xlu0 %1385
  %1387 = vrot.lane.b32.xlu0 %v1329, 32
  %v1388 = vpop.permute.xlu0 %1387
  %1389 = vrot.lane.b32.xlu0 %v1330, 32
  %v1390 = vpop.permute.xlu0 %1389
  %1391 = vrot.lane.b32.xlu0 %v1331, 32
  %v1392 = vpop.permute.xlu0 %1391
  %1393 = vrot.lane.b32.xlu0 %v1332, 32
  %v1394 = vpop.permute.xlu0 %1393
  %1395 = vrot.lane.b32.xlu0 %v1333, 32
  %v1396 = vpop.permute.xlu0 %1395
  %1397 = vrot.lane.b32.xlu0 %v1334, 32
  %v1398 = vpop.permute.xlu0 %1397
  %vm1431 = vcmask 519424
  %1432 = vst.msk [vmem:[%s6] sm:$0xf] %vm1431, %v1336
  %1433 = vst.msk [vmem:[%s6 + $0x4] sm:$0xf] %vm1431, %v1338
  %1434 = vst.msk [vmem:[%s6 + $0x8] sm:$0xf] %vm1431, %v1340
  %1435 = vst.msk [vmem:[%s6 + $0xc] sm:$0xf] %vm1431, %v1342
  %1436 = vst.msk [vmem:[%s6 + $0x10] sm:$0xf] %vm1431, %v1344
  %1437 = vst.msk [vmem:[%s6 + $0x14] sm:$0xf] %vm1431, %v1346
  %1438 = vst.msk [vmem:[%s6 + $0x18] sm:$0xf] %vm1431, %v1348
  %1439 = vst.msk [vmem:[%s6 + $0x1c] sm:$0xf] %vm1431, %v1350
  %1440 = vst.msk [vmem:[%s6 + $0x20] sm:$0xf] %vm1431, %v1352
  %1441 = vst.msk [vmem:[%s6 + $0x24] sm:$0xf] %vm1431, %v1354
  %1442 = vst.msk [vmem:[%s6 + $0x28] sm:$0xf] %vm1431, %v1356
  %1443 = vst.msk [vmem:[%s6 + $0x2c] sm:$0xf] %vm1431, %v1358
  %1444 = vst.msk [vmem:[%s6 + $0x30] sm:$0xf] %vm1431, %v1360
  %1445 = vst.msk [vmem:[%s6 + $0x34] sm:$0xf] %vm1431, %v1362
  %1446 = vst.msk [vmem:[%s6 + $0x38] sm:$0xf] %vm1431, %v1364
  %1447 = vst.msk [vmem:[%s6 + $0x3c] sm:$0xf] %vm1431, %v1366
  %1448 = vst.msk [vmem:[%s6 + $0x40] sm:$0xf] %vm1431, %v1368
  %1449 = vst.msk [vmem:[%s6 + $0x44] sm:$0xf] %vm1431, %v1370
  %1450 = vst.msk [vmem:[%s6 + $0x48] sm:$0xf] %vm1431, %v1372
  %1451 = vst.msk [vmem:[%s6 + $0x4c] sm:$0xf] %vm1431, %v1374
  %1452 = vst.msk [vmem:[%s6 + $0x50] sm:$0xf] %vm1431, %v1376
  %1453 = vst.msk [vmem:[%s6 + $0x54] sm:$0xf] %vm1431, %v1378
  %1454 = vst.msk [vmem:[%s6 + $0x58] sm:$0xf] %vm1431, %v1380
  %1455 = vst.msk [vmem:[%s6 + $0x5c] sm:$0xf] %vm1431, %v1382
  %1456 = vst.msk [vmem:[%s6 + $0x60] sm:$0xf] %vm1431, %v1384
  %1457 = vst.msk [vmem:[%s6 + $0x64] sm:$0xf] %vm1431, %v1386
  %1458 = vst.msk [vmem:[%s6 + $0x68] sm:$0xf] %vm1431, %v1388
  %1459 = vst.msk [vmem:[%s6 + $0x6c] sm:$0xf] %vm1431, %v1390
  %1460 = vst.msk [vmem:[%s6 + $0x70] sm:$0xf] %vm1431, %v1392
  %1461 = vst.msk [vmem:[%s6 + $0x74] sm:$0xf] %vm1431, %v1394
  %1462 = vst.msk [vmem:[%s6 + $0x78] sm:$0xf] %vm1431, %v1396
  %1463 = vst.msk [vmem:[%s6 + $0x7c] sm:$0xf] %vm1431, %v1398
  %1496 = vrot.lane.b32.xlu0 %v616, 64
  %v1497 = vpop.permute.xlu0 %1496
  %1498 = vrot.lane.b32.xlu0 %v621, 64
  %v1499 = vpop.permute.xlu0 %1498
  %1500 = vrot.lane.b32.xlu0 %v626, 64
  %v1501 = vpop.permute.xlu0 %1500
  %1502 = vrot.lane.b32.xlu0 %v631, 64
  %v1503 = vpop.permute.xlu0 %1502
  %1504 = vrot.lane.b32.xlu0 %v636, 64
  %v1505 = vpop.permute.xlu0 %1504
  %1506 = vrot.lane.b32.xlu0 %v641, 64
  %v1507 = vpop.permute.xlu0 %1506
  %1508 = vrot.lane.b32.xlu0 %v646, 64
  %v1509 = vpop.permute.xlu0 %1508
  %1510 = vrot.lane.b32.xlu0 %v651, 64
  %v1511 = vpop.permute.xlu0 %1510
  %1512 = vrot.lane.b32.xlu0 %v656, 64
  %v1513 = vpop.permute.xlu0 %1512
  %1514 = vrot.lane.b32.xlu0 %v661, 64
  %v1515 = vpop.permute.xlu0 %1514
  %1516 = vrot.lane.b32.xlu0 %v666, 64
  %v1517 = vpop.permute.xlu0 %1516
  %1518 = vrot.lane.b32.xlu0 %v671, 64
  %v1519 = vpop.permute.xlu0 %1518
  %1520 = vrot.lane.b32.xlu0 %v676, 64
  %v1521 = vpop.permute.xlu0 %1520
  %1522 = vrot.lane.b32.xlu0 %v681, 64
  %v1523 = vpop.permute.xlu0 %1522
  %1524 = vrot.lane.b32.xlu0 %v686, 64
  %v1525 = vpop.permute.xlu0 %1524
  %1526 = vrot.lane.b32.xlu0 %v691, 64
  %v1527 = vpop.permute.xlu0 %1526
  %1528 = vrot.lane.b32.xlu0 %v696, 64
  %v1529 = vpop.permute.xlu0 %1528
  %1530 = vrot.lane.b32.xlu0 %v701, 64
  %v1531 = vpop.permute.xlu0 %1530
  %1532 = vrot.lane.b32.xlu0 %v706, 64
  %v1533 = vpop.permute.xlu0 %1532
  %1534 = vrot.lane.b32.xlu0 %v711, 64
  %v1535 = vpop.permute.xlu0 %1534
  %1536 = vrot.lane.b32.xlu0 %v716, 64
  %v1537 = vpop.permute.xlu0 %1536
  %1538 = vrot.lane.b32.xlu0 %v721, 64
  %v1539 = vpop.permute.xlu0 %1538
  %1540 = vrot.lane.b32.xlu0 %v726, 64
  %v1541 = vpop.permute.xlu0 %1540
  %1542 = vrot.lane.b32.xlu0 %v731, 64
  %v1543 = vpop.permute.xlu0 %1542
  %1544 = vrot.lane.b32.xlu0 %v736, 64
  %v1545 = vpop.permute.xlu0 %1544
  %1546 = vrot.lane.b32.xlu0 %v741, 64
  %v1547 = vpop.permute.xlu0 %1546
  %1548 = vrot.lane.b32.xlu0 %v746, 64
  %v1549 = vpop.permute.xlu0 %1548
  %1550 = vrot.lane.b32.xlu0 %v751, 64
  %v1551 = vpop.permute.xlu0 %1550
  %1552 = vrot.lane.b32.xlu0 %v756, 64
  %v1553 = vpop.permute.xlu0 %1552
  %1554 = vrot.lane.b32.xlu0 %v761, 64
  %v1555 = vpop.permute.xlu0 %1554
  %1556 = vrot.lane.b32.xlu0 %v766, 64
  %v1557 = vpop.permute.xlu0 %1556
  %1558 = vrot.lane.b32.xlu0 %v771, 64
  %v1559 = vpop.permute.xlu0 %1558
  %1592 = vst.msk [vmem:[%s7] sm:$0xff] %vm452, %v1497
  %1593 = vst.msk [vmem:[%s7 + $0x8] sm:$0xff] %vm452, %v1499
  %1594 = vst.msk [vmem:[%s7 + $0x10] sm:$0xff] %vm452, %v1501
  %1595 = vst.msk [vmem:[%s7 + $0x18] sm:$0xff] %vm452, %v1503
  %1596 = vst.msk [vmem:[%s7 + $0x20] sm:$0xff] %vm452, %v1505
  %1597 = vst.msk [vmem:[%s7 + $0x28] sm:$0xff] %vm452, %v1507
  %1598 = vst.msk [vmem:[%s7 + $0x30] sm:$0xff] %vm452, %v1509
  %1599 = vst.msk [vmem:[%s7 + $0x38] sm:$0xff] %vm452, %v1511
  %1600 = vst.msk [vmem:[%s7 + $0x40] sm:$0xff] %vm452, %v1513
  %1601 = vst.msk [vmem:[%s7 + $0x48] sm:$0xff] %vm452, %v1515
  %1602 = vst.msk [vmem:[%s7 + $0x50] sm:$0xff] %vm452, %v1517
  %1603 = vst.msk [vmem:[%s7 + $0x58] sm:$0xff] %vm452, %v1519
  %1604 = vst.msk [vmem:[%s7 + $0x60] sm:$0xff] %vm452, %v1521
  %1605 = vst.msk [vmem:[%s7 + $0x68] sm:$0xff] %vm452, %v1523
  %1606 = vst.msk [vmem:[%s7 + $0x70] sm:$0xff] %vm452, %v1525
  %1607 = vst.msk [vmem:[%s7 + $0x78] sm:$0xff] %vm452, %v1527
  %1608 = vst.msk [vmem:[%s7 + $0x80] sm:$0xff] %vm452, %v1529
  %1609 = vst.msk [vmem:[%s7 + $0x88] sm:$0xff] %vm452, %v1531
  %1610 = vst.msk [vmem:[%s7 + $0x90] sm:$0xff] %vm452, %v1533
  %1611 = vst.msk [vmem:[%s7 + $0x98] sm:$0xff] %vm452, %v1535
  %1612 = vst.msk [vmem:[%s7 + $0xa0] sm:$0xff] %vm452, %v1537
  %1613 = vst.msk [vmem:[%s7 + $0xa8] sm:$0xff] %vm452, %v1539
  %1614 = vst.msk [vmem:[%s7 + $0xb0] sm:$0xff] %vm452, %v1541
  %1615 = vst.msk [vmem:[%s7 + $0xb8] sm:$0xff] %vm452, %v1543
  %1616 = vst.msk [vmem:[%s7 + $0xc0] sm:$0xff] %vm452, %v1545
  %1617 = vst.msk [vmem:[%s7 + $0xc8] sm:$0xff] %vm452, %v1547
  %1618 = vst.msk [vmem:[%s7 + $0xd0] sm:$0xff] %vm452, %v1549
  %1619 = vst.msk [vmem:[%s7 + $0xd8] sm:$0xff] %vm452, %v1551
  %1620 = vst.msk [vmem:[%s7 + $0xe0] sm:$0xff] %vm452, %v1553
  %1621 = vst.msk [vmem:[%s7 + $0xe8] sm:$0xff] %vm452, %v1555
  %1622 = vst.msk [vmem:[%s7 + $0xf0] sm:$0xff] %vm452, %v1557
  %1623 = vst.msk [vmem:[%s7 + $0xf8] sm:$0xff] %vm452, %v1559
  // Predicated region
  $region26: #{point_transformer_net.8} parent=0 // pred_check
    _
  $region27: #{point_transformer_net.8} parent=0 // pred_check_branch
    %1625 = sbr.rel (0) target = $region29
  $region28: #{point_transformer_net.8} parent=0 // pred_region
    _
  $region29: #{point_transformer_net.8} parent=0 // pred_fallthru
    _
  // Predicated region
  $region30: #{point_transformer_net.8} parent=0 // pred_check
    _
  $region31: #{point_transformer_net.8} parent=0 // pred_check_branch
    %1627 = sbr.rel (0) target = $region33
  $region32: #{point_transformer_net.8} parent=0 // pred_region
    _
  $region33: #{point_transformer_net.8} parent=0 // pred_fallthru
    _
  // Predicated region
  $region34: #{point_transformer_net.8} parent=0 // pred_check
    _
  $region35: #{point_transformer_net.8} parent=0 // pred_check_branch
    %1629 = sbr.rel (0) target = $region37
  $region36: #{point_transformer_net.8} parent=0 // pred_region
    _
  $region37: #{point_transformer_net.8} parent=0 // pred_fallthru
    _
  // Predicated region
  $region38: #{point_transformer_net.8} parent=0 // pred_check
    _
  $region39: #{point_transformer_net.8} parent=0 // pred_check_branch
    %1631 = sbr.rel (0) target = $region41
  $region40: #{point_transformer_net.8} parent=0 // pred_region
    _
  $region41: #{point_transformer_net.8} parent=0 // pred_fallthru
    _

</llo_original>
